<compile_context>
chip_gen: v7x
topology: tpu7x:2x2x1
jax: 0.10.0
libtpu: 0.0.40
codegen_flags: <defaults>
</compile_context>

<pallas_src>
import functools

import jax
import jax.numpy as jnp
from jax import lax
from jax.experimental import pallas as pl
from jax.experimental.pallas import tpu as pltpu


# ----------------------------------------------------------------------------
# In-kernel recurrence over one time block
# ----------------------------------------------------------------------------
def _run_time_block(pre_ref, whh_ref, bias_ref, h_sc, c_sc, emit_fn, *,
                    H, TT, T_real, mask_tail, unroll):
    """Run TT timesteps of the LSTM recurrence for the current grid block.

    pre_ref : (TT, B, 4H) f32   x @ W_ih for this layer (gate-concat, [i|f|o|g])
    whh_ref : (H, 4H)           recurrent weights (gate-concat)
    bias_ref: (1, 4H)  f32      b_ih + b_hh (gate-concat)
    h_sc/c_sc : (B, H) f32 VMEM scratch persisting across grid steps
    emit_fn : optional fn(tt, h_new) to emit per-timestep results
    """
    tb = pl.program_id(0)
    w_hh = whh_ref[...]          # hoist weight / bias loads out of the time loop
    bias = bias_ref[...]

    def step(tt, carry):
        h_prev, c_prev = carry
        gates = (pre_ref[tt] + bias
                 + jnp.dot(h_prev.astype(w_hh.dtype), w_hh,
                           preferred_element_type=jnp.float32))      # (B, 4H)
        sig = jax.nn.sigmoid(gates[:, :3 * H])                        # i, f, o
        i_g = sig[:, 0 * H:1 * H]
        f_g = sig[:, 1 * H:2 * H]
        o_g = sig[:, 2 * H:3 * H]
        g_g = jnp.tanh(gates[:, 3 * H:])                              # g
        c_new = f_g * c_prev + i_g * g_g
        h_new = o_g * jnp.tanh(c_new)
        if mask_tail:
            # Padded timesteps (global t >= T_real) must not advance the state.
            valid = (tb * TT + tt) < T_real
            h_new = jnp.where(valid, h_new, h_prev)
            c_new = jnp.where(valid, c_new, c_prev)
        if emit_fn is not None:
            emit_fn(tt, h_new)
        return (h_new, c_new)

    h_last, c_last = lax.fori_loop(0, TT, step, (h_sc[...], c_sc[...]),
                                   unroll=unroll)
    h_sc[...] = h_last
    c_sc[...] = c_last


def lstm_mid_kernel(pre_ref, whh_ref, bias_ref, wih_next_ref, prenext_ref,
                    h_sc, c_sc, *, H, TT, T_real, mask_tail, unroll):
    """Intermediate LSTM layer; emits the NEXT layer's pre-gates (lane-dense,
    (TT, B, 4H_next)) instead of the (T, B, H) hidden sequence."""
    @pl.when(pl.program_id(0) == 0)
    def _():
        h_sc[...] = jnp.zeros_like(h_sc)
        c_sc[...] = jnp.zeros_like(c_sc)

    w_next = wih_next_ref[...]

    def emit(tt, h_new):
        prenext_ref[tt] = jnp.dot(
            h_new.astype(w_next.dtype), w_next,
            preferred_element_type=jnp.float32).astype(prenext_ref.dtype)

    _run_time_block(pre_ref, whh_ref, bias_ref, h_sc, c_sc, emit,
                    H=H, TT=TT, T_real=T_real, mask_tail=mask_tail,
                    unroll=unroll)


def lstm_top_fc_kernel(pre_ref, whh_ref, bias_ref, wfc_ref, bfc_ref, out_ref,
                       h_sc, c_sc, *, H, TT, T_real, mask_tail, unroll):
    """Top LSTM layer with the final Linear fused; only (B, O) reaches HBM."""
    tb = pl.program_id(0)

    @pl.when(tb == 0)
    def _():
        h_sc[...] = jnp.zeros_like(h_sc)
        c_sc[...] = jnp.zeros_like(c_sc)

    _run_time_block(pre_ref, whh_ref, bias_ref, h_sc, c_sc, None,
                    H=H, TT=TT, T_real=T_real, mask_tail=mask_tail,
                    unroll=unroll)

    @pl.when(tb == pl.num_programs(0) - 1)
    def _():
        h_last = h_sc[...].astype(wfc_ref.dtype)
        out_ref[...] = (
            jnp.dot(h_last, wfc_ref[...], preferred_element_type=jnp.float32)
            + bfc_ref[...]
        ).astype(out_ref.dtype)


# ----------------------------------------------------------------------------
# pallas_call wrappers
# ----------------------------------------------------------------------------
def _plan_time_blocking(T, B, H, *, max_block=32, budget_bytes=36 << 20):
    """Pick timesteps-per-grid-step TT under a VMEM budget, the padded T, and an
    explicit vmem limit (sized so it is safe on v5e/v6e/v7x)."""
    def footprint(tt):
        blk = tt * B * 4 * H * 4            # one pre / pre_next block (f32)
        weights = 2 * (H * 4 * H * 4)       # W_hh + (W_ih_next or W_fc), f32
        scratch = 2 * B * H * 4
        # in + out blocks double-buffered, weights double-buffered, bias + slack
        return 2 * (2 * blk) + 2 * weights + scratch + 8 * 4 * H * 4

    tt = max(1, min(max_block, T))
    while tt > 1 and footprint(tt) > budget_bytes:
        tt -= 1
    # Prefer a divisor of T (no padded timesteps) if a reasonably large one exists.
    for cand in range(tt, max(tt // 2, 1) - 1, -1):
        if T % cand == 0:
            tt = cand
            break
    t_pad = -(-T // tt) * tt
    vmem_limit = int(min(56 << 20, max(2 * footprint(tt), 32 << 20)))
    return tt, t_pad, vmem_limit


def lstm_mid_layer(pre, w_hh, bias, w_ih_next, *, time_block, T_real,
                   vmem_limit):
    """pre: (T_pad, B, 4H). Returns the next layer's pre-gates (T_pad, B, 4H')."""
    T_pad, B, G = pre.shape
    H = G // 4
    G_next = w_ih_next.shape[1]
    kernel = functools.partial(
        lstm_mid_kernel, H=H, TT=time_block, T_real=T_real,
        mask_tail=(T_pad != T_real), unroll=min(time_block, 8))
    return pl.pallas_call(
        kernel,
        out_shape=jax.ShapeDtypeStruct((T_pad, B, G_next), jnp.float32),
        grid_spec=pltpu.PrefetchScalarGridSpec(
            num_scalar_prefetch=0,
            grid=(T_pad // time_block,),
            in_specs=[
                pl.BlockSpec((time_block, B, G), lambda tb: (tb, 0, 0)),
                pl.BlockSpec((H, G), lambda tb: (0, 0)),
                pl.BlockSpec((1, G), lambda tb: (0, 0)),
                pl.BlockSpec((H, G_next), lambda tb: (0, 0)),
            ],
            out_specs=pl.BlockSpec((time_block, B, G_next),
                                   lambda tb: (tb, 0, 0)),
            scratch_shapes=[
                pltpu.VMEM((B, H), jnp.float32),   # h state
                pltpu.VMEM((B, H), jnp.float32),   # c state
            ],
        ),
        compiler_params=pltpu.CompilerParams(
            dimension_semantics=("arbitrary",),    # serial recurrence over time
            vmem_limit_bytes=vmem_limit,
        ),
    )(pre, w_hh, bias, w_ih_next)


def lstm_top_layer_fused_fc(pre, w_hh, bias, w_fc_t, b_fc, *, time_block,
                            T_real, vmem_limit):
    """Top LSTM layer + fused FC. pre: (T_pad, B, 4H). Returns (B, O)."""
    T_pad, B, G = pre.shape
    H = G // 4
    O = w_fc_t.shape[1]
    kernel = functools.partial(
        lstm_top_fc_kernel, H=H, TT=time_block, T_real=T_real,
        mask_tail=(T_pad != T_real), unroll=min(time_block, 8))
    return pl.pallas_call(
        kernel,
        out_shape=jax.ShapeDtypeStruct((B, O), jnp.float32),
        grid_spec=pltpu.PrefetchScalarGridSpec(
            num_scalar_prefetch=0,
            grid=(T_pad // time_block,),
            in_specs=[
                pl.BlockSpec((time_block, B, G), lambda tb: (tb, 0, 0)),
                pl.BlockSpec((H, G), lambda tb: (0, 0)),
                pl.BlockSpec((1, G), lambda tb: (0, 0)),
                pl.BlockSpec((H, O), lambda tb: (0, 0)),
                pl.BlockSpec((1, O), lambda tb: (0, 0)),
            ],
            out_specs=pl.BlockSpec((B, O), lambda tb: (0, 0)),   # resident block
            scratch_shapes=[
                pltpu.VMEM((B, H), jnp.float32),
                pltpu.VMEM((B, H), jnp.float32),
            ],
        ),
        compiler_params=pltpu.CompilerParams(
            dimension_semantics=("arbitrary",),
            vmem_limit_bytes=vmem_limit,
        ),
    )(pre, w_hh, bias, w_fc_t, b_fc)


@functools.partial(jax.jit, static_argnames=("num_layers", "hidden_size"))
def lstm_state_selector_forward(x_bf, params, num_layers, hidden_size):
    """x_bf: (B, T, input_size), batch-first (PyTorch convention). Returns (B, O)."""
    B, T, _ = x_bf.shape
    H = hidden_size
    # Sublane-align the batch (pad to a multiple of 8, min 8); drop padding at end.
    B_pad = max(8, -(-B // 8) * 8)
    if B_pad != B:
        x_bf = jnp.pad(x_bf, ((0, B_pad - B), (0, 0), (0, 0)))
    TT, T_pad, vmem_limit = _plan_time_blocking(T, B_pad, H)

    # Layer 0 input projection hoisted as one big matmul for all timesteps;
    # the batch-first -> time-major transpose is folded into the einsum.
    p0 = params["lstm_l0"]
    pre = jnp.einsum("btd,dg->tbg", x_bf.astype(p0["w_ih"].dtype), p0["w_ih"],
                     preferred_element_type=jnp.float32)       # (T, B_pad, 4H)
    if T_pad != T:
        pre = jnp.pad(pre, ((0, T_pad - T), (0, 0), (0, 0)))

    # Intermediate layers: each kernel directly emits the next layer's pre-gates
    # (lane-dense 4H last dim) -> no (T, B, H) hidden sequence ever hits HBM.
    for layer in range(num_layers - 1):
        p = params[f"lstm_l{layer}"]
        p_next = params[f"lstm_l{layer + 1}"]
        pre = lstm_mid_layer(pre, p["w_hh"], p["bias"], p_next["w_ih"],
                             time_block=TT, T_real=T, vmem_limit=vmem_limit)

    p_top = params[f"lstm_l{num_layers - 1}"]
    out = lstm_top_layer_fused_fc(pre, p_top["w_hh"], p_top["bias"],
                                  params["fc"]["w_t"], params["fc"]["b"],
                                  time_block=TT, T_real=T,
                                  vmem_limit=vmem_limit)
    return out[:B]


# ----------------------------------------------------------------------------
# Parameter init (PyTorch-style uniform(-1/sqrt(H), 1/sqrt(H)))
# Gate-concatenated layout on the LAST axis, gate order [i | f | o | g].
# ----------------------------------------------------------------------------
_GATE_PERM = (0, 1, 3, 2)   # PyTorch rows [i, f, g, o] -> ours [i, f, o, g]


def _to_gate_last(w):
    """(4H, d_in) PyTorch layout -> (d_in, 4H) with gate columns [i|f|o|g]."""
    four, d_in = w.shape
    H = four // 4
    w4 = w.reshape(4, H, d_in)[jnp.array(_GATE_PERM)]
    return jnp.transpose(w4, (2, 0, 1)).reshape(d_in, 4 * H)


def init_params(key, input_size, hidden_size, num_layers, output_size,
                param_dtype=jnp.float32):
    """param_dtype=jnp.bfloat16 halves weight DMA for large H; state stays f32."""
    params = {}
    H = hidden_size
    bound = 1.0 / float(H ** 0.5)
    for layer in range(num_layers):
        d_in = input_size if layer == 0 else H
        key, k1, k2, k3, k4 = jax.random.split(key, 5)
        w_ih = jax.random.uniform(k1, (4 * H, d_in), jnp.float32, -bound, bound)
        w_hh = jax.random.uniform(k2, (4 * H, H), jnp.float32, -bound, bound)
        b_ih = jax.random.uniform(k3, (4 * H,), jnp.float32, -bound, bound)
        b_hh = jax.random.uniform(k4, (4 * H,), jnp.float32, -bound, bound)
        bias = (b_ih + b_hh).reshape(4, H)[jnp.array(_GATE_PERM)].reshape(1, 4 * H)
        params[f"lstm_l{layer}"] = {
            "w_ih": _to_gate_last(w_ih).astype(param_dtype),   # (d_in, 4H)
            "w_hh": _to_gate_last(w_hh).astype(param_dtype),   # (H,    4H)
            "bias": bias.astype(jnp.float32),                  # (1,    4H)
        }
    key, k1, k2 = jax.random.split(key, 3)
    w_fc = jax.random.uniform(k1, (output_size, H), jnp.float32, -bound, bound)
    b_fc = jax.random.uniform(k2, (output_size,), jnp.float32, -bound, bound)
    params["fc"] = {
        "w_t": w_fc.T.astype(param_dtype),          # (H, O)
        "b": b_fc.reshape(1, output_size),          # (1, O) f32
    }
    return params


# ----------------------------------------------------------------------------
# Pure-JAX reference (same math, no Pallas) for verification
# ----------------------------------------------------------------------------
def reference_forward(x_bf, params, num_layers, hidden_size):
    B, T, _ = x_bf.shape
    H = hidden_size
    seq = jnp.transpose(x_bf, (1, 0, 2)).astype(jnp.float32)   # (T, B, D)
    for layer in range(num_layers):
        p = params[f"lstm_l{layer}"]
        w_ih = p["w_ih"].astype(jnp.float32)
        w_hh = p["w_hh"].astype(jnp.float32)
        bias = p["bias"].astype(jnp.float32)
        h = jnp.zeros((B, H), jnp.float32)
        c = jnp.zeros((B, H), jnp.float32)
        outs = []
        for t in range(T):
            gates = seq[t] @ w_ih + h @ w_hh + bias
            i_g = jax.nn.sigmoid(gates[:, 0 * H:1 * H])
            f_g = jax.nn.sigmoid(gates[:, 1 * H:2 * H])
            o_g = jax.nn.sigmoid(gates[:, 2 * H:3 * H])
            g_g = jnp.tanh(gates[:, 3 * H:4 * H])
            c = f_g * c + i_g * g_g
            h = o_g * jnp.tanh(c)
            outs.append(h)
        seq = jnp.stack(outs, axis=0)
    w_fc = params["fc"]["w_t"].astype(jnp.float32)
    return seq[-1] @ w_fc + params["fc"]["b"]


# ----------------------------------------------------------------------------
if __name__ == "__main__":
    # Small shapes consistent with the module's forward:
    B, T = 2, 8
    input_size, hidden_size, num_layers, output_size = 16, 32, 2, 4

    key = jax.random.PRNGKey(0)
    key, xkey = jax.random.split(key)
    x = jax.random.normal(xkey, (B, T, input_size), jnp.float32)   # batch-first

    params = init_params(key, input_size, hidden_size, num_layers, output_size)

    out = lstm_state_selector_forward(x, params, num_layers, hidden_size)
    out = jax.block_until_ready(out)
    assert out.shape == (B, output_size)

    ref = reference_forward(x, params, num_layers, hidden_size)
    assert jnp.allclose(out, ref, atol=1e-4, rtol=1e-4), (out, ref)

    print("KERNEL_OK")
</pallas_src>

<mosaic_0001>
module attributes {stable_mosaic.version = 11 : i64} {
  func.func @lstm_mid_kernel(%arg0: i32, %arg1: memref<8x8x128xf32, #tpu.memory_space<vmem>>, %arg2: memref<32x128xf32, #tpu.memory_space<vmem>>, %arg3: memref<1x128xf32, #tpu.memory_space<vmem>>, %arg4: memref<32x128xf32, #tpu.memory_space<vmem>>, %arg5: memref<8x8x128xf32, #tpu.memory_space<vmem>>, %arg6: memref<8x32xf32, #tpu.memory_space<vmem>>, %arg7: memref<8x32xf32, #tpu.memory_space<vmem>>) attributes {dimension_semantics = [#tpu.dimension_semantics<arbitrary>], iteration_bounds = array<i64: 1>, scalar_prefetch = 0 : i64, scratch_operands = 2 : i64, tpu.core_type = #tpu.core_type<tc>, window_params = [{transform_indices = @transform_0, window_bounds = array<i64: 8, 8, 128>}, {pipeline_mode = #tpu.pipeline_mode<synchronous>, transform_indices = @transform_1, window_bounds = array<i64: 32, 128>}, {pipeline_mode = #tpu.pipeline_mode<synchronous>, transform_indices = @transform_2, window_bounds = array<i64: 1, 128>}, {pipeline_mode = #tpu.pipeline_mode<synchronous>, transform_indices = @transform_3, window_bounds = array<i64: 32, 128>}, {transform_indices = @transform_4, window_bounds = array<i64: 8, 8, 128>}]} {
    %c0_i32 = arith.constant 0 : i32
    %0 = arith.cmpi eq, %arg0, %c0_i32 : i32
    %1 = arith.extui %0 : i1 to i32
    %c0_i32_0 = arith.constant 0 : i32
    %2 = arith.cmpi ne, %1, %c0_i32_0 : i32
    scf.if %2 {
      %cst_70 = arith.constant 0.000000e+00 : f32
      %234 = vector.broadcast %cst_70 : f32 to vector<8x32xf32>
      %c0_71 = arith.constant 0 : index
      %c0_72 = arith.constant 0 : index
      %235 = vector.load %arg6[%c0_71, %c0_72] : memref<8x32xf32, #tpu.memory_space<vmem>>, vector<8x32xf32>
      tpu.vector_store %arg6[%c0_71, %c0_72], %234 {strides = array<i32>} : memref<8x32xf32, #tpu.memory_space<vmem>>, vector<8x32xf32>,
      %cst_73 = arith.constant 0.000000e+00 : f32
      %236 = vector.broadcast %cst_73 : f32 to vector<8x32xf32>
      %c0_74 = arith.constant 0 : index
      %c0_75 = arith.constant 0 : index
      %237 = vector.load %arg7[%c0_74, %c0_75] : memref<8x32xf32, #tpu.memory_space<vmem>>, vector<8x32xf32>
      tpu.vector_store %arg7[%c0_74, %c0_75], %236 {strides = array<i32>} : memref<8x32xf32, #tpu.memory_space<vmem>>, vector<8x32xf32>,
    } else {
    }
    %c0 = arith.constant 0 : index
    %c0_1 = arith.constant 0 : index
    %3 = vector.load %arg4[%c0, %c0_1] : memref<32x128xf32, #tpu.memory_space<vmem>>, vector<32x128xf32>
    %c0_2 = arith.constant 0 : index
    %c0_3 = arith.constant 0 : index
    %4 = vector.load %arg2[%c0_2, %c0_3] : memref<32x128xf32, #tpu.memory_space<vmem>>, vector<32x128xf32>
    %c0_4 = arith.constant 0 : index
    %c0_5 = arith.constant 0 : index
    %5 = vector.load %arg3[%c0_4, %c0_5] : memref<1x128xf32, #tpu.memory_space<vmem>>, vector<1x128xf32>
    %c0_6 = arith.constant 0 : index
    %c0_7 = arith.constant 0 : index
    %6 = vector.load %arg6[%c0_6, %c0_7] : memref<8x32xf32, #tpu.memory_space<vmem>>, vector<8x32xf32>
    %c0_8 = arith.constant 0 : index
    %c0_9 = arith.constant 0 : index
    %7 = vector.load %arg7[%c0_8, %c0_9] : memref<8x32xf32, #tpu.memory_space<vmem>>, vector<8x32xf32>
    %c0_i32_10 = arith.constant 0 : i32
    %8 = arith.index_cast %c0_i32_10 : i32 to index
    %c0_11 = arith.constant 0 : index
    %c0_12 = arith.constant 0 : index
    %9 = vector.load %arg1[%8, %c0_11, %c0_12] : memref<8x8x128xf32, #tpu.memory_space<vmem>>, vector<1x8x128xf32>
    %10 = vector.shape_cast %9 : vector<1x8x128xf32> to vector<8x128xf32>
    %11 = vector.broadcast %5 : vector<1x128xf32> to vector<8x128xf32>
    %12 = arith.addf %10, %11 : vector<8x128xf32>
    %cst = arith.constant dense<0.000000e+00> : vector<8x128xf32>
    %13 = tpu.matmul %6, %4, %cst {dimension_numbers = #tpu.dot_dimension_numbers<[1], [0], [0], [1], [0, 0, 1, 1], [], []>} : vector<8x32xf32>, vector<32x128xf32>, vector<8x128xf32> -> vector<8x128xf32>
    %14 = arith.addf %12, %13 : vector<8x128xf32>
    %15 = vector.extract_strided_slice %14 {offsets = [0, 0], sizes = [8, 96], strides = [1, 1]} : vector<8x128xf32> to vector<8x96xf32>
    %16 = arith.negf %15 : vector<8x96xf32>
    %17 = math.exp %16 : vector<8x96xf32>
    %cst_13 = arith.constant 1.000000e+00 : f32
    %18 = vector.broadcast %cst_13 : f32 to vector<8x96xf32>
    %19 = arith.addf %18, %17 : vector<8x96xf32>
    %20 = arith.divf %18, %19 : vector<8x96xf32>
    %21 = vector.extract_strided_slice %20 {offsets = [0, 0], sizes = [8, 32], strides = [1, 1]} : vector<8x96xf32> to vector<8x32xf32>
    %22 = vector.extract_strided_slice %20 {offsets = [0, 32], sizes = [8, 32], strides = [1, 1]} : vector<8x96xf32> to vector<8x32xf32>
    %23 = vector.extract_strided_slice %20 {offsets = [0, 64], sizes = [8, 32], strides = [1, 1]} : vector<8x96xf32> to vector<8x32xf32>
    %24 = vector.extract_strided_slice %14 {offsets = [0, 96], sizes = [8, 32], strides = [1, 1]} : vector<8x128xf32> to vector<8x32xf32>
    %25 = math.tanh %24 : vector<8x32xf32>
    %26 = arith.mulf %22, %7 : vector<8x32xf32>
    %27 = arith.mulf %21, %25 : vector<8x32xf32>
    %28 = arith.addf %26, %27 : vector<8x32xf32>
    %29 = math.tanh %28 : vector<8x32xf32>
    %30 = arith.mulf %23, %29 : vector<8x32xf32>
    %cst_14 = arith.constant dense<0.000000e+00> : vector<8x128xf32>
    %31 = tpu.matmul %30, %3, %cst_14 {dimension_numbers = #tpu.dot_dimension_numbers<[1], [0], [0], [1], [0, 0, 1, 1], [], []>} : vector<8x32xf32>, vector<32x128xf32>, vector<8x128xf32> -> vector<8x128xf32>
    %32 = arith.index_cast %c0_i32_10 : i32 to index
    %c0_15 = arith.constant 0 : index
    %c0_16 = arith.constant 0 : index
    %33 = vector.load %arg5[%32, %c0_15, %c0_16] : memref<8x8x128xf32, #tpu.memory_space<vmem>>, vector<1x8x128xf32>
    %34 = vector.shape_cast %33 : vector<1x8x128xf32> to vector<8x128xf32>
    %35 = vector.shape_cast %31 : vector<8x128xf32> to vector<1x8x128xf32>
    tpu.vector_store %arg5[%32, %c0_15, %c0_16], %35 {strides = array<i32>} : memref<8x8x128xf32, #tpu.memory_space<vmem>>, vector<1x8x128xf32>,
    %c1_i32 = arith.constant 1 : i32
    %36 = arith.index_cast %c1_i32 : i32 to index
    %c0_17 = arith.constant 0 : index
    %c0_18 = arith.constant 0 : index
    %37 = vector.load %arg1[%36, %c0_17, %c0_18] : memref<8x8x128xf32, #tpu.memory_space<vmem>>, vector<1x8x128xf32>
    %38 = vector.shape_cast %37 : vector<1x8x128xf32> to vector<8x128xf32>
    %39 = vector.broadcast %5 : vector<1x128xf32> to vector<8x128xf32>
    %40 = arith.addf %38, %39 : vector<8x128xf32>
    %cst_19 = arith.constant dense<0.000000e+00> : vector<8x128xf32>
    %41 = tpu.matmul %30, %4, %cst_19 {dimension_numbers = #tpu.dot_dimension_numbers<[1], [0], [0], [1], [0, 0, 1, 1], [], []>} : vector<8x32xf32>, vector<32x128xf32>, vector<8x128xf32> -> vector<8x128xf32>
    %42 = arith.addf %40, %41 : vector<8x128xf32>
    %43 = vector.extract_strided_slice %42 {offsets = [0, 0], sizes = [8, 96], strides = [1, 1]} : vector<8x128xf32> to vector<8x96xf32>
    %44 = arith.negf %43 : vector<8x96xf32>
    %45 = math.exp %44 : vector<8x96xf32>
    %cst_20 = arith.constant 1.000000e+00 : f32
    %46 = vector.broadcast %cst_20 : f32 to vector<8x96xf32>
    %47 = arith.addf %46, %45 : vector<8x96xf32>
    %48 = arith.divf %46, %47 : vector<8x96xf32>
    %49 = vector.extract_strided_slice %48 {offsets = [0, 0], sizes = [8, 32], strides = [1, 1]} : vector<8x96xf32> to vector<8x32xf32>
    %50 = vector.extract_strided_slice %48 {offsets = [0, 32], sizes = [8, 32], strides = [1, 1]} : vector<8x96xf32> to vector<8x32xf32>
    %51 = vector.extract_strided_slice %48 {offsets = [0, 64], sizes = [8, 32], strides = [1, 1]} : vector<8x96xf32> to vector<8x32xf32>
    %52 = vector.extract_strided_slice %42 {offsets = [0, 96], sizes = [8, 32], strides = [1, 1]} : vector<8x128xf32> to vector<8x32xf32>
    %53 = math.tanh %52 : vector<8x32xf32>
    %54 = arith.mulf %50, %28 : vector<8x32xf32>
    %55 = arith.mulf %49, %53 : vector<8x32xf32>
    %56 = arith.addf %54, %55 : vector<8x32xf32>
    %57 = math.tanh %56 : vector<8x32xf32>
    %58 = arith.mulf %51, %57 : vector<8x32xf32>
    %cst_21 = arith.constant dense<0.000000e+00> : vector<8x128xf32>
    %59 = tpu.matmul %58, %3, %cst_21 {dimension_numbers = #tpu.dot_dimension_numbers<[1], [0], [0], [1], [0, 0, 1, 1], [], []>} : vector<8x32xf32>, vector<32x128xf32>, vector<8x128xf32> -> vector<8x128xf32>
    %60 = arith.index_cast %c1_i32 : i32 to index
    %c0_22 = arith.constant 0 : index
    %c0_23 = arith.constant 0 : index
    %61 = vector.load %arg5[%60, %c0_22, %c0_23] : memref<8x8x128xf32, #tpu.memory_space<vmem>>, vector<1x8x128xf32>
    %62 = vector.shape_cast %61 : vector<1x8x128xf32> to vector<8x128xf32>
    %63 = vector.shape_cast %59 : vector<8x128xf32> to vector<1x8x128xf32>
    tpu.vector_store %arg5[%60, %c0_22, %c0_23], %63 {strides = array<i32>} : memref<8x8x128xf32, #tpu.memory_space<vmem>>, vector<1x8x128xf32>,
    %c2_i32 = arith.constant 2 : i32
    %64 = arith.index_cast %c2_i32 : i32 to index
    %c0_24 = arith.constant 0 : index
    %c0_25 = arith.constant 0 : index
    %65 = vector.load %arg1[%64, %c0_24, %c0_25] : memref<8x8x128xf32, #tpu.memory_space<vmem>>, vector<1x8x128xf32>
    %66 = vector.shape_cast %65 : vector<1x8x128xf32> to vector<8x128xf32>
    %67 = vector.broadcast %5 : vector<1x128xf32> to vector<8x128xf32>
    %68 = arith.addf %66, %67 : vector<8x128xf32>
    %cst_26 = arith.constant dense<0.000000e+00> : vector<8x128xf32>
    %69 = tpu.matmul %58, %4, %cst_26 {dimension_numbers = #tpu.dot_dimension_numbers<[1], [0], [0], [1], [0, 0, 1, 1], [], []>} : vector<8x32xf32>, vector<32x128xf32>, vector<8x128xf32> -> vector<8x128xf32>
    %70 = arith.addf %68, %69 : vector<8x128xf32>
    %71 = vector.extract_strided_slice %70 {offsets = [0, 0], sizes = [8, 96], strides = [1, 1]} : vector<8x128xf32> to vector<8x96xf32>
    %72 = arith.negf %71 : vector<8x96xf32>
    %73 = math.exp %72 : vector<8x96xf32>
    %cst_27 = arith.constant 1.000000e+00 : f32
    %74 = vector.broadcast %cst_27 : f32 to vector<8x96xf32>
    %75 = arith.addf %74, %73 : vector<8x96xf32>
    %76 = arith.divf %74, %75 : vector<8x96xf32>
    %77 = vector.extract_strided_slice %76 {offsets = [0, 0], sizes = [8, 32], strides = [1, 1]} : vector<8x96xf32> to vector<8x32xf32>
    %78 = vector.extract_strided_slice %76 {offsets = [0, 32], sizes = [8, 32], strides = [1, 1]} : vector<8x96xf32> to vector<8x32xf32>
    %79 = vector.extract_strided_slice %76 {offsets = [0, 64], sizes = [8, 32], strides = [1, 1]} : vector<8x96xf32> to vector<8x32xf32>
    %80 = vector.extract_strided_slice %70 {offsets = [0, 96], sizes = [8, 32], strides = [1, 1]} : vector<8x128xf32> to vector<8x32xf32>
    %81 = math.tanh %80 : vector<8x32xf32>
    %82 = arith.mulf %78, %56 : vector<8x32xf32>
    %83 = arith.mulf %77, %81 : vector<8x32xf32>
    %84 = arith.addf %82, %83 : vector<8x32xf32>
    %85 = math.tanh %84 : vector<8x32xf32>
    %86 = arith.mulf %79, %85 : vector<8x32xf32>
    %cst_28 = arith.constant dense<0.000000e+00> : vector<8x128xf32>
    %87 = tpu.matmul %86, %3, %cst_28 {dimension_numbers = #tpu.dot_dimension_numbers<[1], [0], [0], [1], [0, 0, 1, 1], [], []>} : vector<8x32xf32>, vector<32x128xf32>, vector<8x128xf32> -> vector<8x128xf32>
    %88 = arith.index_cast %c2_i32 : i32 to index
    %c0_29 = arith.constant 0 : index
    %c0_30 = arith.constant 0 : index
    %89 = vector.load %arg5[%88, %c0_29, %c0_30] : memref<8x8x128xf32, #tpu.memory_space<vmem>>, vector<1x8x128xf32>
    %90 = vector.shape_cast %89 : vector<1x8x128xf32> to vector<8x128xf32>
    %91 = vector.shape_cast %87 : vector<8x128xf32> to vector<1x8x128xf32>
    tpu.vector_store %arg5[%88, %c0_29, %c0_30], %91 {strides = array<i32>} : memref<8x8x128xf32, #tpu.memory_space<vmem>>, vector<1x8x128xf32>,
    %c3_i32 = arith.constant 3 : i32
    %92 = arith.index_cast %c3_i32 : i32 to index
    %c0_31 = arith.constant 0 : index
    %c0_32 = arith.constant 0 : index
    %93 = vector.load %arg1[%92, %c0_31, %c0_32] : memref<8x8x128xf32, #tpu.memory_space<vmem>>, vector<1x8x128xf32>
    %94 = vector.shape_cast %93 : vector<1x8x128xf32> to vector<8x128xf32>
    %95 = vector.broadcast %5 : vector<1x128xf32> to vector<8x128xf32>
    %96 = arith.addf %94, %95 : vector<8x128xf32>
    %cst_33 = arith.constant dense<0.000000e+00> : vector<8x128xf32>
    %97 = tpu.matmul %86, %4, %cst_33 {dimension_numbers = #tpu.dot_dimension_numbers<[1], [0], [0], [1], [0, 0, 1, 1], [], []>} : vector<8x32xf32>, vector<32x128xf32>, vector<8x128xf32> -> vector<8x128xf32>
    %98 = arith.addf %96, %97 : vector<8x128xf32>
    %99 = vector.extract_strided_slice %98 {offsets = [0, 0], sizes = [8, 96], strides = [1, 1]} : vector<8x128xf32> to vector<8x96xf32>
    %100 = arith.negf %99 : vector<8x96xf32>
    %101 = math.exp %100 : vector<8x96xf32>
    %cst_34 = arith.constant 1.000000e+00 : f32
    %102 = vector.broadcast %cst_34 : f32 to vector<8x96xf32>
    %103 = arith.addf %102, %101 : vector<8x96xf32>
    %104 = arith.divf %102, %103 : vector<8x96xf32>
    %105 = vector.extract_strided_slice %104 {offsets = [0, 0], sizes = [8, 32], strides = [1, 1]} : vector<8x96xf32> to vector<8x32xf32>
    %106 = vector.extract_strided_slice %104 {offsets = [0, 32], sizes = [8, 32], strides = [1, 1]} : vector<8x96xf32> to vector<8x32xf32>
    %107 = vector.extract_strided_slice %104 {offsets = [0, 64], sizes = [8, 32], strides = [1, 1]} : vector<8x96xf32> to vector<8x32xf32>
    %108 = vector.extract_strided_slice %98 {offsets = [0, 96], sizes = [8, 32], strides = [1, 1]} : vector<8x128xf32> to vector<8x32xf32>
    %109 = math.tanh %108 : vector<8x32xf32>
    %110 = arith.mulf %106, %84 : vector<8x32xf32>
    %111 = arith.mulf %105, %109 : vector<8x32xf32>
    %112 = arith.addf %110, %111 : vector<8x32xf32>
    %113 = math.tanh %112 : vector<8x32xf32>
    %114 = arith.mulf %107, %113 : vector<8x32xf32>
    %cst_35 = arith.constant dense<0.000000e+00> : vector<8x128xf32>
    %115 = tpu.matmul %114, %3, %cst_35 {dimension_numbers = #tpu.dot_dimension_numbers<[1], [0], [0], [1], [0, 0, 1, 1], [], []>} : vector<8x32xf32>, vector<32x128xf32>, vector<8x128xf32> -> vector<8x128xf32>
    %116 = arith.index_cast %c3_i32 : i32 to index
    %c0_36 = arith.constant 0 : index
    %c0_37 = arith.constant 0 : index
    %117 = vector.load %arg5[%116, %c0_36, %c0_37] : memref<8x8x128xf32, #tpu.memory_space<vmem>>, vector<1x8x128xf32>
    %118 = vector.shape_cast %117 : vector<1x8x128xf32> to vector<8x128xf32>
    %119 = vector.shape_cast %115 : vector<8x128xf32> to vector<1x8x128xf32>
    tpu.vector_store %arg5[%116, %c0_36, %c0_37], %119 {strides = array<i32>} : memref<8x8x128xf32, #tpu.memory_space<vmem>>, vector<1x8x128xf32>,
    %c4_i32 = arith.constant 4 : i32
    %120 = arith.index_cast %c4_i32 : i32 to index
    %c0_38 = arith.constant 0 : index
    %c0_39 = arith.constant 0 : index
    %121 = vector.load %arg1[%120, %c0_38, %c0_39] : memref<8x8x128xf32, #tpu.memory_space<vmem>>, vector<1x8x128xf32>
    %122 = vector.shape_cast %121 : vector<1x8x128xf32> to vector<8x128xf32>
    %123 = vector.broadcast %5 : vector<1x128xf32> to vector<8x128xf32>
    %124 = arith.addf %122, %123 : vector<8x128xf32>
    %cst_40 = arith.constant dense<0.000000e+00> : vector<8x128xf32>
    %125 = tpu.matmul %114, %4, %cst_40 {dimension_numbers = #tpu.dot_dimension_numbers<[1], [0], [0], [1], [0, 0, 1, 1], [], []>} : vector<8x32xf32>, vector<32x128xf32>, vector<8x128xf32> -> vector<8x128xf32>
    %126 = arith.addf %124, %125 : vector<8x128xf32>
    %127 = vector.extract_strided_slice %126 {offsets = [0, 0], sizes = [8, 96], strides = [1, 1]} : vector<8x128xf32> to vector<8x96xf32>
    %128 = arith.negf %127 : vector<8x96xf32>
    %129 = math.exp %128 : vector<8x96xf32>
    %cst_41 = arith.constant 1.000000e+00 : f32
    %130 = vector.broadcast %cst_41 : f32 to vector<8x96xf32>
    %131 = arith.addf %130, %129 : vector<8x96xf32>
    %132 = arith.divf %130, %131 : vector<8x96xf32>
    %133 = vector.extract_strided_slice %132 {offsets = [0, 0], sizes = [8, 32], strides = [1, 1]} : vector<8x96xf32> to vector<8x32xf32>
    %134 = vector.extract_strided_slice %132 {offsets = [0, 32], sizes = [8, 32], strides = [1, 1]} : vector<8x96xf32> to vector<8x32xf32>
    %135 = vector.extract_strided_slice %132 {offsets = [0, 64], sizes = [8, 32], strides = [1, 1]} : vector<8x96xf32> to vector<8x32xf32>
    %136 = vector.extract_strided_slice %126 {offsets = [0, 96], sizes = [8, 32], strides = [1, 1]} : vector<8x128xf32> to vector<8x32xf32>
    %137 = math.tanh %136 : vector<8x32xf32>
    %138 = arith.mulf %134, %112 : vector<8x32xf32>
    %139 = arith.mulf %133, %137 : vector<8x32xf32>
    %140 = arith.addf %138, %139 : vector<8x32xf32>
    %141 = math.tanh %140 : vector<8x32xf32>
    %142 = arith.mulf %135, %141 : vector<8x32xf32>
    %cst_42 = arith.constant dense<0.000000e+00> : vector<8x128xf32>
    %143 = tpu.matmul %142, %3, %cst_42 {dimension_numbers = #tpu.dot_dimension_numbers<[1], [0], [0], [1], [0, 0, 1, 1], [], []>} : vector<8x32xf32>, vector<32x128xf32>, vector<8x128xf32> -> vector<8x128xf32>
    %144 = arith.index_cast %c4_i32 : i32 to index
    %c0_43 = arith.constant 0 : index
    %c0_44 = arith.constant 0 : index
    %145 = vector.load %arg5[%144, %c0_43, %c0_44] : memref<8x8x128xf32, #tpu.memory_space<vmem>>, vector<1x8x128xf32>
    %146 = vector.shape_cast %145 : vector<1x8x128xf32> to vector<8x128xf32>
    %147 = vector.shape_cast %143 : vector<8x128xf32> to vector<1x8x128xf32>
    tpu.vector_store %arg5[%144, %c0_43, %c0_44], %147 {strides = array<i32>} : memref<8x8x128xf32, #tpu.memory_space<vmem>>, vector<1x8x128xf32>,
    %c5_i32 = arith.constant 5 : i32
    %148 = arith.index_cast %c5_i32 : i32 to index
    %c0_45 = arith.constant 0 : index
    %c0_46 = arith.constant 0 : index
    %149 = vector.load %arg1[%148, %c0_45, %c0_46] : memref<8x8x128xf32, #tpu.memory_space<vmem>>, vector<1x8x128xf32>
    %150 = vector.shape_cast %149 : vector<1x8x128xf32> to vector<8x128xf32>
    %151 = vector.broadcast %5 : vector<1x128xf32> to vector<8x128xf32>
    %152 = arith.addf %150, %151 : vector<8x128xf32>
    %cst_47 = arith.constant dense<0.000000e+00> : vector<8x128xf32>
    %153 = tpu.matmul %142, %4, %cst_47 {dimension_numbers = #tpu.dot_dimension_numbers<[1], [0], [0], [1], [0, 0, 1, 1], [], []>} : vector<8x32xf32>, vector<32x128xf32>, vector<8x128xf32> -> vector<8x128xf32>
    %154 = arith.addf %152, %153 : vector<8x128xf32>
    %155 = vector.extract_strided_slice %154 {offsets = [0, 0], sizes = [8, 96], strides = [1, 1]} : vector<8x128xf32> to vector<8x96xf32>
    %156 = arith.negf %155 : vector<8x96xf32>
    %157 = math.exp %156 : vector<8x96xf32>
    %cst_48 = arith.constant 1.000000e+00 : f32
    %158 = vector.broadcast %cst_48 : f32 to vector<8x96xf32>
    %159 = arith.addf %158, %157 : vector<8x96xf32>
    %160 = arith.divf %158, %159 : vector<8x96xf32>
    %161 = vector.extract_strided_slice %160 {offsets = [0, 0], sizes = [8, 32], strides = [1, 1]} : vector<8x96xf32> to vector<8x32xf32>
    %162 = vector.extract_strided_slice %160 {offsets = [0, 32], sizes = [8, 32], strides = [1, 1]} : vector<8x96xf32> to vector<8x32xf32>
    %163 = vector.extract_strided_slice %160 {offsets = [0, 64], sizes = [8, 32], strides = [1, 1]} : vector<8x96xf32> to vector<8x32xf32>
    %164 = vector.extract_strided_slice %154 {offsets = [0, 96], sizes = [8, 32], strides = [1, 1]} : vector<8x128xf32> to vector<8x32xf32>
    %165 = math.tanh %164 : vector<8x32xf32>
    %166 = arith.mulf %162, %140 : vector<8x32xf32>
    %167 = arith.mulf %161, %165 : vector<8x32xf32>
    %168 = arith.addf %166, %167 : vector<8x32xf32>
    %169 = math.tanh %168 : vector<8x32xf32>
    %170 = arith.mulf %163, %169 : vector<8x32xf32>
    %cst_49 = arith.constant dense<0.000000e+00> : vector<8x128xf32>
    %171 = tpu.matmul %170, %3, %cst_49 {dimension_numbers = #tpu.dot_dimension_numbers<[1], [0], [0], [1], [0, 0, 1, 1], [], []>} : vector<8x32xf32>, vector<32x128xf32>, vector<8x128xf32> -> vector<8x128xf32>
    %172 = arith.index_cast %c5_i32 : i32 to index
    %c0_50 = arith.constant 0 : index
    %c0_51 = arith.constant 0 : index
    %173 = vector.load %arg5[%172, %c0_50, %c0_51] : memref<8x8x128xf32, #tpu.memory_space<vmem>>, vector<1x8x128xf32>
    %174 = vector.shape_cast %173 : vector<1x8x128xf32> to vector<8x128xf32>
    %175 = vector.shape_cast %171 : vector<8x128xf32> to vector<1x8x128xf32>
    tpu.vector_store %arg5[%172, %c0_50, %c0_51], %175 {strides = array<i32>} : memref<8x8x128xf32, #tpu.memory_space<vmem>>, vector<1x8x128xf32>,
    %c6_i32 = arith.constant 6 : i32
    %176 = arith.index_cast %c6_i32 : i32 to index
    %c0_52 = arith.constant 0 : index
    %c0_53 = arith.constant 0 : index
    %177 = vector.load %arg1[%176, %c0_52, %c0_53] : memref<8x8x128xf32, #tpu.memory_space<vmem>>, vector<1x8x128xf32>
    %178 = vector.shape_cast %177 : vector<1x8x128xf32> to vector<8x128xf32>
    %179 = vector.broadcast %5 : vector<1x128xf32> to vector<8x128xf32>
    %180 = arith.addf %178, %179 : vector<8x128xf32>
    %cst_54 = arith.constant dense<0.000000e+00> : vector<8x128xf32>
    %181 = tpu.matmul %170, %4, %cst_54 {dimension_numbers = #tpu.dot_dimension_numbers<[1], [0], [0], [1], [0, 0, 1, 1], [], []>} : vector<8x32xf32>, vector<32x128xf32>, vector<8x128xf32> -> vector<8x128xf32>
    %182 = arith.addf %180, %181 : vector<8x128xf32>
    %183 = vector.extract_strided_slice %182 {offsets = [0, 0], sizes = [8, 96], strides = [1, 1]} : vector<8x128xf32> to vector<8x96xf32>
    %184 = arith.negf %183 : vector<8x96xf32>
    %185 = math.exp %184 : vector<8x96xf32>
    %cst_55 = arith.constant 1.000000e+00 : f32
    %186 = vector.broadcast %cst_55 : f32 to vector<8x96xf32>
    %187 = arith.addf %186, %185 : vector<8x96xf32>
    %188 = arith.divf %186, %187 : vector<8x96xf32>
    %189 = vector.extract_strided_slice %188 {offsets = [0, 0], sizes = [8, 32], strides = [1, 1]} : vector<8x96xf32> to vector<8x32xf32>
    %190 = vector.extract_strided_slice %188 {offsets = [0, 32], sizes = [8, 32], strides = [1, 1]} : vector<8x96xf32> to vector<8x32xf32>
    %191 = vector.extract_strided_slice %188 {offsets = [0, 64], sizes = [8, 32], strides = [1, 1]} : vector<8x96xf32> to vector<8x32xf32>
    %192 = vector.extract_strided_slice %182 {offsets = [0, 96], sizes = [8, 32], strides = [1, 1]} : vector<8x128xf32> to vector<8x32xf32>
    %193 = math.tanh %192 : vector<8x32xf32>
    %194 = arith.mulf %190, %168 : vector<8x32xf32>
    %195 = arith.mulf %189, %193 : vector<8x32xf32>
    %196 = arith.addf %194, %195 : vector<8x32xf32>
    %197 = math.tanh %196 : vector<8x32xf32>
    %198 = arith.mulf %191, %197 : vector<8x32xf32>
    %cst_56 = arith.constant dense<0.000000e+00> : vector<8x128xf32>
    %199 = tpu.matmul %198, %3, %cst_56 {dimension_numbers = #tpu.dot_dimension_numbers<[1], [0], [0], [1], [0, 0, 1, 1], [], []>} : vector<8x32xf32>, vector<32x128xf32>, vector<8x128xf32> -> vector<8x128xf32>
    %200 = arith.index_cast %c6_i32 : i32 to index
    %c0_57 = arith.constant 0 : index
    %c0_58 = arith.constant 0 : index
    %201 = vector.load %arg5[%200, %c0_57, %c0_58] : memref<8x8x128xf32, #tpu.memory_space<vmem>>, vector<1x8x128xf32>
    %202 = vector.shape_cast %201 : vector<1x8x128xf32> to vector<8x128xf32>
    %203 = vector.shape_cast %199 : vector<8x128xf32> to vector<1x8x128xf32>
    tpu.vector_store %arg5[%200, %c0_57, %c0_58], %203 {strides = array<i32>} : memref<8x8x128xf32, #tpu.memory_space<vmem>>, vector<1x8x128xf32>,
    %c7_i32 = arith.constant 7 : i32
    %204 = arith.index_cast %c7_i32 : i32 to index
    %c0_59 = arith.constant 0 : index
    %c0_60 = arith.constant 0 : index
    %205 = vector.load %arg1[%204, %c0_59, %c0_60] : memref<8x8x128xf32, #tpu.memory_space<vmem>>, vector<1x8x128xf32>
    %206 = vector.shape_cast %205 : vector<1x8x128xf32> to vector<8x128xf32>
    %207 = vector.broadcast %5 : vector<1x128xf32> to vector<8x128xf32>
    %208 = arith.addf %206, %207 : vector<8x128xf32>
    %cst_61 = arith.constant dense<0.000000e+00> : vector<8x128xf32>
    %209 = tpu.matmul %198, %4, %cst_61 {dimension_numbers = #tpu.dot_dimension_numbers<[1], [0], [0], [1], [0, 0, 1, 1], [], []>} : vector<8x32xf32>, vector<32x128xf32>, vector<8x128xf32> -> vector<8x128xf32>
    %210 = arith.addf %208, %209 : vector<8x128xf32>
    %211 = vector.extract_strided_slice %210 {offsets = [0, 0], sizes = [8, 96], strides = [1, 1]} : vector<8x128xf32> to vector<8x96xf32>
    %212 = arith.negf %211 : vector<8x96xf32>
    %213 = math.exp %212 : vector<8x96xf32>
    %cst_62 = arith.constant 1.000000e+00 : f32
    %214 = vector.broadcast %cst_62 : f32 to vector<8x96xf32>
    %215 = arith.addf %214, %213 : vector<8x96xf32>
    %216 = arith.divf %214, %215 : vector<8x96xf32>
    %217 = vector.extract_strided_slice %216 {offsets = [0, 0], sizes = [8, 32], strides = [1, 1]} : vector<8x96xf32> to vector<8x32xf32>
    %218 = vector.extract_strided_slice %216 {offsets = [0, 32], sizes = [8, 32], strides = [1, 1]} : vector<8x96xf32> to vector<8x32xf32>
    %219 = vector.extract_strided_slice %216 {offsets = [0, 64], sizes = [8, 32], strides = [1, 1]} : vector<8x96xf32> to vector<8x32xf32>
    %220 = vector.extract_strided_slice %210 {offsets = [0, 96], sizes = [8, 32], strides = [1, 1]} : vector<8x128xf32> to vector<8x32xf32>
    %221 = math.tanh %220 : vector<8x32xf32>
    %222 = arith.mulf %218, %196 : vector<8x32xf32>
    %223 = arith.mulf %217, %221 : vector<8x32xf32>
    %224 = arith.addf %222, %223 : vector<8x32xf32>
    %225 = math.tanh %224 : vector<8x32xf32>
    %226 = arith.mulf %219, %225 : vector<8x32xf32>
    %cst_63 = arith.constant dense<0.000000e+00> : vector<8x128xf32>
    %227 = tpu.matmul %226, %3, %cst_63 {dimension_numbers = #tpu.dot_dimension_numbers<[1], [0], [0], [1], [0, 0, 1, 1], [], []>} : vector<8x32xf32>, vector<32x128xf32>, vector<8x128xf32> -> vector<8x128xf32>
    %228 = arith.index_cast %c7_i32 : i32 to index
    %c0_64 = arith.constant 0 : index
    %c0_65 = arith.constant 0 : index
    %229 = vector.load %arg5[%228, %c0_64, %c0_65] : memref<8x8x128xf32, #tpu.memory_space<vmem>>, vector<1x8x128xf32>
    %230 = vector.shape_cast %229 : vector<1x8x128xf32> to vector<8x128xf32>
    %231 = vector.shape_cast %227 : vector<8x128xf32> to vector<1x8x128xf32>
    tpu.vector_store %arg5[%228, %c0_64, %c0_65], %231 {strides = array<i32>} : memref<8x8x128xf32, #tpu.memory_space<vmem>>, vector<1x8x128xf32>,
    %c8_i32 = arith.constant 8 : i32
    %c0_66 = arith.constant 0 : index
    %c0_67 = arith.constant 0 : index
    %232 = vector.load %arg6[%c0_66, %c0_67] : memref<8x32xf32, #tpu.memory_space<vmem>>, vector<8x32xf32>
    tpu.vector_store %arg6[%c0_66, %c0_67], %226 {strides = array<i32>} : memref<8x32xf32, #tpu.memory_space<vmem>>, vector<8x32xf32>,
    %c0_68 = arith.constant 0 : index
    %c0_69 = arith.constant 0 : index
    %233 = vector.load %arg7[%c0_68, %c0_69] : memref<8x32xf32, #tpu.memory_space<vmem>>, vector<8x32xf32>
    tpu.vector_store %arg7[%c0_68, %c0_69], %224 {strides = array<i32>} : memref<8x32xf32, #tpu.memory_space<vmem>>, vector<8x32xf32>,
    return
  }
  func.func @transform_0(%arg0: i32) -> (i32, i32, i32) {
    %c0_i32 = arith.constant 0 : i32
    %c0_i32_0 = arith.constant 0 : i32
    %c0_i32_1 = arith.constant 0 : i32
    return %arg0, %c0_i32, %c0_i32_0 : i32, i32, i32
  }
  func.func @transform_1(%arg0: i32) -> (i32, i32) {
    %c0_i32 = arith.constant 0 : i32
    %c0_i32_0 = arith.constant 0 : i32
    %c0_i32_1 = arith.constant 0 : i32
    return %c0_i32, %c0_i32_0 : i32, i32
  }
  func.func @transform_2(%arg0: i32) -> (i32, i32) {
    %c0_i32 = arith.constant 0 : i32
    %c0_i32_0 = arith.constant 0 : i32
    %c0_i32_1 = arith.constant 0 : i32
    return %c0_i32, %c0_i32_0 : i32, i32
  }
  func.func @transform_3(%arg0: i32) -> (i32, i32) {
    %c0_i32 = arith.constant 0 : i32
    %c0_i32_0 = arith.constant 0 : i32
    %c0_i32_1 = arith.constant 0 : i32
    return %c0_i32, %c0_i32_0 : i32, i32
  }
  func.func @transform_4(%arg0: i32) -> (i32, i32, i32) {
    %c0_i32 = arith.constant 0 : i32
    %c0_i32_0 = arith.constant 0 : i32
    %c0_i32_1 = arith.constant 0 : i32
    return %arg0, %c0_i32, %c0_i32_0 : i32, i32, i32
  }
}

module attributes {stable_mosaic.version = 11 : i64} {
  func.func @lstm_top_fc_kernel(%arg0: i32, %arg1: memref<8x8x128xf32, #tpu.memory_space<vmem>>, %arg2: memref<32x128xf32, #tpu.memory_space<vmem>>, %arg3: memref<1x128xf32, #tpu.memory_space<vmem>>, %arg4: memref<32x4xf32, #tpu.memory_space<vmem>>, %arg5: memref<1x4xf32, #tpu.memory_space<vmem>>, %arg6: memref<8x4xf32, #tpu.memory_space<vmem>>, %arg7: memref<8x32xf32, #tpu.memory_space<vmem>>, %arg8: memref<8x32xf32, #tpu.memory_space<vmem>>) attributes {dimension_semantics = [#tpu.dimension_semantics<arbitrary>], iteration_bounds = array<i64: 1>, scalar_prefetch = 0 : i64, scratch_operands = 2 : i64, tpu.core_type = #tpu.core_type<tc>, window_params = [{transform_indices = @transform_0, window_bounds = array<i64: 8, 8, 128>}, {pipeline_mode = #tpu.pipeline_mode<synchronous>, transform_indices = @transform_1, window_bounds = array<i64: 32, 128>}, {pipeline_mode = #tpu.pipeline_mode<synchronous>, transform_indices = @transform_2, window_bounds = array<i64: 1, 128>}, {pipeline_mode = #tpu.pipeline_mode<synchronous>, transform_indices = @transform_3, window_bounds = array<i64: 32, 4>}, {pipeline_mode = #tpu.pipeline_mode<synchronous>, transform_indices = @transform_4, window_bounds = array<i64: 1, 4>}, {pipeline_mode = #tpu.pipeline_mode<synchronous>, transform_indices = @transform_5, window_bounds = array<i64: 8, 4>}]} {
    %c0_i32 = arith.constant 0 : i32
    %0 = arith.cmpi eq, %arg0, %c0_i32 : i32
    %1 = arith.extui %0 : i1 to i32
    %c0_i32_0 = arith.constant 0 : i32
    %2 = arith.cmpi ne, %1, %c0_i32_0 : i32
    scf.if %2 {
      %cst_46 = arith.constant 0.000000e+00 : f32
      %196 = vector.broadcast %cst_46 : f32 to vector<8x32xf32>
      %c0_47 = arith.constant 0 : index
      %c0_48 = arith.constant 0 : index
      %197 = vector.load %arg7[%c0_47, %c0_48] : memref<8x32xf32, #tpu.memory_space<vmem>>, vector<8x32xf32>
      tpu.vector_store %arg7[%c0_47, %c0_48], %196 {strides = array<i32>} : memref<8x32xf32, #tpu.memory_space<vmem>>, vector<8x32xf32>,
      %cst_49 = arith.constant 0.000000e+00 : f32
      %198 = vector.broadcast %cst_49 : f32 to vector<8x32xf32>
      %c0_50 = arith.constant 0 : index
      %c0_51 = arith.constant 0 : index
      %199 = vector.load %arg8[%c0_50, %c0_51] : memref<8x32xf32, #tpu.memory_space<vmem>>, vector<8x32xf32>
      tpu.vector_store %arg8[%c0_50, %c0_51], %198 {strides = array<i32>} : memref<8x32xf32, #tpu.memory_space<vmem>>, vector<8x32xf32>,
    } else {
    }
    %c0 = arith.constant 0 : index
    %c0_1 = arith.constant 0 : index
    %3 = vector.load %arg2[%c0, %c0_1] : memref<32x128xf32, #tpu.memory_space<vmem>>, vector<32x128xf32>
    %c0_2 = arith.constant 0 : index
    %c0_3 = arith.constant 0 : index
    %4 = vector.load %arg3[%c0_2, %c0_3] : memref<1x128xf32, #tpu.memory_space<vmem>>, vector<1x128xf32>
    %c0_4 = arith.constant 0 : index
    %c0_5 = arith.constant 0 : index
    %5 = vector.load %arg7[%c0_4, %c0_5] : memref<8x32xf32, #tpu.memory_space<vmem>>, vector<8x32xf32>
    %c0_6 = arith.constant 0 : index
    %c0_7 = arith.constant 0 : index
    %6 = vector.load %arg8[%c0_6, %c0_7] : memref<8x32xf32, #tpu.memory_space<vmem>>, vector<8x32xf32>
    %c0_i32_8 = arith.constant 0 : i32
    %7 = arith.index_cast %c0_i32_8 : i32 to index
    %c0_9 = arith.constant 0 : index
    %c0_10 = arith.constant 0 : index
    %8 = vector.load %arg1[%7, %c0_9, %c0_10] : memref<8x8x128xf32, #tpu.memory_space<vmem>>, vector<1x8x128xf32>
    %9 = vector.shape_cast %8 : vector<1x8x128xf32> to vector<8x128xf32>
    %10 = vector.broadcast %4 : vector<1x128xf32> to vector<8x128xf32>
    %11 = arith.addf %9, %10 : vector<8x128xf32>
    %cst = arith.constant dense<0.000000e+00> : vector<8x128xf32>
    %12 = tpu.matmul %5, %3, %cst {dimension_numbers = #tpu.dot_dimension_numbers<[1], [0], [0], [1], [0, 0, 1, 1], [], []>} : vector<8x32xf32>, vector<32x128xf32>, vector<8x128xf32> -> vector<8x128xf32>
    %13 = arith.addf %11, %12 : vector<8x128xf32>
    %14 = vector.extract_strided_slice %13 {offsets = [0, 0], sizes = [8, 96], strides = [1, 1]} : vector<8x128xf32> to vector<8x96xf32>
    %15 = arith.negf %14 : vector<8x96xf32>
    %16 = math.exp %15 : vector<8x96xf32>
    %cst_11 = arith.constant 1.000000e+00 : f32
    %17 = vector.broadcast %cst_11 : f32 to vector<8x96xf32>
    %18 = arith.addf %17, %16 : vector<8x96xf32>
    %19 = arith.divf %17, %18 : vector<8x96xf32>
    %20 = vector.extract_strided_slice %19 {offsets = [0, 0], sizes = [8, 32], strides = [1, 1]} : vector<8x96xf32> to vector<8x32xf32>
    %21 = vector.extract_strided_slice %19 {offsets = [0, 32], sizes = [8, 32], strides = [1, 1]} : vector<8x96xf32> to vector<8x32xf32>
    %22 = vector.extract_strided_slice %19 {offsets = [0, 64], sizes = [8, 32], strides = [1, 1]} : vector<8x96xf32> to vector<8x32xf32>
    %23 = vector.extract_strided_slice %13 {offsets = [0, 96], sizes = [8, 32], strides = [1, 1]} : vector<8x128xf32> to vector<8x32xf32>
    %24 = math.tanh %23 : vector<8x32xf32>
    %25 = arith.mulf %21, %6 : vector<8x32xf32>
    %26 = arith.mulf %20, %24 : vector<8x32xf32>
    %27 = arith.addf %25, %26 : vector<8x32xf32>
    %28 = math.tanh %27 : vector<8x32xf32>
    %29 = arith.mulf %22, %28 : vector<8x32xf32>
    %c1_i32 = arith.constant 1 : i32
    %30 = arith.index_cast %c1_i32 : i32 to index
    %c0_12 = arith.constant 0 : index
    %c0_13 = arith.constant 0 : index
    %31 = vector.load %arg1[%30, %c0_12, %c0_13] : memref<8x8x128xf32, #tpu.memory_space<vmem>>, vector<1x8x128xf32>
    %32 = vector.shape_cast %31 : vector<1x8x128xf32> to vector<8x128xf32>
    %33 = vector.broadcast %4 : vector<1x128xf32> to vector<8x128xf32>
    %34 = arith.addf %32, %33 : vector<8x128xf32>
    %cst_14 = arith.constant dense<0.000000e+00> : vector<8x128xf32>
    %35 = tpu.matmul %29, %3, %cst_14 {dimension_numbers = #tpu.dot_dimension_numbers<[1], [0], [0], [1], [0, 0, 1, 1], [], []>} : vector<8x32xf32>, vector<32x128xf32>, vector<8x128xf32> -> vector<8x128xf32>
    %36 = arith.addf %34, %35 : vector<8x128xf32>
    %37 = vector.extract_strided_slice %36 {offsets = [0, 0], sizes = [8, 96], strides = [1, 1]} : vector<8x128xf32> to vector<8x96xf32>
    %38 = arith.negf %37 : vector<8x96xf32>
    %39 = math.exp %38 : vector<8x96xf32>
    %cst_15 = arith.constant 1.000000e+00 : f32
    %40 = vector.broadcast %cst_15 : f32 to vector<8x96xf32>
    %41 = arith.addf %40, %39 : vector<8x96xf32>
    %42 = arith.divf %40, %41 : vector<8x96xf32>
    %43 = vector.extract_strided_slice %42 {offsets = [0, 0], sizes = [8, 32], strides = [1, 1]} : vector<8x96xf32> to vector<8x32xf32>
    %44 = vector.extract_strided_slice %42 {offsets = [0, 32], sizes = [8, 32], strides = [1, 1]} : vector<8x96xf32> to vector<8x32xf32>
    %45 = vector.extract_strided_slice %42 {offsets = [0, 64], sizes = [8, 32], strides = [1, 1]} : vector<8x96xf32> to vector<8x32xf32>
    %46 = vector.extract_strided_slice %36 {offsets = [0, 96], sizes = [8, 32], strides = [1, 1]} : vector<8x128xf32> to vector<8x32xf32>
    %47 = math.tanh %46 : vector<8x32xf32>
    %48 = arith.mulf %44, %27 : vector<8x32xf32>
    %49 = arith.mulf %43, %47 : vector<8x32xf32>
    %50 = arith.addf %48, %49 : vector<8x32xf32>
    %51 = math.tanh %50 : vector<8x32xf32>
    %52 = arith.mulf %45, %51 : vector<8x32xf32>
    %c2_i32 = arith.constant 2 : i32
    %53 = arith.index_cast %c2_i32 : i32 to index
    %c0_16 = arith.constant 0 : index
    %c0_17 = arith.constant 0 : index
    %54 = vector.load %arg1[%53, %c0_16, %c0_17] : memref<8x8x128xf32, #tpu.memory_space<vmem>>, vector<1x8x128xf32>
    %55 = vector.shape_cast %54 : vector<1x8x128xf32> to vector<8x128xf32>
    %56 = vector.broadcast %4 : vector<1x128xf32> to vector<8x128xf32>
    %57 = arith.addf %55, %56 : vector<8x128xf32>
    %cst_18 = arith.constant dense<0.000000e+00> : vector<8x128xf32>
    %58 = tpu.matmul %52, %3, %cst_18 {dimension_numbers = #tpu.dot_dimension_numbers<[1], [0], [0], [1], [0, 0, 1, 1], [], []>} : vector<8x32xf32>, vector<32x128xf32>, vector<8x128xf32> -> vector<8x128xf32>
    %59 = arith.addf %57, %58 : vector<8x128xf32>
    %60 = vector.extract_strided_slice %59 {offsets = [0, 0], sizes = [8, 96], strides = [1, 1]} : vector<8x128xf32> to vector<8x96xf32>
    %61 = arith.negf %60 : vector<8x96xf32>
    %62 = math.exp %61 : vector<8x96xf32>
    %cst_19 = arith.constant 1.000000e+00 : f32
    %63 = vector.broadcast %cst_19 : f32 to vector<8x96xf32>
    %64 = arith.addf %63, %62 : vector<8x96xf32>
    %65 = arith.divf %63, %64 : vector<8x96xf32>
    %66 = vector.extract_strided_slice %65 {offsets = [0, 0], sizes = [8, 32], strides = [1, 1]} : vector<8x96xf32> to vector<8x32xf32>
    %67 = vector.extract_strided_slice %65 {offsets = [0, 32], sizes = [8, 32], strides = [1, 1]} : vector<8x96xf32> to vector<8x32xf32>
    %68 = vector.extract_strided_slice %65 {offsets = [0, 64], sizes = [8, 32], strides = [1, 1]} : vector<8x96xf32> to vector<8x32xf32>
    %69 = vector.extract_strided_slice %59 {offsets = [0, 96], sizes = [8, 32], strides = [1, 1]} : vector<8x128xf32> to vector<8x32xf32>
    %70 = math.tanh %69 : vector<8x32xf32>
    %71 = arith.mulf %67, %50 : vector<8x32xf32>
    %72 = arith.mulf %66, %70 : vector<8x32xf32>
    %73 = arith.addf %71, %72 : vector<8x32xf32>
    %74 = math.tanh %73 : vector<8x32xf32>
    %75 = arith.mulf %68, %74 : vector<8x32xf32>
    %c3_i32 = arith.constant 3 : i32
    %76 = arith.index_cast %c3_i32 : i32 to index
    %c0_20 = arith.constant 0 : index
    %c0_21 = arith.constant 0 : index
    %77 = vector.load %arg1[%76, %c0_20, %c0_21] : memref<8x8x128xf32, #tpu.memory_space<vmem>>, vector<1x8x128xf32>
    %78 = vector.shape_cast %77 : vector<1x8x128xf32> to vector<8x128xf32>
    %79 = vector.broadcast %4 : vector<1x128xf32> to vector<8x128xf32>
    %80 = arith.addf %78, %79 : vector<8x128xf32>
    %cst_22 = arith.constant dense<0.000000e+00> : vector<8x128xf32>
    %81 = tpu.matmul %75, %3, %cst_22 {dimension_numbers = #tpu.dot_dimension_numbers<[1], [0], [0], [1], [0, 0, 1, 1], [], []>} : vector<8x32xf32>, vector<32x128xf32>, vector<8x128xf32> -> vector<8x128xf32>
    %82 = arith.addf %80, %81 : vector<8x128xf32>
    %83 = vector.extract_strided_slice %82 {offsets = [0, 0], sizes = [8, 96], strides = [1, 1]} : vector<8x128xf32> to vector<8x96xf32>
    %84 = arith.negf %83 : vector<8x96xf32>
    %85 = math.exp %84 : vector<8x96xf32>
    %cst_23 = arith.constant 1.000000e+00 : f32
    %86 = vector.broadcast %cst_23 : f32 to vector<8x96xf32>
    %87 = arith.addf %86, %85 : vector<8x96xf32>
    %88 = arith.divf %86, %87 : vector<8x96xf32>
    %89 = vector.extract_strided_slice %88 {offsets = [0, 0], sizes = [8, 32], strides = [1, 1]} : vector<8x96xf32> to vector<8x32xf32>
    %90 = vector.extract_strided_slice %88 {offsets = [0, 32], sizes = [8, 32], strides = [1, 1]} : vector<8x96xf32> to vector<8x32xf32>
    %91 = vector.extract_strided_slice %88 {offsets = [0, 64], sizes = [8, 32], strides = [1, 1]} : vector<8x96xf32> to vector<8x32xf32>
    %92 = vector.extract_strided_slice %82 {offsets = [0, 96], sizes = [8, 32], strides = [1, 1]} : vector<8x128xf32> to vector<8x32xf32>
    %93 = math.tanh %92 : vector<8x32xf32>
    %94 = arith.mulf %90, %73 : vector<8x32xf32>
    %95 = arith.mulf %89, %93 : vector<8x32xf32>
    %96 = arith.addf %94, %95 : vector<8x32xf32>
    %97 = math.tanh %96 : vector<8x32xf32>
    %98 = arith.mulf %91, %97 : vector<8x32xf32>
    %c4_i32 = arith.constant 4 : i32
    %99 = arith.index_cast %c4_i32 : i32 to index
    %c0_24 = arith.constant 0 : index
    %c0_25 = arith.constant 0 : index
    %100 = vector.load %arg1[%99, %c0_24, %c0_25] : memref<8x8x128xf32, #tpu.memory_space<vmem>>, vector<1x8x128xf32>
    %101 = vector.shape_cast %100 : vector<1x8x128xf32> to vector<8x128xf32>
    %102 = vector.broadcast %4 : vector<1x128xf32> to vector<8x128xf32>
    %103 = arith.addf %101, %102 : vector<8x128xf32>
    %cst_26 = arith.constant dense<0.000000e+00> : vector<8x128xf32>
    %104 = tpu.matmul %98, %3, %cst_26 {dimension_numbers = #tpu.dot_dimension_numbers<[1], [0], [0], [1], [0, 0, 1, 1], [], []>} : vector<8x32xf32>, vector<32x128xf32>, vector<8x128xf32> -> vector<8x128xf32>
    %105 = arith.addf %103, %104 : vector<8x128xf32>
    %106 = vector.extract_strided_slice %105 {offsets = [0, 0], sizes = [8, 96], strides = [1, 1]} : vector<8x128xf32> to vector<8x96xf32>
    %107 = arith.negf %106 : vector<8x96xf32>
    %108 = math.exp %107 : vector<8x96xf32>
    %cst_27 = arith.constant 1.000000e+00 : f32
    %109 = vector.broadcast %cst_27 : f32 to vector<8x96xf32>
    %110 = arith.addf %109, %108 : vector<8x96xf32>
    %111 = arith.divf %109, %110 : vector<8x96xf32>
    %112 = vector.extract_strided_slice %111 {offsets = [0, 0], sizes = [8, 32], strides = [1, 1]} : vector<8x96xf32> to vector<8x32xf32>
    %113 = vector.extract_strided_slice %111 {offsets = [0, 32], sizes = [8, 32], strides = [1, 1]} : vector<8x96xf32> to vector<8x32xf32>
    %114 = vector.extract_strided_slice %111 {offsets = [0, 64], sizes = [8, 32], strides = [1, 1]} : vector<8x96xf32> to vector<8x32xf32>
    %115 = vector.extract_strided_slice %105 {offsets = [0, 96], sizes = [8, 32], strides = [1, 1]} : vector<8x128xf32> to vector<8x32xf32>
    %116 = math.tanh %115 : vector<8x32xf32>
    %117 = arith.mulf %113, %96 : vector<8x32xf32>
    %118 = arith.mulf %112, %116 : vector<8x32xf32>
    %119 = arith.addf %117, %118 : vector<8x32xf32>
    %120 = math.tanh %119 : vector<8x32xf32>
    %121 = arith.mulf %114, %120 : vector<8x32xf32>
    %c5_i32 = arith.constant 5 : i32
    %122 = arith.index_cast %c5_i32 : i32 to index
    %c0_28 = arith.constant 0 : index
    %c0_29 = arith.constant 0 : index
    %123 = vector.load %arg1[%122, %c0_28, %c0_29] : memref<8x8x128xf32, #tpu.memory_space<vmem>>, vector<1x8x128xf32>
    %124 = vector.shape_cast %123 : vector<1x8x128xf32> to vector<8x128xf32>
    %125 = vector.broadcast %4 : vector<1x128xf32> to vector<8x128xf32>
    %126 = arith.addf %124, %125 : vector<8x128xf32>
    %cst_30 = arith.constant dense<0.000000e+00> : vector<8x128xf32>
    %127 = tpu.matmul %121, %3, %cst_30 {dimension_numbers = #tpu.dot_dimension_numbers<[1], [0], [0], [1], [0, 0, 1, 1], [], []>} : vector<8x32xf32>, vector<32x128xf32>, vector<8x128xf32> -> vector<8x128xf32>
    %128 = arith.addf %126, %127 : vector<8x128xf32>
    %129 = vector.extract_strided_slice %128 {offsets = [0, 0], sizes = [8, 96], strides = [1, 1]} : vector<8x128xf32> to vector<8x96xf32>
    %130 = arith.negf %129 : vector<8x96xf32>
    %131 = math.exp %130 : vector<8x96xf32>
    %cst_31 = arith.constant 1.000000e+00 : f32
    %132 = vector.broadcast %cst_31 : f32 to vector<8x96xf32>
    %133 = arith.addf %132, %131 : vector<8x96xf32>
    %134 = arith.divf %132, %133 : vector<8x96xf32>
    %135 = vector.extract_strided_slice %134 {offsets = [0, 0], sizes = [8, 32], strides = [1, 1]} : vector<8x96xf32> to vector<8x32xf32>
    %136 = vector.extract_strided_slice %134 {offsets = [0, 32], sizes = [8, 32], strides = [1, 1]} : vector<8x96xf32> to vector<8x32xf32>
    %137 = vector.extract_strided_slice %134 {offsets = [0, 64], sizes = [8, 32], strides = [1, 1]} : vector<8x96xf32> to vector<8x32xf32>
    %138 = vector.extract_strided_slice %128 {offsets = [0, 96], sizes = [8, 32], strides = [1, 1]} : vector<8x128xf32> to vector<8x32xf32>
    %139 = math.tanh %138 : vector<8x32xf32>
    %140 = arith.mulf %136, %119 : vector<8x32xf32>
    %141 = arith.mulf %135, %139 : vector<8x32xf32>
    %142 = arith.addf %140, %141 : vector<8x32xf32>
    %143 = math.tanh %142 : vector<8x32xf32>
    %144 = arith.mulf %137, %143 : vector<8x32xf32>
    %c6_i32 = arith.constant 6 : i32
    %145 = arith.index_cast %c6_i32 : i32 to index
    %c0_32 = arith.constant 0 : index
    %c0_33 = arith.constant 0 : index
    %146 = vector.load %arg1[%145, %c0_32, %c0_33] : memref<8x8x128xf32, #tpu.memory_space<vmem>>, vector<1x8x128xf32>
    %147 = vector.shape_cast %146 : vector<1x8x128xf32> to vector<8x128xf32>
    %148 = vector.broadcast %4 : vector<1x128xf32> to vector<8x128xf32>
    %149 = arith.addf %147, %148 : vector<8x128xf32>
    %cst_34 = arith.constant dense<0.000000e+00> : vector<8x128xf32>
    %150 = tpu.matmul %144, %3, %cst_34 {dimension_numbers = #tpu.dot_dimension_numbers<[1], [0], [0], [1], [0, 0, 1, 1], [], []>} : vector<8x32xf32>, vector<32x128xf32>, vector<8x128xf32> -> vector<8x128xf32>
    %151 = arith.addf %149, %150 : vector<8x128xf32>
    %152 = vector.extract_strided_slice %151 {offsets = [0, 0], sizes = [8, 96], strides = [1, 1]} : vector<8x128xf32> to vector<8x96xf32>
    %153 = arith.negf %152 : vector<8x96xf32>
    %154 = math.exp %153 : vector<8x96xf32>
    %cst_35 = arith.constant 1.000000e+00 : f32
    %155 = vector.broadcast %cst_35 : f32 to vector<8x96xf32>
    %156 = arith.addf %155, %154 : vector<8x96xf32>
    %157 = arith.divf %155, %156 : vector<8x96xf32>
    %158 = vector.extract_strided_slice %157 {offsets = [0, 0], sizes = [8, 32], strides = [1, 1]} : vector<8x96xf32> to vector<8x32xf32>
    %159 = vector.extract_strided_slice %157 {offsets = [0, 32], sizes = [8, 32], strides = [1, 1]} : vector<8x96xf32> to vector<8x32xf32>
    %160 = vector.extract_strided_slice %157 {offsets = [0, 64], sizes = [8, 32], strides = [1, 1]} : vector<8x96xf32> to vector<8x32xf32>
    %161 = vector.extract_strided_slice %151 {offsets = [0, 96], sizes = [8, 32], strides = [1, 1]} : vector<8x128xf32> to vector<8x32xf32>
    %162 = math.tanh %161 : vector<8x32xf32>
    %163 = arith.mulf %159, %142 : vector<8x32xf32>
    %164 = arith.mulf %158, %162 : vector<8x32xf32>
    %165 = arith.addf %163, %164 : vector<8x32xf32>
    %166 = math.tanh %165 : vector<8x32xf32>
    %167 = arith.mulf %160, %166 : vector<8x32xf32>
    %c7_i32 = arith.constant 7 : i32
    %168 = arith.index_cast %c7_i32 : i32 to index
    %c0_36 = arith.constant 0 : index
    %c0_37 = arith.constant 0 : index
    %169 = vector.load %arg1[%168, %c0_36, %c0_37] : memref<8x8x128xf32, #tpu.memory_space<vmem>>, vector<1x8x128xf32>
    %170 = vector.shape_cast %169 : vector<1x8x128xf32> to vector<8x128xf32>
    %171 = vector.broadcast %4 : vector<1x128xf32> to vector<8x128xf32>
    %172 = arith.addf %170, %171 : vector<8x128xf32>
    %cst_38 = arith.constant dense<0.000000e+00> : vector<8x128xf32>
    %173 = tpu.matmul %167, %3, %cst_38 {dimension_numbers = #tpu.dot_dimension_numbers<[1], [0], [0], [1], [0, 0, 1, 1], [], []>} : vector<8x32xf32>, vector<32x128xf32>, vector<8x128xf32> -> vector<8x128xf32>
    %174 = arith.addf %172, %173 : vector<8x128xf32>
    %175 = vector.extract_strided_slice %174 {offsets = [0, 0], sizes = [8, 96], strides = [1, 1]} : vector<8x128xf32> to vector<8x96xf32>
    %176 = arith.negf %175 : vector<8x96xf32>
    %177 = math.exp %176 : vector<8x96xf32>
    %cst_39 = arith.constant 1.000000e+00 : f32
    %178 = vector.broadcast %cst_39 : f32 to vector<8x96xf32>
    %179 = arith.addf %178, %177 : vector<8x96xf32>
    %180 = arith.divf %178, %179 : vector<8x96xf32>
    %181 = vector.extract_strided_slice %180 {offsets = [0, 0], sizes = [8, 32], strides = [1, 1]} : vector<8x96xf32> to vector<8x32xf32>
    %182 = vector.extract_strided_slice %180 {offsets = [0, 32], sizes = [8, 32], strides = [1, 1]} : vector<8x96xf32> to vector<8x32xf32>
    %183 = vector.extract_strided_slice %180 {offsets = [0, 64], sizes = [8, 32], strides = [1, 1]} : vector<8x96xf32> to vector<8x32xf32>
    %184 = vector.extract_strided_slice %174 {offsets = [0, 96], sizes = [8, 32], strides = [1, 1]} : vector<8x128xf32> to vector<8x32xf32>
    %185 = math.tanh %184 : vector<8x32xf32>
    %186 = arith.mulf %182, %165 : vector<8x32xf32>
    %187 = arith.mulf %181, %185 : vector<8x32xf32>
    %188 = arith.addf %186, %187 : vector<8x32xf32>
    %189 = math.tanh %188 : vector<8x32xf32>
    %190 = arith.mulf %183, %189 : vector<8x32xf32>
    %c8_i32 = arith.constant 8 : i32
    %c0_40 = arith.constant 0 : index
    %c0_41 = arith.constant 0 : index
    %191 = vector.load %arg7[%c0_40, %c0_41] : memref<8x32xf32, #tpu.memory_space<vmem>>, vector<8x32xf32>
    tpu.vector_store %arg7[%c0_40, %c0_41], %190 {strides = array<i32>} : memref<8x32xf32, #tpu.memory_space<vmem>>, vector<8x32xf32>,
    %c0_42 = arith.constant 0 : index
    %c0_43 = arith.constant 0 : index
    %192 = vector.load %arg8[%c0_42, %c0_43] : memref<8x32xf32, #tpu.memory_space<vmem>>, vector<8x32xf32>
    tpu.vector_store %arg8[%c0_42, %c0_43], %188 {strides = array<i32>} : memref<8x32xf32, #tpu.memory_space<vmem>>, vector<8x32xf32>,
    %c0_i32_44 = arith.constant 0 : i32
    %193 = arith.cmpi eq, %arg0, %c0_i32_44 : i32
    %194 = arith.extui %193 : i1 to i32
    %c0_i32_45 = arith.constant 0 : i32
    %195 = arith.cmpi ne, %194, %c0_i32_45 : i32
    scf.if %195 {
      %c0_46 = arith.constant 0 : index
      %c0_47 = arith.constant 0 : index
      %196 = vector.load %arg7[%c0_46, %c0_47] : memref<8x32xf32, #tpu.memory_space<vmem>>, vector<8x32xf32>
      %c0_48 = arith.constant 0 : index
      %c0_49 = arith.constant 0 : index
      %197 = vector.load %arg4[%c0_48, %c0_49] : memref<32x4xf32, #tpu.memory_space<vmem>>, vector<32x4xf32>
      %cst_50 = arith.constant dense<0.000000e+00> : vector<8x4xf32>
      %198 = tpu.matmul %196, %197, %cst_50 {dimension_numbers = #tpu.dot_dimension_numbers<[1], [0], [0], [1], [0, 0, 1, 1], [], []>} : vector<8x32xf32>, vector<32x4xf32>, vector<8x4xf32> -> vector<8x4xf32>
      %c0_51 = arith.constant 0 : index
      %c0_52 = arith.constant 0 : index
      %199 = vector.load %arg5[%c0_51, %c0_52] : memref<1x4xf32, #tpu.memory_space<vmem>>, vector<1x4xf32>
      %200 = vector.broadcast %199 : vector<1x4xf32> to vector<8x4xf32>
      %201 = arith.addf %198, %200 : vector<8x4xf32>
      %c0_53 = arith.constant 0 : index
      %c0_54 = arith.constant 0 : index
      %202 = vector.load %arg6[%c0_53, %c0_54] : memref<8x4xf32, #tpu.memory_space<vmem>>, vector<8x4xf32>
      tpu.vector_store %arg6[%c0_53, %c0_54], %201 {strides = array<i32>} : memref<8x4xf32, #tpu.memory_space<vmem>>, vector<8x4xf32>,
    } else {
    }
    return
  }
  func.func @transform_0(%arg0: i32) -> (i32, i32, i32) {
    %c0_i32 = arith.constant 0 : i32
    %c0_i32_0 = arith.constant 0 : i32
    %c0_i32_1 = arith.constant 0 : i32
    return %arg0, %c0_i32, %c0_i32_0 : i32, i32, i32
  }
  func.func @transform_1(%arg0: i32) -> (i32, i32) {
    %c0_i32 = arith.constant 0 : i32
    %c0_i32_0 = arith.constant 0 : i32
    %c0_i32_1 = arith.constant 0 : i32
    return %c0_i32, %c0_i32_0 : i32, i32
  }
  func.func @transform_2(%arg0: i32) -> (i32, i32) {
    %c0_i32 = arith.constant 0 : i32
    %c0_i32_0 = arith.constant 0 : i32
    %c0_i32_1 = arith.constant 0 : i32
    return %c0_i32, %c0_i32_0 : i32, i32
  }
  func.func @transform_3(%arg0: i32) -> (i32, i32) {
    %c0_i32 = arith.constant 0 : i32
    %c0_i32_0 = arith.constant 0 : i32
    %c0_i32_1 = arith.constant 0 : i32
    return %c0_i32, %c0_i32_0 : i32, i32
  }
  func.func @transform_4(%arg0: i32) -> (i32, i32) {
    %c0_i32 = arith.constant 0 : i32
    %c0_i32_0 = arith.constant 0 : i32
    %c0_i32_1 = arith.constant 0 : i32
    return %c0_i32, %c0_i32_0 : i32, i32
  }
  func.func @transform_5(%arg0: i32) -> (i32, i32) {
    %c0_i32 = arith.constant 0 : i32
    %c0_i32_0 = arith.constant 0 : i32
    %c0_i32_1 = arith.constant 0 : i32
    return %c0_i32, %c0_i32_0 : i32, i32
  }
}

</mosaic_0001>

<llo_original>
// kernel: lstm_state_selector_forward.3
$region0: #{lstm_state_selector_forward.3}
  #allocation0 [shape = 'u32[]', space=smem, size = 0x4, offset = 0x4, fixed_abs, tag = 'smem constant byte address 0x4 - core index']
  #allocation1 [shape = 'u32[144,128]{1,0:T(1,128)}', space=vmem, size = 0x12000, scoped, tag = 'internal scratch']
  #allocation2 [shape = 'f32[8,32]{1,0:T(8,128)}', space=vmem, size = 0x1000, scoped, tag = 'scratch operand']
  #allocation3 [shape = 'f32[8,32]{1,0:T(8,128)}', space=vmem, size = 0x1000, scoped, tag = 'scratch operand']
  %s0 = inlined_call_operand.vmem [shape: f32[8,8,128], index: 0, kind: input, shape index: {}]
  %s1 = inlined_call_operand.vmem [shape: f32[32,128], index: 1, kind: input, shape index: {}]
  %s2 = inlined_call_operand.vmem [shape: f32[1,128], index: 2, kind: input, shape index: {}]
  %s3 = inlined_call_operand.vmem [shape: f32[32,4], index: 3, kind: input, shape index: {}]
  %s4 = inlined_call_operand.vmem [shape: f32[1,4], index: 4, kind: input, shape index: {}]
  %s5 = inlined_call_operand.vmem [shape: f32[8,4], index: 5, kind: output, shape index: {}]
  %s6 = sld [smem:[#allocation0]]
  $region38: #{lstm_state_selector_forward.3} parent=0
    _
  %s8 = ssub.s32 1, %s6
  %s9 = scalar_select 0, %s8, %s6
  // Predicated region
  $region2: #{lstm_state_selector_forward.3} parent=0 // pred_check
    _
  $region3: #{lstm_state_selector_forward.3} parent=0 // pred_check_branch
    %11 = sbr.rel (0) target = $region5
  $region4: #{lstm_state_selector_forward.3} parent=0 // pred_region
    _
  $region5: #{lstm_state_selector_forward.3} parent=0 // pred_fallthru
    _
  // Predicated region
  $region6: #{lstm_state_selector_forward.3} parent=0 // pred_check
    _
  $region7: #{lstm_state_selector_forward.3} parent=0 // pred_check_branch
    %13 = sbr.rel (0) target = $region9
  $region8: #{lstm_state_selector_forward.3} parent=0 // pred_region
    _
  $region9: #{lstm_state_selector_forward.3} parent=0 // pred_fallthru
    _
  // Predicated region
  $region10: #{lstm_state_selector_forward.3} parent=0 // pred_check
    _
  $region11: #{lstm_state_selector_forward.3} parent=0 // pred_check_branch
    %15 = sbr.rel (0) target = $region13
  $region12: #{lstm_state_selector_forward.3} parent=0 // pred_region
    _
  $region13: #{lstm_state_selector_forward.3} parent=0 // pred_fallthru
    _
  // Predicated region
  $region14: #{lstm_state_selector_forward.3} parent=0 // pred_check
    _
  $region15: #{lstm_state_selector_forward.3} parent=0 // pred_check_branch
    %17 = sbr.rel (0) target = $region17
  $region16: #{lstm_state_selector_forward.3} parent=0 // pred_region
    _
  $region17: #{lstm_state_selector_forward.3} parent=0 // pred_fallthru
    _
  // Predicated region
  $region18: #{lstm_state_selector_forward.3} parent=0 // pred_check
    _
  $region19: #{lstm_state_selector_forward.3} parent=0 // pred_check_branch
    %19 = sbr.rel (0) target = $region21
  $region20: #{lstm_state_selector_forward.3} parent=0 // pred_region
    _
  $region21: #{lstm_state_selector_forward.3} parent=0 // pred_fallthru
    _
  %p20 = scmp.eq.s32.totalorder 0, 0
  // Predicated region
  $region22: #{lstm_state_selector_forward.3} parent=0 // pred_check
    %p21 = pneg %p20
  $region23: #{lstm_state_selector_forward.3} parent=0 // pred_check_branch
    %23 = sbr.rel (%p21) target = $region25
  $region24: #{lstm_state_selector_forward.3} parent=0 // pred_region
    %vm24 = vcmask 261120
    %25 = vst.msk [vmem:[#allocation2] sm:$0xff] %vm24, 0.0
    %26 = vst.msk [vmem:[#allocation3] sm:$0xff] %vm24, 0.0
  $region25: #{lstm_state_selector_forward.3} parent=0 // pred_fallthru
    _
  %v27 = vld [vmem:[%s1] sm:$0xff]
  %v28 = vld [vmem:[%s1 + $0x8] sm:$0xff]
  %v29 = vld [vmem:[%s1 + $0x10] sm:$0xff]
  %v30 = vld [vmem:[%s1 + $0x18] sm:$0xff]
  %v31 = vld [vmem:[%s2] sm:$0x1]
  %v32 = vld [vmem:[#allocation2] sm:$0xff]
  %v33 = vld [vmem:[#allocation3] sm:$0xff]
  %v34 = vld [vmem:[%s0] sm:$0xff]
  %v36 = vlaneseq
  %v37 = vshrl.u32 %v36, 7
  %v38 = vsub.s32 0, %v37
  %v39 = vrot.slane %v31, %v38
  %v41 = vadd.f32 %v34, %v39
  %vm42 = vcmask 261120
  %v44 = vsel %vm42, %v32, 0
  %46 = vmatprep.subr.mxu0 0.0
  %47 = vmatpush1.msra.mxu0 %v27
  %48 = vmatprep.subr.mxu0 0.0
  %49 = vmatpush1.msra.mxu0 %v28
  %50 = vmatprep.subr.mxu0 0.0
  %51 = vmatpush1.msra.mxu0 %v29
  %52 = vmatprep.subr.mxu0 0.0
  %53 = vmatpush1.msra.mxu0 %v30
  %54 = vmatprep.subr.mxu0 0.0
  %55 = vmatpush1.msra.mxu0 0.0
  %56 = vmatprep.subr.mxu0 0.0
  %57 = vmatpush1.msra.mxu0 0.0
  %58 = vmatprep.subr.mxu0 0.0
  %59 = vmatpush1.msra.mxu0 0.0
  %60 = vmatprep.subr.mxu0 0.0
  %61 = vmatpush1.msra.mxu0 0.0
  %62 = vmatprep.subr.mxu0 0.0
  %63 = vmatpush1.msra.mxu0 0.0
  %64 = vmatprep.subr.mxu0 0.0
  %65 = vmatpush1.msra.mxu0 0.0
  %66 = vmatprep.subr.mxu0 0.0
  %67 = vmatpush1.msra.mxu0 0.0
  %68 = vmatprep.subr.mxu0 0.0
  %69 = vmatpush1.msra.mxu0 0.0
  %70 = vmatprep.subr.mxu0 0.0
  %71 = vmatpush1.msra.mxu0 0.0
  %72 = vmatprep.subr.mxu0 0.0
  %73 = vmatpush1.msra.mxu0 0.0
  %74 = vmatprep.subr.mxu0 0.0
  %75 = vmatpush1.msra.mxu0 0.0
  %76 = vmatprep.subr.mxu0 0.0
  %77 = vmatpush1.msra.mxu0 0.0
  %78 = vmatprep.subr.mxu0 0.0
  %79 = vmatpush1.msra.mxu0 0.0
  %80 = vmatprep.subr.mxu0 0.0
  %81 = vmatpush1.msra.mxu0 0.0
  %82 = vmatprep.subr.mxu0 0.0
  %83 = vmatpush1.msra.mxu0 0.0
  %84 = vmatprep.subr.mxu0 0.0
  %85 = vmatpush1.msra.mxu0 0.0
  %86 = vmatprep.subr.mxu0 0.0
  %87 = vmatpush1.msra.mxu0 0.0
  %88 = vmatprep.subr.mxu0 0.0
  %89 = vmatpush1.msra.mxu0 0.0
  %90 = vmatprep.subr.mxu0 0.0
  %91 = vmatpush1.msra.mxu0 0.0
  %92 = vmatprep.subr.mxu0 0.0
  %93 = vmatpush1.msra.mxu0 0.0
  %94 = vmatprep.subr.mxu0 0.0
  %95 = vmatpush1.msra.mxu0 0.0
  %96 = vmatprep.subr.mxu0 0.0
  %97 = vmatpush1.msra.mxu0 0.0
  %98 = vmatprep.subr.mxu0 0.0
  %99 = vmatpush1.msra.mxu0 0.0
  %100 = vmatprep.subr.mxu0 0.0
  %101 = vmatpush1.msra.mxu0 0.0
  %102 = vmatprep.subr.mxu0 0.0
  %103 = vmatpush1.msra.mxu0 0.0
  %104 = vmatprep.subr.mxu0 0.0
  %105 = vmatpush1.msra.mxu0 0.0
  %106 = vmatprep.subr.mxu0 0.0
  %107 = vmatpush1.msra.mxu0 0.0
  %108 = vmatprep.subr.mxu0 0.0
  %109 = vmatpush1.msra.mxu0 0.0
  %110 = vmatprep.mubr.f32.mxu0 0.0
  %111 = vmatmul.mubr.f32.gmra.mrb[0].mxu0 %v44
  %v112 = vpop.f32.mrb[0].mxu0
  %v113 = vadd.f32 0.0, %v112
  %v114 = vpop.f32.mrb[0].mxu0
  %115 = vdwg.mxu0
  %v116 = vadd.f32 %v41, %v113
  %v117 = vxor.u32 %v116, 2147483648
  %v118 = vmul.f32 %v117, 1.442695
  %v119 = vpow.pop %v118
  %v120 = vadd.f32 %v119, 1.0
  %v121 = vrcp.pop %v120
  %v122 = vmul.f32 1.0, %v121
  %v123 = vtanh.pop %v116
  %125 = vrot.lane.b32.xlu0 %v33, 32
  %v126 = vpop.permute.xlu0 %125
  %v128 = vmul.f32 %v122, %v126
  %130 = vrot.lane.b32.xlu0 %v123, 32
  %v131 = vpop.permute.xlu0 %130
  %v133 = vmul.f32 %v122, %v131
  %135 = vrot.lane.b32.xlu0 %v133, 32
  %v136 = vpop.permute.xlu0 %135
  %v138 = vadd.f32 %v128, %v136
  %v139 = vtanh.pop %v138
  %141 = vrot.lane.b32.xlu0 %v139, 32
  %v142 = vpop.permute.xlu0 %141
  %v144 = vmul.f32 %v122, %v142
  %s145 = scalar_lea.vmem %s0, 8
  %v146 = vld [vmem:[%s145] sm:$0xff]
  %v147 = vadd.f32 %v146, %v39
  %149 = vrot.lane.b32.xlu0 %v144, 64
  %v150 = vpop.permute.xlu0 %149
  %v151 = vsel %vm42, %v150, 0
  %153 = vmatprep.subr.mxu0 0.0
  %154 = vmatpush1.msra.mxu0 %v27
  %155 = vmatprep.subr.mxu0 0.0
  %156 = vmatpush1.msra.mxu0 %v28
  %157 = vmatprep.subr.mxu0 0.0
  %158 = vmatpush1.msra.mxu0 %v29
  %159 = vmatprep.subr.mxu0 0.0
  %160 = vmatpush1.msra.mxu0 %v30
  %161 = vmatprep.subr.mxu0 0.0
  %162 = vmatpush1.msra.mxu0 0.0
  %163 = vmatprep.subr.mxu0 0.0
  %164 = vmatpush1.msra.mxu0 0.0
  %165 = vmatprep.subr.mxu0 0.0
  %166 = vmatpush1.msra.mxu0 0.0
  %167 = vmatprep.subr.mxu0 0.0
  %168 = vmatpush1.msra.mxu0 0.0
  %169 = vmatprep.subr.mxu0 0.0
  %170 = vmatpush1.msra.mxu0 0.0
  %171 = vmatprep.subr.mxu0 0.0
  %172 = vmatpush1.msra.mxu0 0.0
  %173 = vmatprep.subr.mxu0 0.0
  %174 = vmatpush1.msra.mxu0 0.0
  %175 = vmatprep.subr.mxu0 0.0
  %176 = vmatpush1.msra.mxu0 0.0
  %177 = vmatprep.subr.mxu0 0.0
  %178 = vmatpush1.msra.mxu0 0.0
  %179 = vmatprep.subr.mxu0 0.0
  %180 = vmatpush1.msra.mxu0 0.0
  %181 = vmatprep.subr.mxu0 0.0
  %182 = vmatpush1.msra.mxu0 0.0
  %183 = vmatprep.subr.mxu0 0.0
  %184 = vmatpush1.msra.mxu0 0.0
  %185 = vmatprep.subr.mxu0 0.0
  %186 = vmatpush1.msra.mxu0 0.0
  %187 = vmatprep.subr.mxu0 0.0
  %188 = vmatpush1.msra.mxu0 0.0
  %189 = vmatprep.subr.mxu0 0.0
  %190 = vmatpush1.msra.mxu0 0.0
  %191 = vmatprep.subr.mxu0 0.0
  %192 = vmatpush1.msra.mxu0 0.0
  %193 = vmatprep.subr.mxu0 0.0
  %194 = vmatpush1.msra.mxu0 0.0
  %195 = vmatprep.subr.mxu0 0.0
  %196 = vmatpush1.msra.mxu0 0.0
  %197 = vmatprep.subr.mxu0 0.0
  %198 = vmatpush1.msra.mxu0 0.0
  %199 = vmatprep.subr.mxu0 0.0
  %200 = vmatpush1.msra.mxu0 0.0
  %201 = vmatprep.subr.mxu0 0.0
  %202 = vmatpush1.msra.mxu0 0.0
  %203 = vmatprep.subr.mxu0 0.0
  %204 = vmatpush1.msra.mxu0 0.0
  %205 = vmatprep.subr.mxu0 0.0
  %206 = vmatpush1.msra.mxu0 0.0
  %207 = vmatprep.subr.mxu0 0.0
  %208 = vmatpush1.msra.mxu0 0.0
  %209 = vmatprep.subr.mxu0 0.0
  %210 = vmatpush1.msra.mxu0 0.0
  %211 = vmatprep.subr.mxu0 0.0
  %212 = vmatpush1.msra.mxu0 0.0
  %213 = vmatprep.subr.mxu0 0.0
  %214 = vmatpush1.msra.mxu0 0.0
  %215 = vmatprep.subr.mxu0 0.0
  %216 = vmatpush1.msra.mxu0 0.0
  %217 = vmatprep.mubr.f32.mxu0 0.0
  %218 = vmatmul.mubr.f32.gmra.mrb[0].mxu0 %v151
  %v219 = vpop.f32.mrb[0].mxu0
  %v220 = vadd.f32 0.0, %v219
  %v221 = vpop.f32.mrb[0].mxu0
  %222 = vdwg.mxu0
  %v223 = vadd.f32 %v147, %v220
  %v224 = vxor.u32 %v223, 2147483648
  %v225 = vmul.f32 %v224, 1.442695
  %v226 = vpow.pop %v225
  %v227 = vadd.f32 %v226, 1.0
  %v228 = vrcp.pop %v227
  %v229 = vmul.f32 1.0, %v228
  %v230 = vtanh.pop %v223
  %v231 = vmul.f32 %v229, %v138
  %233 = vrot.lane.b32.xlu0 %v230, 32
  %v234 = vpop.permute.xlu0 %233
  %v236 = vmul.f32 %v229, %v234
  %238 = vrot.lane.b32.xlu0 %v236, 32
  %v239 = vpop.permute.xlu0 %238
  %v241 = vadd.f32 %v231, %v239
  %v242 = vtanh.pop %v241
  %244 = vrot.lane.b32.xlu0 %v242, 32
  %v245 = vpop.permute.xlu0 %244
  %v247 = vmul.f32 %v229, %v245
  %s248 = scalar_lea.vmem %s0, 16
  %v249 = vld [vmem:[%s248] sm:$0xff]
  %v250 = vadd.f32 %v249, %v39
  %252 = vrot.lane.b32.xlu0 %v247, 64
  %v253 = vpop.permute.xlu0 %252
  %v254 = vsel %vm42, %v253, 0
  %256 = vmatprep.subr.mxu0 0.0
  %257 = vmatpush1.msra.mxu0 %v27
  %258 = vmatprep.subr.mxu0 0.0
  %259 = vmatpush1.msra.mxu0 %v28
  %260 = vmatprep.subr.mxu0 0.0
  %261 = vmatpush1.msra.mxu0 %v29
  %262 = vmatprep.subr.mxu0 0.0
  %263 = vmatpush1.msra.mxu0 %v30
  %264 = vmatprep.subr.mxu0 0.0
  %265 = vmatpush1.msra.mxu0 0.0
  %266 = vmatprep.subr.mxu0 0.0
  %267 = vmatpush1.msra.mxu0 0.0
  %268 = vmatprep.subr.mxu0 0.0
  %269 = vmatpush1.msra.mxu0 0.0
  %270 = vmatprep.subr.mxu0 0.0
  %271 = vmatpush1.msra.mxu0 0.0
  %272 = vmatprep.subr.mxu0 0.0
  %273 = vmatpush1.msra.mxu0 0.0
  %274 = vmatprep.subr.mxu0 0.0
  %275 = vmatpush1.msra.mxu0 0.0
  %276 = vmatprep.subr.mxu0 0.0
  %277 = vmatpush1.msra.mxu0 0.0
  %278 = vmatprep.subr.mxu0 0.0
  %279 = vmatpush1.msra.mxu0 0.0
  %280 = vmatprep.subr.mxu0 0.0
  %281 = vmatpush1.msra.mxu0 0.0
  %282 = vmatprep.subr.mxu0 0.0
  %283 = vmatpush1.msra.mxu0 0.0
  %284 = vmatprep.subr.mxu0 0.0
  %285 = vmatpush1.msra.mxu0 0.0
  %286 = vmatprep.subr.mxu0 0.0
  %287 = vmatpush1.msra.mxu0 0.0
  %288 = vmatprep.subr.mxu0 0.0
  %289 = vmatpush1.msra.mxu0 0.0
  %290 = vmatprep.subr.mxu0 0.0
  %291 = vmatpush1.msra.mxu0 0.0
  %292 = vmatprep.subr.mxu0 0.0
  %293 = vmatpush1.msra.mxu0 0.0
  %294 = vmatprep.subr.mxu0 0.0
  %295 = vmatpush1.msra.mxu0 0.0
  %296 = vmatprep.subr.mxu0 0.0
  %297 = vmatpush1.msra.mxu0 0.0
  %298 = vmatprep.subr.mxu0 0.0
  %299 = vmatpush1.msra.mxu0 0.0
  %300 = vmatprep.subr.mxu0 0.0
  %301 = vmatpush1.msra.mxu0 0.0
  %302 = vmatprep.subr.mxu0 0.0
  %303 = vmatpush1.msra.mxu0 0.0
  %304 = vmatprep.subr.mxu0 0.0
  %305 = vmatpush1.msra.mxu0 0.0
  %306 = vmatprep.subr.mxu0 0.0
  %307 = vmatpush1.msra.mxu0 0.0
  %308 = vmatprep.subr.mxu0 0.0
  %309 = vmatpush1.msra.mxu0 0.0
  %310 = vmatprep.subr.mxu0 0.0
  %311 = vmatpush1.msra.mxu0 0.0
  %312 = vmatprep.subr.mxu0 0.0
  %313 = vmatpush1.msra.mxu0 0.0
  %314 = vmatprep.subr.mxu0 0.0
  %315 = vmatpush1.msra.mxu0 0.0
  %316 = vmatprep.subr.mxu0 0.0
  %317 = vmatpush1.msra.mxu0 0.0
  %318 = vmatprep.subr.mxu0 0.0
  %319 = vmatpush1.msra.mxu0 0.0
  %320 = vmatprep.mubr.f32.mxu0 0.0
  %321 = vmatmul.mubr.f32.gmra.mrb[0].mxu0 %v254
  %v322 = vpop.f32.mrb[0].mxu0
  %v323 = vadd.f32 0.0, %v322
  %v324 = vpop.f32.mrb[0].mxu0
  %325 = vdwg.mxu0
  %v326 = vadd.f32 %v250, %v323
  %v327 = vxor.u32 %v326, 2147483648
  %v328 = vmul.f32 %v327, 1.442695
  %v329 = vpow.pop %v328
  %v330 = vadd.f32 %v329, 1.0
  %v331 = vrcp.pop %v330
  %v332 = vmul.f32 1.0, %v331
  %v333 = vtanh.pop %v326
  %v334 = vmul.f32 %v332, %v241
  %336 = vrot.lane.b32.xlu0 %v333, 32
  %v337 = vpop.permute.xlu0 %336
  %v339 = vmul.f32 %v332, %v337
  %341 = vrot.lane.b32.xlu0 %v339, 32
  %v342 = vpop.permute.xlu0 %341
  %v344 = vadd.f32 %v334, %v342
  %v345 = vtanh.pop %v344
  %347 = vrot.lane.b32.xlu0 %v345, 32
  %v348 = vpop.permute.xlu0 %347
  %v350 = vmul.f32 %v332, %v348
  %s351 = scalar_lea.vmem %s0, 24
  %v352 = vld [vmem:[%s351] sm:$0xff]
  %v353 = vadd.f32 %v352, %v39
  %355 = vrot.lane.b32.xlu0 %v350, 64
  %v356 = vpop.permute.xlu0 %355
  %v357 = vsel %vm42, %v356, 0
  %359 = vmatprep.subr.mxu0 0.0
  %360 = vmatpush1.msra.mxu0 %v27
  %361 = vmatprep.subr.mxu0 0.0
  %362 = vmatpush1.msra.mxu0 %v28
  %363 = vmatprep.subr.mxu0 0.0
  %364 = vmatpush1.msra.mxu0 %v29
  %365 = vmatprep.subr.mxu0 0.0
  %366 = vmatpush1.msra.mxu0 %v30
  %367 = vmatprep.subr.mxu0 0.0
  %368 = vmatpush1.msra.mxu0 0.0
  %369 = vmatprep.subr.mxu0 0.0
  %370 = vmatpush1.msra.mxu0 0.0
  %371 = vmatprep.subr.mxu0 0.0
  %372 = vmatpush1.msra.mxu0 0.0
  %373 = vmatprep.subr.mxu0 0.0
  %374 = vmatpush1.msra.mxu0 0.0
  %375 = vmatprep.subr.mxu0 0.0
  %376 = vmatpush1.msra.mxu0 0.0
  %377 = vmatprep.subr.mxu0 0.0
  %378 = vmatpush1.msra.mxu0 0.0
  %379 = vmatprep.subr.mxu0 0.0
  %380 = vmatpush1.msra.mxu0 0.0
  %381 = vmatprep.subr.mxu0 0.0
  %382 = vmatpush1.msra.mxu0 0.0
  %383 = vmatprep.subr.mxu0 0.0
  %384 = vmatpush1.msra.mxu0 0.0
  %385 = vmatprep.subr.mxu0 0.0
  %386 = vmatpush1.msra.mxu0 0.0
  %387 = vmatprep.subr.mxu0 0.0
  %388 = vmatpush1.msra.mxu0 0.0
  %389 = vmatprep.subr.mxu0 0.0
  %390 = vmatpush1.msra.mxu0 0.0
  %391 = vmatprep.subr.mxu0 0.0
  %392 = vmatpush1.msra.mxu0 0.0
  %393 = vmatprep.subr.mxu0 0.0
  %394 = vmatpush1.msra.mxu0 0.0
  %395 = vmatprep.subr.mxu0 0.0
  %396 = vmatpush1.msra.mxu0 0.0
  %397 = vmatprep.subr.mxu0 0.0
  %398 = vmatpush1.msra.mxu0 0.0
  %399 = vmatprep.subr.mxu0 0.0
  %400 = vmatpush1.msra.mxu0 0.0
  %401 = vmatprep.subr.mxu0 0.0
  %402 = vmatpush1.msra.mxu0 0.0
  %403 = vmatprep.subr.mxu0 0.0
  %404 = vmatpush1.msra.mxu0 0.0
  %405 = vmatprep.subr.mxu0 0.0
  %406 = vmatpush1.msra.mxu0 0.0
  %407 = vmatprep.subr.mxu0 0.0
  %408 = vmatpush1.msra.mxu0 0.0
  %409 = vmatprep.subr.mxu0 0.0
  %410 = vmatpush1.msra.mxu0 0.0
  %411 = vmatprep.subr.mxu0 0.0
  %412 = vmatpush1.msra.mxu0 0.0
  %413 = vmatprep.subr.mxu0 0.0
  %414 = vmatpush1.msra.mxu0 0.0
  %415 = vmatprep.subr.mxu0 0.0
  %416 = vmatpush1.msra.mxu0 0.0
  %417 = vmatprep.subr.mxu0 0.0
  %418 = vmatpush1.msra.mxu0 0.0
  %419 = vmatprep.subr.mxu0 0.0
  %420 = vmatpush1.msra.mxu0 0.0
  %421 = vmatprep.subr.mxu0 0.0
  %422 = vmatpush1.msra.mxu0 0.0
  %423 = vmatprep.mubr.f32.mxu0 0.0
  %424 = vmatmul.mubr.f32.gmra.mrb[0].mxu0 %v357
  %v425 = vpop.f32.mrb[0].mxu0
  %v426 = vadd.f32 0.0, %v425
  %v427 = vpop.f32.mrb[0].mxu0
  %428 = vdwg.mxu0
  %v429 = vadd.f32 %v353, %v426
  %v430 = vxor.u32 %v429, 2147483648
  %v431 = vmul.f32 %v430, 1.442695
  %v432 = vpow.pop %v431
  %v433 = vadd.f32 %v432, 1.0
  %v434 = vrcp.pop %v433
  %v435 = vmul.f32 1.0, %v434
  %v436 = vtanh.pop %v429
  %v437 = vmul.f32 %v435, %v344
  %439 = vrot.lane.b32.xlu0 %v436, 32
  %v440 = vpop.permute.xlu0 %439
  %v442 = vmul.f32 %v435, %v440
  %444 = vrot.lane.b32.xlu0 %v442, 32
  %v445 = vpop.permute.xlu0 %444
  %v447 = vadd.f32 %v437, %v445
  %v448 = vtanh.pop %v447
  %450 = vrot.lane.b32.xlu0 %v448, 32
  %v451 = vpop.permute.xlu0 %450
  %v453 = vmul.f32 %v435, %v451
  %s454 = scalar_lea.vmem %s0, 32
  %v455 = vld [vmem:[%s454] sm:$0xff]
  %v456 = vadd.f32 %v455, %v39
  %458 = vrot.lane.b32.xlu0 %v453, 64
  %v459 = vpop.permute.xlu0 %458
  %v460 = vsel %vm42, %v459, 0
  %462 = vmatprep.subr.mxu0 0.0
  %463 = vmatpush1.msra.mxu0 %v27
  %464 = vmatprep.subr.mxu0 0.0
  %465 = vmatpush1.msra.mxu0 %v28
  %466 = vmatprep.subr.mxu0 0.0
  %467 = vmatpush1.msra.mxu0 %v29
  %468 = vmatprep.subr.mxu0 0.0
  %469 = vmatpush1.msra.mxu0 %v30
  %470 = vmatprep.subr.mxu0 0.0
  %471 = vmatpush1.msra.mxu0 0.0
  %472 = vmatprep.subr.mxu0 0.0
  %473 = vmatpush1.msra.mxu0 0.0
  %474 = vmatprep.subr.mxu0 0.0
  %475 = vmatpush1.msra.mxu0 0.0
  %476 = vmatprep.subr.mxu0 0.0
  %477 = vmatpush1.msra.mxu0 0.0
  %478 = vmatprep.subr.mxu0 0.0
  %479 = vmatpush1.msra.mxu0 0.0
  %480 = vmatprep.subr.mxu0 0.0
  %481 = vmatpush1.msra.mxu0 0.0
  %482 = vmatprep.subr.mxu0 0.0
  %483 = vmatpush1.msra.mxu0 0.0
  %484 = vmatprep.subr.mxu0 0.0
  %485 = vmatpush1.msra.mxu0 0.0
  %486 = vmatprep.subr.mxu0 0.0
  %487 = vmatpush1.msra.mxu0 0.0
  %488 = vmatprep.subr.mxu0 0.0
  %489 = vmatpush1.msra.mxu0 0.0
  %490 = vmatprep.subr.mxu0 0.0
  %491 = vmatpush1.msra.mxu0 0.0
  %492 = vmatprep.subr.mxu0 0.0
  %493 = vmatpush1.msra.mxu0 0.0
  %494 = vmatprep.subr.mxu0 0.0
  %495 = vmatpush1.msra.mxu0 0.0
  %496 = vmatprep.subr.mxu0 0.0
  %497 = vmatpush1.msra.mxu0 0.0
  %498 = vmatprep.subr.mxu0 0.0
  %499 = vmatpush1.msra.mxu0 0.0
  %500 = vmatprep.subr.mxu0 0.0
  %501 = vmatpush1.msra.mxu0 0.0
  %502 = vmatprep.subr.mxu0 0.0
  %503 = vmatpush1.msra.mxu0 0.0
  %504 = vmatprep.subr.mxu0 0.0
  %505 = vmatpush1.msra.mxu0 0.0
  %506 = vmatprep.subr.mxu0 0.0
  %507 = vmatpush1.msra.mxu0 0.0
  %508 = vmatprep.subr.mxu0 0.0
  %509 = vmatpush1.msra.mxu0 0.0
  %510 = vmatprep.subr.mxu0 0.0
  %511 = vmatpush1.msra.mxu0 0.0
  %512 = vmatprep.subr.mxu0 0.0
  %513 = vmatpush1.msra.mxu0 0.0
  %514 = vmatprep.subr.mxu0 0.0
  %515 = vmatpush1.msra.mxu0 0.0
  %516 = vmatprep.subr.mxu0 0.0
  %517 = vmatpush1.msra.mxu0 0.0
  %518 = vmatprep.subr.mxu0 0.0
  %519 = vmatpush1.msra.mxu0 0.0
  %520 = vmatprep.subr.mxu0 0.0
  %521 = vmatpush1.msra.mxu0 0.0
  %522 = vmatprep.subr.mxu0 0.0
  %523 = vmatpush1.msra.mxu0 0.0
  %524 = vmatprep.subr.mxu0 0.0
  %525 = vmatpush1.msra.mxu0 0.0
  %526 = vmatprep.mubr.f32.mxu0 0.0
  %527 = vmatmul.mubr.f32.gmra.mrb[0].mxu0 %v460
  %v528 = vpop.f32.mrb[0].mxu0
  %v529 = vadd.f32 0.0, %v528
  %v530 = vpop.f32.mrb[0].mxu0
  %531 = vdwg.mxu0
  %v532 = vadd.f32 %v456, %v529
  %v533 = vxor.u32 %v532, 2147483648
  %v534 = vmul.f32 %v533, 1.442695
  %v535 = vpow.pop %v534
  %v536 = vadd.f32 %v535, 1.0
  %v537 = vrcp.pop %v536
  %v538 = vmul.f32 1.0, %v537
  %v539 = vtanh.pop %v532
  %v540 = vmul.f32 %v538, %v447
  %542 = vrot.lane.b32.xlu0 %v539, 32
  %v543 = vpop.permute.xlu0 %542
  %v545 = vmul.f32 %v538, %v543
  %547 = vrot.lane.b32.xlu0 %v545, 32
  %v548 = vpop.permute.xlu0 %547
  %v550 = vadd.f32 %v540, %v548
  %v551 = vtanh.pop %v550
  %553 = vrot.lane.b32.xlu0 %v551, 32
  %v554 = vpop.permute.xlu0 %553
  %v556 = vmul.f32 %v538, %v554
  %s557 = scalar_lea.vmem %s0, 40
  %v558 = vld [vmem:[%s557] sm:$0xff]
  %v559 = vadd.f32 %v558, %v39
  %561 = vrot.lane.b32.xlu0 %v556, 64
  %v562 = vpop.permute.xlu0 %561
  %v563 = vsel %vm42, %v562, 0
  %565 = vmatprep.subr.mxu0 0.0
  %566 = vmatpush1.msra.mxu0 %v27
  %567 = vmatprep.subr.mxu0 0.0
  %568 = vmatpush1.msra.mxu0 %v28
  %569 = vmatprep.subr.mxu0 0.0
  %570 = vmatpush1.msra.mxu0 %v29
  %571 = vmatprep.subr.mxu0 0.0
  %572 = vmatpush1.msra.mxu0 %v30
  %573 = vmatprep.subr.mxu0 0.0
  %574 = vmatpush1.msra.mxu0 0.0
  %575 = vmatprep.subr.mxu0 0.0
  %576 = vmatpush1.msra.mxu0 0.0
  %577 = vmatprep.subr.mxu0 0.0
  %578 = vmatpush1.msra.mxu0 0.0
  %579 = vmatprep.subr.mxu0 0.0
  %580 = vmatpush1.msra.mxu0 0.0
  %581 = vmatprep.subr.mxu0 0.0
  %582 = vmatpush1.msra.mxu0 0.0
  %583 = vmatprep.subr.mxu0 0.0
  %584 = vmatpush1.msra.mxu0 0.0
  %585 = vmatprep.subr.mxu0 0.0
  %586 = vmatpush1.msra.mxu0 0.0
  %587 = vmatprep.subr.mxu0 0.0
  %588 = vmatpush1.msra.mxu0 0.0
  %589 = vmatprep.subr.mxu0 0.0
  %590 = vmatpush1.msra.mxu0 0.0
  %591 = vmatprep.subr.mxu0 0.0
  %592 = vmatpush1.msra.mxu0 0.0
  %593 = vmatprep.subr.mxu0 0.0
  %594 = vmatpush1.msra.mxu0 0.0
  %595 = vmatprep.subr.mxu0 0.0
  %596 = vmatpush1.msra.mxu0 0.0
  %597 = vmatprep.subr.mxu0 0.0
  %598 = vmatpush1.msra.mxu0 0.0
  %599 = vmatprep.subr.mxu0 0.0
  %600 = vmatpush1.msra.mxu0 0.0
  %601 = vmatprep.subr.mxu0 0.0
  %602 = vmatpush1.msra.mxu0 0.0
  %603 = vmatprep.subr.mxu0 0.0
  %604 = vmatpush1.msra.mxu0 0.0
  %605 = vmatprep.subr.mxu0 0.0
  %606 = vmatpush1.msra.mxu0 0.0
  %607 = vmatprep.subr.mxu0 0.0
  %608 = vmatpush1.msra.mxu0 0.0
  %609 = vmatprep.subr.mxu0 0.0
  %610 = vmatpush1.msra.mxu0 0.0
  %611 = vmatprep.subr.mxu0 0.0
  %612 = vmatpush1.msra.mxu0 0.0
  %613 = vmatprep.subr.mxu0 0.0
  %614 = vmatpush1.msra.mxu0 0.0
  %615 = vmatprep.subr.mxu0 0.0
  %616 = vmatpush1.msra.mxu0 0.0
  %617 = vmatprep.subr.mxu0 0.0
  %618 = vmatpush1.msra.mxu0 0.0
  %619 = vmatprep.subr.mxu0 0.0
  %620 = vmatpush1.msra.mxu0 0.0
  %621 = vmatprep.subr.mxu0 0.0
  %622 = vmatpush1.msra.mxu0 0.0
  %623 = vmatprep.subr.mxu0 0.0
  %624 = vmatpush1.msra.mxu0 0.0
  %625 = vmatprep.subr.mxu0 0.0
  %626 = vmatpush1.msra.mxu0 0.0
  %627 = vmatprep.subr.mxu0 0.0
  %628 = vmatpush1.msra.mxu0 0.0
  %629 = vmatprep.mubr.f32.mxu0 0.0
  %630 = vmatmul.mubr.f32.gmra.mrb[0].mxu0 %v563
  %v631 = vpop.f32.mrb[0].mxu0
  %v632 = vadd.f32 0.0, %v631
  %v633 = vpop.f32.mrb[0].mxu0
  %634 = vdwg.mxu0
  %v635 = vadd.f32 %v559, %v632
  %v636 = vxor.u32 %v635, 2147483648
  %v637 = vmul.f32 %v636, 1.442695
  %v638 = vpow.pop %v637
  %v639 = vadd.f32 %v638, 1.0
  %v640 = vrcp.pop %v639
  %v641 = vmul.f32 1.0, %v640
  %v642 = vtanh.pop %v635
  %v643 = vmul.f32 %v641, %v550
  %645 = vrot.lane.b32.xlu0 %v642, 32
  %v646 = vpop.permute.xlu0 %645
  %v648 = vmul.f32 %v641, %v646
  %650 = vrot.lane.b32.xlu0 %v648, 32
  %v651 = vpop.permute.xlu0 %650
  %v653 = vadd.f32 %v643, %v651
  %v654 = vtanh.pop %v653
  %656 = vrot.lane.b32.xlu0 %v654, 32
  %v657 = vpop.permute.xlu0 %656
  %v659 = vmul.f32 %v641, %v657
  %s660 = scalar_lea.vmem %s0, 48
  %v661 = vld [vmem:[%s660] sm:$0xff]
  %v662 = vadd.f32 %v661, %v39
  %664 = vrot.lane.b32.xlu0 %v659, 64
  %v665 = vpop.permute.xlu0 %664
  %v666 = vsel %vm42, %v665, 0
  %668 = vmatprep.subr.mxu0 0.0
  %669 = vmatpush1.msra.mxu0 %v27
  %670 = vmatprep.subr.mxu0 0.0
  %671 = vmatpush1.msra.mxu0 %v28
  %672 = vmatprep.subr.mxu0 0.0
  %673 = vmatpush1.msra.mxu0 %v29
  %674 = vmatprep.subr.mxu0 0.0
  %675 = vmatpush1.msra.mxu0 %v30
  %676 = vmatprep.subr.mxu0 0.0
  %677 = vmatpush1.msra.mxu0 0.0
  %678 = vmatprep.subr.mxu0 0.0
  %679 = vmatpush1.msra.mxu0 0.0
  %680 = vmatprep.subr.mxu0 0.0
  %681 = vmatpush1.msra.mxu0 0.0
  %682 = vmatprep.subr.mxu0 0.0
  %683 = vmatpush1.msra.mxu0 0.0
  %684 = vmatprep.subr.mxu0 0.0
  %685 = vmatpush1.msra.mxu0 0.0
  %686 = vmatprep.subr.mxu0 0.0
  %687 = vmatpush1.msra.mxu0 0.0
  %688 = vmatprep.subr.mxu0 0.0
  %689 = vmatpush1.msra.mxu0 0.0
  %690 = vmatprep.subr.mxu0 0.0
  %691 = vmatpush1.msra.mxu0 0.0
  %692 = vmatprep.subr.mxu0 0.0
  %693 = vmatpush1.msra.mxu0 0.0
  %694 = vmatprep.subr.mxu0 0.0
  %695 = vmatpush1.msra.mxu0 0.0
  %696 = vmatprep.subr.mxu0 0.0
  %697 = vmatpush1.msra.mxu0 0.0
  %698 = vmatprep.subr.mxu0 0.0
  %699 = vmatpush1.msra.mxu0 0.0
  %700 = vmatprep.subr.mxu0 0.0
  %701 = vmatpush1.msra.mxu0 0.0
  %702 = vmatprep.subr.mxu0 0.0
  %703 = vmatpush1.msra.mxu0 0.0
  %704 = vmatprep.subr.mxu0 0.0
  %705 = vmatpush1.msra.mxu0 0.0
  %706 = vmatprep.subr.mxu0 0.0
  %707 = vmatpush1.msra.mxu0 0.0
  %708 = vmatprep.subr.mxu0 0.0
  %709 = vmatpush1.msra.mxu0 0.0
  %710 = vmatprep.subr.mxu0 0.0
  %711 = vmatpush1.msra.mxu0 0.0
  %712 = vmatprep.subr.mxu0 0.0
  %713 = vmatpush1.msra.mxu0 0.0
  %714 = vmatprep.subr.mxu0 0.0
  %715 = vmatpush1.msra.mxu0 0.0
  %716 = vmatprep.subr.mxu0 0.0
  %717 = vmatpush1.msra.mxu0 0.0
  %718 = vmatprep.subr.mxu0 0.0
  %719 = vmatpush1.msra.mxu0 0.0
  %720 = vmatprep.subr.mxu0 0.0
  %721 = vmatpush1.msra.mxu0 0.0
  %722 = vmatprep.subr.mxu0 0.0
  %723 = vmatpush1.msra.mxu0 0.0
  %724 = vmatprep.subr.mxu0 0.0
  %725 = vmatpush1.msra.mxu0 0.0
  %726 = vmatprep.subr.mxu0 0.0
  %727 = vmatpush1.msra.mxu0 0.0
  %728 = vmatprep.subr.mxu0 0.0
  %729 = vmatpush1.msra.mxu0 0.0
  %730 = vmatprep.subr.mxu0 0.0
  %731 = vmatpush1.msra.mxu0 0.0
  %732 = vmatprep.mubr.f32.mxu0 0.0
  %733 = vmatmul.mubr.f32.gmra.mrb[0].mxu0 %v666
  %v734 = vpop.f32.mrb[0].mxu0
  %v735 = vadd.f32 0.0, %v734
  %v736 = vpop.f32.mrb[0].mxu0
  %737 = vdwg.mxu0
  %v738 = vadd.f32 %v662, %v735
  %v739 = vxor.u32 %v738, 2147483648
  %v740 = vmul.f32 %v739, 1.442695
  %v741 = vpow.pop %v740
  %v742 = vadd.f32 %v741, 1.0
  %v743 = vrcp.pop %v742
  %v744 = vmul.f32 1.0, %v743
  %v745 = vtanh.pop %v738
  %v746 = vmul.f32 %v744, %v653
  %748 = vrot.lane.b32.xlu0 %v745, 32
  %v749 = vpop.permute.xlu0 %748
  %v751 = vmul.f32 %v744, %v749
  %753 = vrot.lane.b32.xlu0 %v751, 32
  %v754 = vpop.permute.xlu0 %753
  %v756 = vadd.f32 %v746, %v754
  %v757 = vtanh.pop %v756
  %759 = vrot.lane.b32.xlu0 %v757, 32
  %v760 = vpop.permute.xlu0 %759
  %v762 = vmul.f32 %v744, %v760
  %s763 = scalar_lea.vmem %s0, 56
  %v764 = vld [vmem:[%s763] sm:$0xff]
  %v765 = vadd.f32 %v764, %v39
  %767 = vrot.lane.b32.xlu0 %v762, 64
  %v768 = vpop.permute.xlu0 %767
  %v769 = vsel %vm42, %v768, 0
  %771 = vmatprep.subr.mxu0 0.0
  %772 = vmatpush1.msra.mxu0 %v27
  %773 = vmatprep.subr.mxu0 0.0
  %774 = vmatpush1.msra.mxu0 %v28
  %775 = vmatprep.subr.mxu0 0.0
  %776 = vmatpush1.msra.mxu0 %v29
  %777 = vmatprep.subr.mxu0 0.0
  %778 = vmatpush1.msra.mxu0 %v30
  %779 = vmatprep.subr.mxu0 0.0
  %780 = vmatpush1.msra.mxu0 0.0
  %781 = vmatprep.subr.mxu0 0.0
  %782 = vmatpush1.msra.mxu0 0.0
  %783 = vmatprep.subr.mxu0 0.0
  %784 = vmatpush1.msra.mxu0 0.0
  %785 = vmatprep.subr.mxu0 0.0
  %786 = vmatpush1.msra.mxu0 0.0
  %787 = vmatprep.subr.mxu0 0.0
  %788 = vmatpush1.msra.mxu0 0.0
  %789 = vmatprep.subr.mxu0 0.0
  %790 = vmatpush1.msra.mxu0 0.0
  %791 = vmatprep.subr.mxu0 0.0
  %792 = vmatpush1.msra.mxu0 0.0
  %793 = vmatprep.subr.mxu0 0.0
  %794 = vmatpush1.msra.mxu0 0.0
  %795 = vmatprep.subr.mxu0 0.0
  %796 = vmatpush1.msra.mxu0 0.0
  %797 = vmatprep.subr.mxu0 0.0
  %798 = vmatpush1.msra.mxu0 0.0
  %799 = vmatprep.subr.mxu0 0.0
  %800 = vmatpush1.msra.mxu0 0.0
  %801 = vmatprep.subr.mxu0 0.0
  %802 = vmatpush1.msra.mxu0 0.0
  %803 = vmatprep.subr.mxu0 0.0
  %804 = vmatpush1.msra.mxu0 0.0
  %805 = vmatprep.subr.mxu0 0.0
  %806 = vmatpush1.msra.mxu0 0.0
  %807 = vmatprep.subr.mxu0 0.0
  %808 = vmatpush1.msra.mxu0 0.0
  %809 = vmatprep.subr.mxu0 0.0
  %810 = vmatpush1.msra.mxu0 0.0
  %811 = vmatprep.subr.mxu0 0.0
  %812 = vmatpush1.msra.mxu0 0.0
  %813 = vmatprep.subr.mxu0 0.0
  %814 = vmatpush1.msra.mxu0 0.0
  %815 = vmatprep.subr.mxu0 0.0
  %816 = vmatpush1.msra.mxu0 0.0
  %817 = vmatprep.subr.mxu0 0.0
  %818 = vmatpush1.msra.mxu0 0.0
  %819 = vmatprep.subr.mxu0 0.0
  %820 = vmatpush1.msra.mxu0 0.0
  %821 = vmatprep.subr.mxu0 0.0
  %822 = vmatpush1.msra.mxu0 0.0
  %823 = vmatprep.subr.mxu0 0.0
  %824 = vmatpush1.msra.mxu0 0.0
  %825 = vmatprep.subr.mxu0 0.0
  %826 = vmatpush1.msra.mxu0 0.0
  %827 = vmatprep.subr.mxu0 0.0
  %828 = vmatpush1.msra.mxu0 0.0
  %829 = vmatprep.subr.mxu0 0.0
  %830 = vmatpush1.msra.mxu0 0.0
  %831 = vmatprep.subr.mxu0 0.0
  %832 = vmatpush1.msra.mxu0 0.0
  %833 = vmatprep.subr.mxu0 0.0
  %834 = vmatpush1.msra.mxu0 0.0
  %835 = vmatprep.mubr.f32.mxu0 0.0
  %836 = vmatmul.mubr.f32.gmra.mrb[0].mxu0 %v769
  %v837 = vpop.f32.mrb[0].mxu0
  %v838 = vadd.f32 0.0, %v837
  %v839 = vpop.f32.mrb[0].mxu0
  %840 = vdwg.mxu0
  %v841 = vadd.f32 %v765, %v838
  %v842 = vxor.u32 %v841, 2147483648
  %v843 = vmul.f32 %v842, 1.442695
  %v844 = vpow.pop %v843
  %v845 = vadd.f32 %v844, 1.0
  %v846 = vrcp.pop %v845
  %v847 = vmul.f32 1.0, %v846
  %v848 = vtanh.pop %v841
  %v849 = vmul.f32 %v847, %v756
  %851 = vrot.lane.b32.xlu0 %v848, 32
  %v852 = vpop.permute.xlu0 %851
  %v854 = vmul.f32 %v847, %v852
  %856 = vrot.lane.b32.xlu0 %v854, 32
  %v857 = vpop.permute.xlu0 %856
  %v859 = vadd.f32 %v849, %v857
  %v860 = vtanh.pop %v859
  %862 = vrot.lane.b32.xlu0 %v860, 32
  %v863 = vpop.permute.xlu0 %862
  %v865 = vmul.f32 %v847, %v863
  %867 = vrot.lane.b32.xlu0 %v865, 64
  %v868 = vpop.permute.xlu0 %867
  %870 = vst.msk [vmem:[#allocation2] sm:$0xff] %vm42, %v868
  %872 = vrot.lane.b32.xlu0 %v859, 96
  %v873 = vpop.permute.xlu0 %872
  %875 = vst.msk [vmem:[#allocation3] sm:$0xff] %vm42, %v873
  // Predicated region
  $region26: #{lstm_state_selector_forward.3} parent=0 // pred_check
    %p876 = pneg %p20
  $region27: #{lstm_state_selector_forward.3} parent=0 // pred_check_branch
    %878 = sbr.rel (%p876) target = $region29
  $region28: #{lstm_state_selector_forward.3} parent=0 // pred_region
    %v879 = vld [vmem:[#allocation2] sm:$0xff]
    %v880 = vld [vmem:[%s3] sm:$0xff]
    %v881 = vld [vmem:[%s3 + $0x8] sm:$0xff]
    %v882 = vld [vmem:[%s3 + $0x10] sm:$0xff]
    %v883 = vld [vmem:[%s3 + $0x18] sm:$0xff]
    %v884 = vld [vmem:[%s4] sm:$0x1]
    %v886 = vlaneseq
    %v887 = vshrl.u32 %v886, 7
    %v888 = vsub.s32 0, %v887
    %v889 = vrot.slane %v884, %v888
    %v892 = vsel %vm42, %v879, 0
    %894 = vmatprep.subr.mxu0 0.0
    %895 = vmatpush1.msra.mxu0 %v880
    %896 = vmatprep.subr.mxu0 0.0
    %897 = vmatpush1.msra.mxu0 %v881
    %898 = vmatprep.subr.mxu0 0.0
    %899 = vmatpush1.msra.mxu0 %v882
    %900 = vmatprep.subr.mxu0 0.0
    %901 = vmatpush1.msra.mxu0 %v883
    %902 = vmatprep.subr.mxu0 0.0
    %903 = vmatpush1.msra.mxu0 0.0
    %904 = vmatprep.subr.mxu0 0.0
    %905 = vmatpush1.msra.mxu0 0.0
    %906 = vmatprep.subr.mxu0 0.0
    %907 = vmatpush1.msra.mxu0 0.0
    %908 = vmatprep.subr.mxu0 0.0
    %909 = vmatpush1.msra.mxu0 0.0
    %910 = vmatprep.subr.mxu0 0.0
    %911 = vmatpush1.msra.mxu0 0.0
    %912 = vmatprep.subr.mxu0 0.0
    %913 = vmatpush1.msra.mxu0 0.0
    %914 = vmatprep.subr.mxu0 0.0
    %915 = vmatpush1.msra.mxu0 0.0
    %916 = vmatprep.subr.mxu0 0.0
    %917 = vmatpush1.msra.mxu0 0.0
    %918 = vmatprep.subr.mxu0 0.0
    %919 = vmatpush1.msra.mxu0 0.0
    %920 = vmatprep.subr.mxu0 0.0
    %921 = vmatpush1.msra.mxu0 0.0
    %922 = vmatprep.subr.mxu0 0.0
    %923 = vmatpush1.msra.mxu0 0.0
    %924 = vmatprep.subr.mxu0 0.0
    %925 = vmatpush1.msra.mxu0 0.0
    %926 = vmatprep.subr.mxu0 0.0
    %927 = vmatpush1.msra.mxu0 0.0
    %928 = vmatprep.subr.mxu0 0.0
    %929 = vmatpush1.msra.mxu0 0.0
    %930 = vmatprep.subr.mxu0 0.0
    %931 = vmatpush1.msra.mxu0 0.0
    %932 = vmatprep.subr.mxu0 0.0
    %933 = vmatpush1.msra.mxu0 0.0
    %934 = vmatprep.subr.mxu0 0.0
    %935 = vmatpush1.msra.mxu0 0.0
    %936 = vmatprep.subr.mxu0 0.0
    %937 = vmatpush1.msra.mxu0 0.0
    %938 = vmatprep.subr.mxu0 0.0
    %939 = vmatpush1.msra.mxu0 0.0
    %940 = vmatprep.subr.mxu0 0.0
    %941 = vmatpush1.msra.mxu0 0.0
    %942 = vmatprep.subr.mxu0 0.0
    %943 = vmatpush1.msra.mxu0 0.0
    %944 = vmatprep.subr.mxu0 0.0
    %945 = vmatpush1.msra.mxu0 0.0
    %946 = vmatprep.subr.mxu0 0.0
    %947 = vmatpush1.msra.mxu0 0.0
    %948 = vmatprep.subr.mxu0 0.0
    %949 = vmatpush1.msra.mxu0 0.0
    %950 = vmatprep.subr.mxu0 0.0
    %951 = vmatpush1.msra.mxu0 0.0
    %952 = vmatprep.subr.mxu0 0.0
    %953 = vmatpush1.msra.mxu0 0.0
    %954 = vmatprep.subr.mxu0 0.0
    %955 = vmatpush1.msra.mxu0 0.0
    %956 = vmatprep.subr.mxu0 0.0
    %957 = vmatpush1.msra.mxu0 0.0
    %958 = vmatprep.mubr.f32.mxu0 0.0
    %959 = vmatmul.mubr.f32.gmra.mrb[0].mxu0 %v892
    %v960 = vpop.f32.mrb[0].mxu0
    %v961 = vadd.f32 %v889, %v960
    %v962 = vpop.f32.mrb[0].mxu0
    %963 = vdwg.mxu0
    %vm964 = vcmask 31744
    %965 = vst.msk [vmem:[%s5] sm:$0xff] %vm964, %v961
  $region29: #{lstm_state_selector_forward.3} parent=0 // pred_fallthru
    _
  // Predicated region
  $region30: #{lstm_state_selector_forward.3} parent=0 // pred_check
    _
  $region31: #{lstm_state_selector_forward.3} parent=0 // pred_check_branch
    %967 = sbr.rel (0) target = $region33
  $region32: #{lstm_state_selector_forward.3} parent=0 // pred_region
    _
  $region33: #{lstm_state_selector_forward.3} parent=0 // pred_fallthru
    _
  // Predicated region
  $region34: #{lstm_state_selector_forward.3} parent=0 // pred_check
    _
  $region35: #{lstm_state_selector_forward.3} parent=0 // pred_check_branch
    %969 = sbr.rel (0) target = $region37
  $region36: #{lstm_state_selector_forward.3} parent=0 // pred_region
    _
  $region37: #{lstm_state_selector_forward.3} parent=0 // pred_fallthru
    _

// kernel: lstm_state_selector_forward.2
$region0: #{lstm_state_selector_forward.2}
  #allocation0 [shape = 'u32[]', space=smem, size = 0x4, offset = 0x4, fixed_abs, tag = 'smem constant byte address 0x4 - core index']
  #allocation1 [shape = 'u32[144,128]{1,0:T(1,128)}', space=vmem, size = 0x12000, scoped, tag = 'internal scratch']
  #allocation2 [shape = 'f32[8,32]{1,0:T(8,128)}', space=vmem, size = 0x1000, scoped, tag = 'scratch operand']
  #allocation3 [shape = 'f32[8,32]{1,0:T(8,128)}', space=vmem, size = 0x1000, scoped, tag = 'scratch operand']
  %s0 = inlined_call_operand.vmem [shape: f32[8,8,128], index: 0, kind: input, shape index: {}]
  %s1 = inlined_call_operand.vmem [shape: f32[32,128], index: 1, kind: input, shape index: {}]
  %s2 = inlined_call_operand.vmem [shape: f32[1,128], index: 2, kind: input, shape index: {}]
  %s3 = inlined_call_operand.vmem [shape: f32[32,128], index: 3, kind: input, shape index: {}]
  %s4 = inlined_call_operand.vmem [shape: f32[8,8,128], index: 4, kind: output, shape index: {}]
  %s5 = sld [smem:[#allocation0]]
  $region30: #{lstm_state_selector_forward.2} parent=0
    _
  %s7 = ssub.s32 1, %s5
  %s8 = scalar_select 0, %s7, %s5
  // Predicated region
  $region2: #{lstm_state_selector_forward.2} parent=0 // pred_check
    _
  $region3: #{lstm_state_selector_forward.2} parent=0 // pred_check_branch
    %10 = sbr.rel (0) target = $region5
  $region4: #{lstm_state_selector_forward.2} parent=0 // pred_region
    _
  $region5: #{lstm_state_selector_forward.2} parent=0 // pred_fallthru
    _
  // Predicated region
  $region6: #{lstm_state_selector_forward.2} parent=0 // pred_check
    _
  $region7: #{lstm_state_selector_forward.2} parent=0 // pred_check_branch
    %12 = sbr.rel (0) target = $region9
  $region8: #{lstm_state_selector_forward.2} parent=0 // pred_region
    _
  $region9: #{lstm_state_selector_forward.2} parent=0 // pred_fallthru
    _
  // Predicated region
  $region10: #{lstm_state_selector_forward.2} parent=0 // pred_check
    _
  $region11: #{lstm_state_selector_forward.2} parent=0 // pred_check_branch
    %14 = sbr.rel (0) target = $region13
  $region12: #{lstm_state_selector_forward.2} parent=0 // pred_region
    _
  $region13: #{lstm_state_selector_forward.2} parent=0 // pred_fallthru
    _
  // Predicated region
  $region14: #{lstm_state_selector_forward.2} parent=0 // pred_check
    _
  $region15: #{lstm_state_selector_forward.2} parent=0 // pred_check_branch
    %16 = sbr.rel (0) target = $region17
  $region16: #{lstm_state_selector_forward.2} parent=0 // pred_region
    _
  $region17: #{lstm_state_selector_forward.2} parent=0 // pred_fallthru
    _
  %p17 = scmp.eq.s32.totalorder 0, 0
  // Predicated region
  $region18: #{lstm_state_selector_forward.2} parent=0 // pred_check
    %p18 = pneg %p17
  $region19: #{lstm_state_selector_forward.2} parent=0 // pred_check_branch
    %20 = sbr.rel (%p18) target = $region21
  $region20: #{lstm_state_selector_forward.2} parent=0 // pred_region
    %vm21 = vcmask 261120
    %22 = vst.msk [vmem:[#allocation2] sm:$0xff] %vm21, 0.0
    %23 = vst.msk [vmem:[#allocation3] sm:$0xff] %vm21, 0.0
  $region21: #{lstm_state_selector_forward.2} parent=0 // pred_fallthru
    _
  %v24 = vld [vmem:[%s3] sm:$0xff]
  %v25 = vld [vmem:[%s3 + $0x8] sm:$0xff]
  %v26 = vld [vmem:[%s3 + $0x10] sm:$0xff]
  %v27 = vld [vmem:[%s3 + $0x18] sm:$0xff]
  %v28 = vld [vmem:[%s1] sm:$0xff]
  %v29 = vld [vmem:[%s1 + $0x8] sm:$0xff]
  %v30 = vld [vmem:[%s1 + $0x10] sm:$0xff]
  %v31 = vld [vmem:[%s1 + $0x18] sm:$0xff]
  %v32 = vld [vmem:[%s2] sm:$0x1]
  %v33 = vld [vmem:[#allocation2] sm:$0xff]
  %v34 = vld [vmem:[#allocation3] sm:$0xff]
  %v35 = vld [vmem:[%s0] sm:$0xff]
  %v37 = vlaneseq
  %v38 = vshrl.u32 %v37, 7
  %v39 = vsub.s32 0, %v38
  %v40 = vrot.slane %v32, %v39
  %v42 = vadd.f32 %v35, %v40
  %vm43 = vcmask 261120
  %v45 = vsel %vm43, %v33, 0
  %47 = vmatprep.subr.mxu0 0.0
  %48 = vmatpush1.msra.mxu0 %v28
  %49 = vmatprep.subr.mxu0 0.0
  %50 = vmatpush1.msra.mxu0 %v29
  %51 = vmatprep.subr.mxu0 0.0
  %52 = vmatpush1.msra.mxu0 %v30
  %53 = vmatprep.subr.mxu0 0.0
  %54 = vmatpush1.msra.mxu0 %v31
  %55 = vmatprep.subr.mxu0 0.0
  %56 = vmatpush1.msra.mxu0 0.0
  %57 = vmatprep.subr.mxu0 0.0
  %58 = vmatpush1.msra.mxu0 0.0
  %59 = vmatprep.subr.mxu0 0.0
  %60 = vmatpush1.msra.mxu0 0.0
  %61 = vmatprep.subr.mxu0 0.0
  %62 = vmatpush1.msra.mxu0 0.0
  %63 = vmatprep.subr.mxu0 0.0
  %64 = vmatpush1.msra.mxu0 0.0
  %65 = vmatprep.subr.mxu0 0.0
  %66 = vmatpush1.msra.mxu0 0.0
  %67 = vmatprep.subr.mxu0 0.0
  %68 = vmatpush1.msra.mxu0 0.0
  %69 = vmatprep.subr.mxu0 0.0
  %70 = vmatpush1.msra.mxu0 0.0
  %71 = vmatprep.subr.mxu0 0.0
  %72 = vmatpush1.msra.mxu0 0.0
  %73 = vmatprep.subr.mxu0 0.0
  %74 = vmatpush1.msra.mxu0 0.0
  %75 = vmatprep.subr.mxu0 0.0
  %76 = vmatpush1.msra.mxu0 0.0
  %77 = vmatprep.subr.mxu0 0.0
  %78 = vmatpush1.msra.mxu0 0.0
  %79 = vmatprep.subr.mxu0 0.0
  %80 = vmatpush1.msra.mxu0 0.0
  %81 = vmatprep.subr.mxu0 0.0
  %82 = vmatpush1.msra.mxu0 0.0
  %83 = vmatprep.subr.mxu0 0.0
  %84 = vmatpush1.msra.mxu0 0.0
  %85 = vmatprep.subr.mxu0 0.0
  %86 = vmatpush1.msra.mxu0 0.0
  %87 = vmatprep.subr.mxu0 0.0
  %88 = vmatpush1.msra.mxu0 0.0
  %89 = vmatprep.subr.mxu0 0.0
  %90 = vmatpush1.msra.mxu0 0.0
  %91 = vmatprep.subr.mxu0 0.0
  %92 = vmatpush1.msra.mxu0 0.0
  %93 = vmatprep.subr.mxu0 0.0
  %94 = vmatpush1.msra.mxu0 0.0
  %95 = vmatprep.subr.mxu0 0.0
  %96 = vmatpush1.msra.mxu0 0.0
  %97 = vmatprep.subr.mxu0 0.0
  %98 = vmatpush1.msra.mxu0 0.0
  %99 = vmatprep.subr.mxu0 0.0
  %100 = vmatpush1.msra.mxu0 0.0
  %101 = vmatprep.subr.mxu0 0.0
  %102 = vmatpush1.msra.mxu0 0.0
  %103 = vmatprep.subr.mxu0 0.0
  %104 = vmatpush1.msra.mxu0 0.0
  %105 = vmatprep.subr.mxu0 0.0
  %106 = vmatpush1.msra.mxu0 0.0
  %107 = vmatprep.subr.mxu0 0.0
  %108 = vmatpush1.msra.mxu0 0.0
  %109 = vmatprep.subr.mxu0 0.0
  %110 = vmatpush1.msra.mxu0 0.0
  %111 = vmatprep.mubr.f32.mxu0 0.0
  %112 = vmatmul.mubr.f32.gmra.mrb[0].mxu0 %v45
  %v113 = vpop.f32.mrb[0].mxu0
  %v114 = vadd.f32 0.0, %v113
  %v115 = vpop.f32.mrb[0].mxu0
  %116 = vdwg.mxu0
  %v117 = vadd.f32 %v42, %v114
  %v118 = vxor.u32 %v117, 2147483648
  %v119 = vmul.f32 %v118, 1.442695
  %v120 = vpow.pop %v119
  %v121 = vadd.f32 %v120, 1.0
  %v122 = vrcp.pop %v121
  %v123 = vmul.f32 1.0, %v122
  %v124 = vtanh.pop %v117
  %126 = vrot.lane.b32.xlu0 %v34, 32
  %v127 = vpop.permute.xlu0 %126
  %v129 = vmul.f32 %v123, %v127
  %131 = vrot.lane.b32.xlu0 %v124, 32
  %v132 = vpop.permute.xlu0 %131
  %v134 = vmul.f32 %v123, %v132
  %136 = vrot.lane.b32.xlu0 %v134, 32
  %v137 = vpop.permute.xlu0 %136
  %v139 = vadd.f32 %v129, %v137
  %v140 = vtanh.pop %v139
  %142 = vrot.lane.b32.xlu0 %v140, 32
  %v143 = vpop.permute.xlu0 %142
  %v145 = vmul.f32 %v123, %v143
  %147 = vrot.lane.b32.xlu0 %v145, 64
  %v148 = vpop.permute.xlu0 %147
  %v149 = vsel %vm43, %v148, 0
  %151 = vmatprep.subr.mxu0 0.0
  %152 = vmatpush1.msra.mxu0 %v24
  %153 = vmatprep.subr.mxu0 0.0
  %154 = vmatpush1.msra.mxu0 %v25
  %155 = vmatprep.subr.mxu0 0.0
  %156 = vmatpush1.msra.mxu0 %v26
  %157 = vmatprep.subr.mxu0 0.0
  %158 = vmatpush1.msra.mxu0 %v27
  %159 = vmatprep.subr.mxu0 0.0
  %160 = vmatpush1.msra.mxu0 0.0
  %161 = vmatprep.subr.mxu0 0.0
  %162 = vmatpush1.msra.mxu0 0.0
  %163 = vmatprep.subr.mxu0 0.0
  %164 = vmatpush1.msra.mxu0 0.0
  %165 = vmatprep.subr.mxu0 0.0
  %166 = vmatpush1.msra.mxu0 0.0
  %167 = vmatprep.subr.mxu0 0.0
  %168 = vmatpush1.msra.mxu0 0.0
  %169 = vmatprep.subr.mxu0 0.0
  %170 = vmatpush1.msra.mxu0 0.0
  %171 = vmatprep.subr.mxu0 0.0
  %172 = vmatpush1.msra.mxu0 0.0
  %173 = vmatprep.subr.mxu0 0.0
  %174 = vmatpush1.msra.mxu0 0.0
  %175 = vmatprep.subr.mxu0 0.0
  %176 = vmatpush1.msra.mxu0 0.0
  %177 = vmatprep.subr.mxu0 0.0
  %178 = vmatpush1.msra.mxu0 0.0
  %179 = vmatprep.subr.mxu0 0.0
  %180 = vmatpush1.msra.mxu0 0.0
  %181 = vmatprep.subr.mxu0 0.0
  %182 = vmatpush1.msra.mxu0 0.0
  %183 = vmatprep.subr.mxu0 0.0
  %184 = vmatpush1.msra.mxu0 0.0
  %185 = vmatprep.subr.mxu0 0.0
  %186 = vmatpush1.msra.mxu0 0.0
  %187 = vmatprep.subr.mxu0 0.0
  %188 = vmatpush1.msra.mxu0 0.0
  %189 = vmatprep.subr.mxu0 0.0
  %190 = vmatpush1.msra.mxu0 0.0
  %191 = vmatprep.subr.mxu0 0.0
  %192 = vmatpush1.msra.mxu0 0.0
  %193 = vmatprep.subr.mxu0 0.0
  %194 = vmatpush1.msra.mxu0 0.0
  %195 = vmatprep.subr.mxu0 0.0
  %196 = vmatpush1.msra.mxu0 0.0
  %197 = vmatprep.subr.mxu0 0.0
  %198 = vmatpush1.msra.mxu0 0.0
  %199 = vmatprep.subr.mxu0 0.0
  %200 = vmatpush1.msra.mxu0 0.0
  %201 = vmatprep.subr.mxu0 0.0
  %202 = vmatpush1.msra.mxu0 0.0
  %203 = vmatprep.subr.mxu0 0.0
  %204 = vmatpush1.msra.mxu0 0.0
  %205 = vmatprep.subr.mxu0 0.0
  %206 = vmatpush1.msra.mxu0 0.0
  %207 = vmatprep.subr.mxu0 0.0
  %208 = vmatpush1.msra.mxu0 0.0
  %209 = vmatprep.subr.mxu0 0.0
  %210 = vmatpush1.msra.mxu0 0.0
  %211 = vmatprep.subr.mxu0 0.0
  %212 = vmatpush1.msra.mxu0 0.0
  %213 = vmatprep.subr.mxu0 0.0
  %214 = vmatpush1.msra.mxu0 0.0
  %215 = vmatprep.mubr.f32.mxu0 0.0
  %216 = vmatmul.mubr.f32.gmra.mrb[0].mxu0 %v149
  %v217 = vpop.f32.mrb[0].mxu0
  %v218 = vadd.f32 0.0, %v217
  %v219 = vpop.f32.mrb[0].mxu0
  %220 = vdwg.mxu0
  %221 = vst [vmem:[%s4] sm:$0xff] %v218
  %s222 = scalar_lea.vmem %s0, 8
  %v223 = vld [vmem:[%s222] sm:$0xff]
  %v224 = vadd.f32 %v223, %v40
  %225 = vmatprep.subr.mxu0 0.0
  %226 = vmatpush1.msra.mxu0 %v28
  %227 = vmatprep.subr.mxu0 0.0
  %228 = vmatpush1.msra.mxu0 %v29
  %229 = vmatprep.subr.mxu0 0.0
  %230 = vmatpush1.msra.mxu0 %v30
  %231 = vmatprep.subr.mxu0 0.0
  %232 = vmatpush1.msra.mxu0 %v31
  %233 = vmatprep.subr.mxu0 0.0
  %234 = vmatpush1.msra.mxu0 0.0
  %235 = vmatprep.subr.mxu0 0.0
  %236 = vmatpush1.msra.mxu0 0.0
  %237 = vmatprep.subr.mxu0 0.0
  %238 = vmatpush1.msra.mxu0 0.0
  %239 = vmatprep.subr.mxu0 0.0
  %240 = vmatpush1.msra.mxu0 0.0
  %241 = vmatprep.subr.mxu0 0.0
  %242 = vmatpush1.msra.mxu0 0.0
  %243 = vmatprep.subr.mxu0 0.0
  %244 = vmatpush1.msra.mxu0 0.0
  %245 = vmatprep.subr.mxu0 0.0
  %246 = vmatpush1.msra.mxu0 0.0
  %247 = vmatprep.subr.mxu0 0.0
  %248 = vmatpush1.msra.mxu0 0.0
  %249 = vmatprep.subr.mxu0 0.0
  %250 = vmatpush1.msra.mxu0 0.0
  %251 = vmatprep.subr.mxu0 0.0
  %252 = vmatpush1.msra.mxu0 0.0
  %253 = vmatprep.subr.mxu0 0.0
  %254 = vmatpush1.msra.mxu0 0.0
  %255 = vmatprep.subr.mxu0 0.0
  %256 = vmatpush1.msra.mxu0 0.0
  %257 = vmatprep.subr.mxu0 0.0
  %258 = vmatpush1.msra.mxu0 0.0
  %259 = vmatprep.subr.mxu0 0.0
  %260 = vmatpush1.msra.mxu0 0.0
  %261 = vmatprep.subr.mxu0 0.0
  %262 = vmatpush1.msra.mxu0 0.0
  %263 = vmatprep.subr.mxu0 0.0
  %264 = vmatpush1.msra.mxu0 0.0
  %265 = vmatprep.subr.mxu0 0.0
  %266 = vmatpush1.msra.mxu0 0.0
  %267 = vmatprep.subr.mxu0 0.0
  %268 = vmatpush1.msra.mxu0 0.0
  %269 = vmatprep.subr.mxu0 0.0
  %270 = vmatpush1.msra.mxu0 0.0
  %271 = vmatprep.subr.mxu0 0.0
  %272 = vmatpush1.msra.mxu0 0.0
  %273 = vmatprep.subr.mxu0 0.0
  %274 = vmatpush1.msra.mxu0 0.0
  %275 = vmatprep.subr.mxu0 0.0
  %276 = vmatpush1.msra.mxu0 0.0
  %277 = vmatprep.subr.mxu0 0.0
  %278 = vmatpush1.msra.mxu0 0.0
  %279 = vmatprep.subr.mxu0 0.0
  %280 = vmatpush1.msra.mxu0 0.0
  %281 = vmatprep.subr.mxu0 0.0
  %282 = vmatpush1.msra.mxu0 0.0
  %283 = vmatprep.subr.mxu0 0.0
  %284 = vmatpush1.msra.mxu0 0.0
  %285 = vmatprep.subr.mxu0 0.0
  %286 = vmatpush1.msra.mxu0 0.0
  %287 = vmatprep.subr.mxu0 0.0
  %288 = vmatpush1.msra.mxu0 0.0
  %289 = vmatprep.mubr.f32.mxu0 0.0
  %290 = vmatmul.mubr.f32.gmra.mrb[0].mxu0 %v149
  %v291 = vpop.f32.mrb[0].mxu0
  %v292 = vadd.f32 0.0, %v291
  %v293 = vpop.f32.mrb[0].mxu0
  %294 = vdwg.mxu0
  %v295 = vadd.f32 %v224, %v292
  %v296 = vxor.u32 %v295, 2147483648
  %v297 = vmul.f32 %v296, 1.442695
  %v298 = vpow.pop %v297
  %v299 = vadd.f32 %v298, 1.0
  %v300 = vrcp.pop %v299
  %v301 = vmul.f32 1.0, %v300
  %v302 = vtanh.pop %v295
  %v303 = vmul.f32 %v301, %v139
  %305 = vrot.lane.b32.xlu0 %v302, 32
  %v306 = vpop.permute.xlu0 %305
  %v308 = vmul.f32 %v301, %v306
  %310 = vrot.lane.b32.xlu0 %v308, 32
  %v311 = vpop.permute.xlu0 %310
  %v313 = vadd.f32 %v303, %v311
  %v314 = vtanh.pop %v313
  %316 = vrot.lane.b32.xlu0 %v314, 32
  %v317 = vpop.permute.xlu0 %316
  %v319 = vmul.f32 %v301, %v317
  %321 = vrot.lane.b32.xlu0 %v319, 64
  %v322 = vpop.permute.xlu0 %321
  %v323 = vsel %vm43, %v322, 0
  %325 = vmatprep.subr.mxu0 0.0
  %326 = vmatpush1.msra.mxu0 %v24
  %327 = vmatprep.subr.mxu0 0.0
  %328 = vmatpush1.msra.mxu0 %v25
  %329 = vmatprep.subr.mxu0 0.0
  %330 = vmatpush1.msra.mxu0 %v26
  %331 = vmatprep.subr.mxu0 0.0
  %332 = vmatpush1.msra.mxu0 %v27
  %333 = vmatprep.subr.mxu0 0.0
  %334 = vmatpush1.msra.mxu0 0.0
  %335 = vmatprep.subr.mxu0 0.0
  %336 = vmatpush1.msra.mxu0 0.0
  %337 = vmatprep.subr.mxu0 0.0
  %338 = vmatpush1.msra.mxu0 0.0
  %339 = vmatprep.subr.mxu0 0.0
  %340 = vmatpush1.msra.mxu0 0.0
  %341 = vmatprep.subr.mxu0 0.0
  %342 = vmatpush1.msra.mxu0 0.0
  %343 = vmatprep.subr.mxu0 0.0
  %344 = vmatpush1.msra.mxu0 0.0
  %345 = vmatprep.subr.mxu0 0.0
  %346 = vmatpush1.msra.mxu0 0.0
  %347 = vmatprep.subr.mxu0 0.0
  %348 = vmatpush1.msra.mxu0 0.0
  %349 = vmatprep.subr.mxu0 0.0
  %350 = vmatpush1.msra.mxu0 0.0
  %351 = vmatprep.subr.mxu0 0.0
  %352 = vmatpush1.msra.mxu0 0.0
  %353 = vmatprep.subr.mxu0 0.0
  %354 = vmatpush1.msra.mxu0 0.0
  %355 = vmatprep.subr.mxu0 0.0
  %356 = vmatpush1.msra.mxu0 0.0
  %357 = vmatprep.subr.mxu0 0.0
  %358 = vmatpush1.msra.mxu0 0.0
  %359 = vmatprep.subr.mxu0 0.0
  %360 = vmatpush1.msra.mxu0 0.0
  %361 = vmatprep.subr.mxu0 0.0
  %362 = vmatpush1.msra.mxu0 0.0
  %363 = vmatprep.subr.mxu0 0.0
  %364 = vmatpush1.msra.mxu0 0.0
  %365 = vmatprep.subr.mxu0 0.0
  %366 = vmatpush1.msra.mxu0 0.0
  %367 = vmatprep.subr.mxu0 0.0
  %368 = vmatpush1.msra.mxu0 0.0
  %369 = vmatprep.subr.mxu0 0.0
  %370 = vmatpush1.msra.mxu0 0.0
  %371 = vmatprep.subr.mxu0 0.0
  %372 = vmatpush1.msra.mxu0 0.0
  %373 = vmatprep.subr.mxu0 0.0
  %374 = vmatpush1.msra.mxu0 0.0
  %375 = vmatprep.subr.mxu0 0.0
  %376 = vmatpush1.msra.mxu0 0.0
  %377 = vmatprep.subr.mxu0 0.0
  %378 = vmatpush1.msra.mxu0 0.0
  %379 = vmatprep.subr.mxu0 0.0
  %380 = vmatpush1.msra.mxu0 0.0
  %381 = vmatprep.subr.mxu0 0.0
  %382 = vmatpush1.msra.mxu0 0.0
  %383 = vmatprep.subr.mxu0 0.0
  %384 = vmatpush1.msra.mxu0 0.0
  %385 = vmatprep.subr.mxu0 0.0
  %386 = vmatpush1.msra.mxu0 0.0
  %387 = vmatprep.subr.mxu0 0.0
  %388 = vmatpush1.msra.mxu0 0.0
  %389 = vmatprep.mubr.f32.mxu0 0.0
  %390 = vmatmul.mubr.f32.gmra.mrb[0].mxu0 %v323
  %v391 = vpop.f32.mrb[0].mxu0
  %v392 = vadd.f32 0.0, %v391
  %v393 = vpop.f32.mrb[0].mxu0
  %394 = vdwg.mxu0
  %s395 = scalar_lea.vmem %s4, 8
  %396 = vst [vmem:[%s395] sm:$0xff] %v392
  %s397 = scalar_lea.vmem %s0, 16
  %v398 = vld [vmem:[%s397] sm:$0xff]
  %v399 = vadd.f32 %v398, %v40
  %400 = vmatprep.subr.mxu0 0.0
  %401 = vmatpush1.msra.mxu0 %v28
  %402 = vmatprep.subr.mxu0 0.0
  %403 = vmatpush1.msra.mxu0 %v29
  %404 = vmatprep.subr.mxu0 0.0
  %405 = vmatpush1.msra.mxu0 %v30
  %406 = vmatprep.subr.mxu0 0.0
  %407 = vmatpush1.msra.mxu0 %v31
  %408 = vmatprep.subr.mxu0 0.0
  %409 = vmatpush1.msra.mxu0 0.0
  %410 = vmatprep.subr.mxu0 0.0
  %411 = vmatpush1.msra.mxu0 0.0
  %412 = vmatprep.subr.mxu0 0.0
  %413 = vmatpush1.msra.mxu0 0.0
  %414 = vmatprep.subr.mxu0 0.0
  %415 = vmatpush1.msra.mxu0 0.0
  %416 = vmatprep.subr.mxu0 0.0
  %417 = vmatpush1.msra.mxu0 0.0
  %418 = vmatprep.subr.mxu0 0.0
  %419 = vmatpush1.msra.mxu0 0.0
  %420 = vmatprep.subr.mxu0 0.0
  %421 = vmatpush1.msra.mxu0 0.0
  %422 = vmatprep.subr.mxu0 0.0
  %423 = vmatpush1.msra.mxu0 0.0
  %424 = vmatprep.subr.mxu0 0.0
  %425 = vmatpush1.msra.mxu0 0.0
  %426 = vmatprep.subr.mxu0 0.0
  %427 = vmatpush1.msra.mxu0 0.0
  %428 = vmatprep.subr.mxu0 0.0
  %429 = vmatpush1.msra.mxu0 0.0
  %430 = vmatprep.subr.mxu0 0.0
  %431 = vmatpush1.msra.mxu0 0.0
  %432 = vmatprep.subr.mxu0 0.0
  %433 = vmatpush1.msra.mxu0 0.0
  %434 = vmatprep.subr.mxu0 0.0
  %435 = vmatpush1.msra.mxu0 0.0
  %436 = vmatprep.subr.mxu0 0.0
  %437 = vmatpush1.msra.mxu0 0.0
  %438 = vmatprep.subr.mxu0 0.0
  %439 = vmatpush1.msra.mxu0 0.0
  %440 = vmatprep.subr.mxu0 0.0
  %441 = vmatpush1.msra.mxu0 0.0
  %442 = vmatprep.subr.mxu0 0.0
  %443 = vmatpush1.msra.mxu0 0.0
  %444 = vmatprep.subr.mxu0 0.0
  %445 = vmatpush1.msra.mxu0 0.0
  %446 = vmatprep.subr.mxu0 0.0
  %447 = vmatpush1.msra.mxu0 0.0
  %448 = vmatprep.subr.mxu0 0.0
  %449 = vmatpush1.msra.mxu0 0.0
  %450 = vmatprep.subr.mxu0 0.0
  %451 = vmatpush1.msra.mxu0 0.0
  %452 = vmatprep.subr.mxu0 0.0
  %453 = vmatpush1.msra.mxu0 0.0
  %454 = vmatprep.subr.mxu0 0.0
  %455 = vmatpush1.msra.mxu0 0.0
  %456 = vmatprep.subr.mxu0 0.0
  %457 = vmatpush1.msra.mxu0 0.0
  %458 = vmatprep.subr.mxu0 0.0
  %459 = vmatpush1.msra.mxu0 0.0
  %460 = vmatprep.subr.mxu0 0.0
  %461 = vmatpush1.msra.mxu0 0.0
  %462 = vmatprep.subr.mxu0 0.0
  %463 = vmatpush1.msra.mxu0 0.0
  %464 = vmatprep.mubr.f32.mxu0 0.0
  %465 = vmatmul.mubr.f32.gmra.mrb[0].mxu0 %v323
  %v466 = vpop.f32.mrb[0].mxu0
  %v467 = vadd.f32 0.0, %v466
  %v468 = vpop.f32.mrb[0].mxu0
  %469 = vdwg.mxu0
  %v470 = vadd.f32 %v399, %v467
  %v471 = vxor.u32 %v470, 2147483648
  %v472 = vmul.f32 %v471, 1.442695
  %v473 = vpow.pop %v472
  %v474 = vadd.f32 %v473, 1.0
  %v475 = vrcp.pop %v474
  %v476 = vmul.f32 1.0, %v475
  %v477 = vtanh.pop %v470
  %v478 = vmul.f32 %v476, %v313
  %480 = vrot.lane.b32.xlu0 %v477, 32
  %v481 = vpop.permute.xlu0 %480
  %v483 = vmul.f32 %v476, %v481
  %485 = vrot.lane.b32.xlu0 %v483, 32
  %v486 = vpop.permute.xlu0 %485
  %v488 = vadd.f32 %v478, %v486
  %v489 = vtanh.pop %v488
  %491 = vrot.lane.b32.xlu0 %v489, 32
  %v492 = vpop.permute.xlu0 %491
  %v494 = vmul.f32 %v476, %v492
  %496 = vrot.lane.b32.xlu0 %v494, 64
  %v497 = vpop.permute.xlu0 %496
  %v498 = vsel %vm43, %v497, 0
  %500 = vmatprep.subr.mxu0 0.0
  %501 = vmatpush1.msra.mxu0 %v24
  %502 = vmatprep.subr.mxu0 0.0
  %503 = vmatpush1.msra.mxu0 %v25
  %504 = vmatprep.subr.mxu0 0.0
  %505 = vmatpush1.msra.mxu0 %v26
  %506 = vmatprep.subr.mxu0 0.0
  %507 = vmatpush1.msra.mxu0 %v27
  %508 = vmatprep.subr.mxu0 0.0
  %509 = vmatpush1.msra.mxu0 0.0
  %510 = vmatprep.subr.mxu0 0.0
  %511 = vmatpush1.msra.mxu0 0.0
  %512 = vmatprep.subr.mxu0 0.0
  %513 = vmatpush1.msra.mxu0 0.0
  %514 = vmatprep.subr.mxu0 0.0
  %515 = vmatpush1.msra.mxu0 0.0
  %516 = vmatprep.subr.mxu0 0.0
  %517 = vmatpush1.msra.mxu0 0.0
  %518 = vmatprep.subr.mxu0 0.0
  %519 = vmatpush1.msra.mxu0 0.0
  %520 = vmatprep.subr.mxu0 0.0
  %521 = vmatpush1.msra.mxu0 0.0
  %522 = vmatprep.subr.mxu0 0.0
  %523 = vmatpush1.msra.mxu0 0.0
  %524 = vmatprep.subr.mxu0 0.0
  %525 = vmatpush1.msra.mxu0 0.0
  %526 = vmatprep.subr.mxu0 0.0
  %527 = vmatpush1.msra.mxu0 0.0
  %528 = vmatprep.subr.mxu0 0.0
  %529 = vmatpush1.msra.mxu0 0.0
  %530 = vmatprep.subr.mxu0 0.0
  %531 = vmatpush1.msra.mxu0 0.0
  %532 = vmatprep.subr.mxu0 0.0
  %533 = vmatpush1.msra.mxu0 0.0
  %534 = vmatprep.subr.mxu0 0.0
  %535 = vmatpush1.msra.mxu0 0.0
  %536 = vmatprep.subr.mxu0 0.0
  %537 = vmatpush1.msra.mxu0 0.0
  %538 = vmatprep.subr.mxu0 0.0
  %539 = vmatpush1.msra.mxu0 0.0
  %540 = vmatprep.subr.mxu0 0.0
  %541 = vmatpush1.msra.mxu0 0.0
  %542 = vmatprep.subr.mxu0 0.0
  %543 = vmatpush1.msra.mxu0 0.0
  %544 = vmatprep.subr.mxu0 0.0
  %545 = vmatpush1.msra.mxu0 0.0
  %546 = vmatprep.subr.mxu0 0.0
  %547 = vmatpush1.msra.mxu0 0.0
  %548 = vmatprep.subr.mxu0 0.0
  %549 = vmatpush1.msra.mxu0 0.0
  %550 = vmatprep.subr.mxu0 0.0
  %551 = vmatpush1.msra.mxu0 0.0
  %552 = vmatprep.subr.mxu0 0.0
  %553 = vmatpush1.msra.mxu0 0.0
  %554 = vmatprep.subr.mxu0 0.0
  %555 = vmatpush1.msra.mxu0 0.0
  %556 = vmatprep.subr.mxu0 0.0
  %557 = vmatpush1.msra.mxu0 0.0
  %558 = vmatprep.subr.mxu0 0.0
  %559 = vmatpush1.msra.mxu0 0.0
  %560 = vmatprep.subr.mxu0 0.0
  %561 = vmatpush1.msra.mxu0 0.0
  %562 = vmatprep.subr.mxu0 0.0
  %563 = vmatpush1.msra.mxu0 0.0
  %564 = vmatprep.mubr.f32.mxu0 0.0
  %565 = vmatmul.mubr.f32.gmra.mrb[0].mxu0 %v498
  %v566 = vpop.f32.mrb[0].mxu0
  %v567 = vadd.f32 0.0, %v566
  %v568 = vpop.f32.mrb[0].mxu0
  %569 = vdwg.mxu0
  %s570 = scalar_lea.vmem %s4, 16
  %571 = vst [vmem:[%s570] sm:$0xff] %v567
  %s572 = scalar_lea.vmem %s0, 24
  %v573 = vld [vmem:[%s572] sm:$0xff]
  %v574 = vadd.f32 %v573, %v40
  %575 = vmatprep.subr.mxu0 0.0
  %576 = vmatpush1.msra.mxu0 %v28
  %577 = vmatprep.subr.mxu0 0.0
  %578 = vmatpush1.msra.mxu0 %v29
  %579 = vmatprep.subr.mxu0 0.0
  %580 = vmatpush1.msra.mxu0 %v30
  %581 = vmatprep.subr.mxu0 0.0
  %582 = vmatpush1.msra.mxu0 %v31
  %583 = vmatprep.subr.mxu0 0.0
  %584 = vmatpush1.msra.mxu0 0.0
  %585 = vmatprep.subr.mxu0 0.0
  %586 = vmatpush1.msra.mxu0 0.0
  %587 = vmatprep.subr.mxu0 0.0
  %588 = vmatpush1.msra.mxu0 0.0
  %589 = vmatprep.subr.mxu0 0.0
  %590 = vmatpush1.msra.mxu0 0.0
  %591 = vmatprep.subr.mxu0 0.0
  %592 = vmatpush1.msra.mxu0 0.0
  %593 = vmatprep.subr.mxu0 0.0
  %594 = vmatpush1.msra.mxu0 0.0
  %595 = vmatprep.subr.mxu0 0.0
  %596 = vmatpush1.msra.mxu0 0.0
  %597 = vmatprep.subr.mxu0 0.0
  %598 = vmatpush1.msra.mxu0 0.0
  %599 = vmatprep.subr.mxu0 0.0
  %600 = vmatpush1.msra.mxu0 0.0
  %601 = vmatprep.subr.mxu0 0.0
  %602 = vmatpush1.msra.mxu0 0.0
  %603 = vmatprep.subr.mxu0 0.0
  %604 = vmatpush1.msra.mxu0 0.0
  %605 = vmatprep.subr.mxu0 0.0
  %606 = vmatpush1.msra.mxu0 0.0
  %607 = vmatprep.subr.mxu0 0.0
  %608 = vmatpush1.msra.mxu0 0.0
  %609 = vmatprep.subr.mxu0 0.0
  %610 = vmatpush1.msra.mxu0 0.0
  %611 = vmatprep.subr.mxu0 0.0
  %612 = vmatpush1.msra.mxu0 0.0
  %613 = vmatprep.subr.mxu0 0.0
  %614 = vmatpush1.msra.mxu0 0.0
  %615 = vmatprep.subr.mxu0 0.0
  %616 = vmatpush1.msra.mxu0 0.0
  %617 = vmatprep.subr.mxu0 0.0
  %618 = vmatpush1.msra.mxu0 0.0
  %619 = vmatprep.subr.mxu0 0.0
  %620 = vmatpush1.msra.mxu0 0.0
  %621 = vmatprep.subr.mxu0 0.0
  %622 = vmatpush1.msra.mxu0 0.0
  %623 = vmatprep.subr.mxu0 0.0
  %624 = vmatpush1.msra.mxu0 0.0
  %625 = vmatprep.subr.mxu0 0.0
  %626 = vmatpush1.msra.mxu0 0.0
  %627 = vmatprep.subr.mxu0 0.0
  %628 = vmatpush1.msra.mxu0 0.0
  %629 = vmatprep.subr.mxu0 0.0
  %630 = vmatpush1.msra.mxu0 0.0
  %631 = vmatprep.subr.mxu0 0.0
  %632 = vmatpush1.msra.mxu0 0.0
  %633 = vmatprep.subr.mxu0 0.0
  %634 = vmatpush1.msra.mxu0 0.0
  %635 = vmatprep.subr.mxu0 0.0
  %636 = vmatpush1.msra.mxu0 0.0
  %637 = vmatprep.subr.mxu0 0.0
  %638 = vmatpush1.msra.mxu0 0.0
  %639 = vmatprep.mubr.f32.mxu0 0.0
  %640 = vmatmul.mubr.f32.gmra.mrb[0].mxu0 %v498
  %v641 = vpop.f32.mrb[0].mxu0
  %v642 = vadd.f32 0.0, %v641
  %v643 = vpop.f32.mrb[0].mxu0
  %644 = vdwg.mxu0
  %v645 = vadd.f32 %v574, %v642
  %v646 = vxor.u32 %v645, 2147483648
  %v647 = vmul.f32 %v646, 1.442695
  %v648 = vpow.pop %v647
  %v649 = vadd.f32 %v648, 1.0
  %v650 = vrcp.pop %v649
  %v651 = vmul.f32 1.0, %v650
  %v652 = vtanh.pop %v645
  %v653 = vmul.f32 %v651, %v488
  %655 = vrot.lane.b32.xlu0 %v652, 32
  %v656 = vpop.permute.xlu0 %655
  %v658 = vmul.f32 %v651, %v656
  %660 = vrot.lane.b32.xlu0 %v658, 32
  %v661 = vpop.permute.xlu0 %660
  %v663 = vadd.f32 %v653, %v661
  %v664 = vtanh.pop %v663
  %666 = vrot.lane.b32.xlu0 %v664, 32
  %v667 = vpop.permute.xlu0 %666
  %v669 = vmul.f32 %v651, %v667
  %671 = vrot.lane.b32.xlu0 %v669, 64
  %v672 = vpop.permute.xlu0 %671
  %v673 = vsel %vm43, %v672, 0
  %675 = vmatprep.subr.mxu0 0.0
  %676 = vmatpush1.msra.mxu0 %v24
  %677 = vmatprep.subr.mxu0 0.0
  %678 = vmatpush1.msra.mxu0 %v25
  %679 = vmatprep.subr.mxu0 0.0
  %680 = vmatpush1.msra.mxu0 %v26
  %681 = vmatprep.subr.mxu0 0.0
  %682 = vmatpush1.msra.mxu0 %v27
  %683 = vmatprep.subr.mxu0 0.0
  %684 = vmatpush1.msra.mxu0 0.0
  %685 = vmatprep.subr.mxu0 0.0
  %686 = vmatpush1.msra.mxu0 0.0
  %687 = vmatprep.subr.mxu0 0.0
  %688 = vmatpush1.msra.mxu0 0.0
  %689 = vmatprep.subr.mxu0 0.0
  %690 = vmatpush1.msra.mxu0 0.0
  %691 = vmatprep.subr.mxu0 0.0
  %692 = vmatpush1.msra.mxu0 0.0
  %693 = vmatprep.subr.mxu0 0.0
  %694 = vmatpush1.msra.mxu0 0.0
  %695 = vmatprep.subr.mxu0 0.0
  %696 = vmatpush1.msra.mxu0 0.0
  %697 = vmatprep.subr.mxu0 0.0
  %698 = vmatpush1.msra.mxu0 0.0
  %699 = vmatprep.subr.mxu0 0.0
  %700 = vmatpush1.msra.mxu0 0.0
  %701 = vmatprep.subr.mxu0 0.0
  %702 = vmatpush1.msra.mxu0 0.0
  %703 = vmatprep.subr.mxu0 0.0
  %704 = vmatpush1.msra.mxu0 0.0
  %705 = vmatprep.subr.mxu0 0.0
  %706 = vmatpush1.msra.mxu0 0.0
  %707 = vmatprep.subr.mxu0 0.0
  %708 = vmatpush1.msra.mxu0 0.0
  %709 = vmatprep.subr.mxu0 0.0
  %710 = vmatpush1.msra.mxu0 0.0
  %711 = vmatprep.subr.mxu0 0.0
  %712 = vmatpush1.msra.mxu0 0.0
  %713 = vmatprep.subr.mxu0 0.0
  %714 = vmatpush1.msra.mxu0 0.0
  %715 = vmatprep.subr.mxu0 0.0
  %716 = vmatpush1.msra.mxu0 0.0
  %717 = vmatprep.subr.mxu0 0.0
  %718 = vmatpush1.msra.mxu0 0.0
  %719 = vmatprep.subr.mxu0 0.0
  %720 = vmatpush1.msra.mxu0 0.0
  %721 = vmatprep.subr.mxu0 0.0
  %722 = vmatpush1.msra.mxu0 0.0
  %723 = vmatprep.subr.mxu0 0.0
  %724 = vmatpush1.msra.mxu0 0.0
  %725 = vmatprep.subr.mxu0 0.0
  %726 = vmatpush1.msra.mxu0 0.0
  %727 = vmatprep.subr.mxu0 0.0
  %728 = vmatpush1.msra.mxu0 0.0
  %729 = vmatprep.subr.mxu0 0.0
  %730 = vmatpush1.msra.mxu0 0.0
  %731 = vmatprep.subr.mxu0 0.0
  %732 = vmatpush1.msra.mxu0 0.0
  %733 = vmatprep.subr.mxu0 0.0
  %734 = vmatpush1.msra.mxu0 0.0
  %735 = vmatprep.subr.mxu0 0.0
  %736 = vmatpush1.msra.mxu0 0.0
  %737 = vmatprep.subr.mxu0 0.0
  %738 = vmatpush1.msra.mxu0 0.0
  %739 = vmatprep.mubr.f32.mxu0 0.0
  %740 = vmatmul.mubr.f32.gmra.mrb[0].mxu0 %v673
  %v741 = vpop.f32.mrb[0].mxu0
  %v742 = vadd.f32 0.0, %v741
  %v743 = vpop.f32.mrb[0].mxu0
  %744 = vdwg.mxu0
  %s745 = scalar_lea.vmem %s4, 24
  %746 = vst [vmem:[%s745] sm:$0xff] %v742
  %s747 = scalar_lea.vmem %s0, 32
  %v748 = vld [vmem:[%s747] sm:$0xff]
  %v749 = vadd.f32 %v748, %v40
  %750 = vmatprep.subr.mxu0 0.0
  %751 = vmatpush1.msra.mxu0 %v28
  %752 = vmatprep.subr.mxu0 0.0
  %753 = vmatpush1.msra.mxu0 %v29
  %754 = vmatprep.subr.mxu0 0.0
  %755 = vmatpush1.msra.mxu0 %v30
  %756 = vmatprep.subr.mxu0 0.0
  %757 = vmatpush1.msra.mxu0 %v31
  %758 = vmatprep.subr.mxu0 0.0
  %759 = vmatpush1.msra.mxu0 0.0
  %760 = vmatprep.subr.mxu0 0.0
  %761 = vmatpush1.msra.mxu0 0.0
  %762 = vmatprep.subr.mxu0 0.0
  %763 = vmatpush1.msra.mxu0 0.0
  %764 = vmatprep.subr.mxu0 0.0
  %765 = vmatpush1.msra.mxu0 0.0
  %766 = vmatprep.subr.mxu0 0.0
  %767 = vmatpush1.msra.mxu0 0.0
  %768 = vmatprep.subr.mxu0 0.0
  %769 = vmatpush1.msra.mxu0 0.0
  %770 = vmatprep.subr.mxu0 0.0
  %771 = vmatpush1.msra.mxu0 0.0
  %772 = vmatprep.subr.mxu0 0.0
  %773 = vmatpush1.msra.mxu0 0.0
  %774 = vmatprep.subr.mxu0 0.0
  %775 = vmatpush1.msra.mxu0 0.0
  %776 = vmatprep.subr.mxu0 0.0
  %777 = vmatpush1.msra.mxu0 0.0
  %778 = vmatprep.subr.mxu0 0.0
  %779 = vmatpush1.msra.mxu0 0.0
  %780 = vmatprep.subr.mxu0 0.0
  %781 = vmatpush1.msra.mxu0 0.0
  %782 = vmatprep.subr.mxu0 0.0
  %783 = vmatpush1.msra.mxu0 0.0
  %784 = vmatprep.subr.mxu0 0.0
  %785 = vmatpush1.msra.mxu0 0.0
  %786 = vmatprep.subr.mxu0 0.0
  %787 = vmatpush1.msra.mxu0 0.0
  %788 = vmatprep.subr.mxu0 0.0
  %789 = vmatpush1.msra.mxu0 0.0
  %790 = vmatprep.subr.mxu0 0.0
  %791 = vmatpush1.msra.mxu0 0.0
  %792 = vmatprep.subr.mxu0 0.0
  %793 = vmatpush1.msra.mxu0 0.0
  %794 = vmatprep.subr.mxu0 0.0
  %795 = vmatpush1.msra.mxu0 0.0
  %796 = vmatprep.subr.mxu0 0.0
  %797 = vmatpush1.msra.mxu0 0.0
  %798 = vmatprep.subr.mxu0 0.0
  %799 = vmatpush1.msra.mxu0 0.0
  %800 = vmatprep.subr.mxu0 0.0
  %801 = vmatpush1.msra.mxu0 0.0
  %802 = vmatprep.subr.mxu0 0.0
  %803 = vmatpush1.msra.mxu0 0.0
  %804 = vmatprep.subr.mxu0 0.0
  %805 = vmatpush1.msra.mxu0 0.0
  %806 = vmatprep.subr.mxu0 0.0
  %807 = vmatpush1.msra.mxu0 0.0
  %808 = vmatprep.subr.mxu0 0.0
  %809 = vmatpush1.msra.mxu0 0.0
  %810 = vmatprep.subr.mxu0 0.0
  %811 = vmatpush1.msra.mxu0 0.0
  %812 = vmatprep.subr.mxu0 0.0
  %813 = vmatpush1.msra.mxu0 0.0
  %814 = vmatprep.mubr.f32.mxu0 0.0
  %815 = vmatmul.mubr.f32.gmra.mrb[0].mxu0 %v673
  %v816 = vpop.f32.mrb[0].mxu0
  %v817 = vadd.f32 0.0, %v816
  %v818 = vpop.f32.mrb[0].mxu0
  %819 = vdwg.mxu0
  %v820 = vadd.f32 %v749, %v817
  %v821 = vxor.u32 %v820, 2147483648
  %v822 = vmul.f32 %v821, 1.442695
  %v823 = vpow.pop %v822
  %v824 = vadd.f32 %v823, 1.0
  %v825 = vrcp.pop %v824
  %v826 = vmul.f32 1.0, %v825
  %v827 = vtanh.pop %v820
  %v828 = vmul.f32 %v826, %v663
  %830 = vrot.lane.b32.xlu0 %v827, 32
  %v831 = vpop.permute.xlu0 %830
  %v833 = vmul.f32 %v826, %v831
  %835 = vrot.lane.b32.xlu0 %v833, 32
  %v836 = vpop.permute.xlu0 %835
  %v838 = vadd.f32 %v828, %v836
  %v839 = vtanh.pop %v838
  %841 = vrot.lane.b32.xlu0 %v839, 32
  %v842 = vpop.permute.xlu0 %841
  %v844 = vmul.f32 %v826, %v842
  %846 = vrot.lane.b32.xlu0 %v844, 64
  %v847 = vpop.permute.xlu0 %846
  %v848 = vsel %vm43, %v847, 0
  %850 = vmatprep.subr.mxu0 0.0
  %851 = vmatpush1.msra.mxu0 %v24
  %852 = vmatprep.subr.mxu0 0.0
  %853 = vmatpush1.msra.mxu0 %v25
  %854 = vmatprep.subr.mxu0 0.0
  %855 = vmatpush1.msra.mxu0 %v26
  %856 = vmatprep.subr.mxu0 0.0
  %857 = vmatpush1.msra.mxu0 %v27
  %858 = vmatprep.subr.mxu0 0.0
  %859 = vmatpush1.msra.mxu0 0.0
  %860 = vmatprep.subr.mxu0 0.0
  %861 = vmatpush1.msra.mxu0 0.0
  %862 = vmatprep.subr.mxu0 0.0
  %863 = vmatpush1.msra.mxu0 0.0
  %864 = vmatprep.subr.mxu0 0.0
  %865 = vmatpush1.msra.mxu0 0.0
  %866 = vmatprep.subr.mxu0 0.0
  %867 = vmatpush1.msra.mxu0 0.0
  %868 = vmatprep.subr.mxu0 0.0
  %869 = vmatpush1.msra.mxu0 0.0
  %870 = vmatprep.subr.mxu0 0.0
  %871 = vmatpush1.msra.mxu0 0.0
  %872 = vmatprep.subr.mxu0 0.0
  %873 = vmatpush1.msra.mxu0 0.0
  %874 = vmatprep.subr.mxu0 0.0
  %875 = vmatpush1.msra.mxu0 0.0
  %876 = vmatprep.subr.mxu0 0.0
  %877 = vmatpush1.msra.mxu0 0.0
  %878 = vmatprep.subr.mxu0 0.0
  %879 = vmatpush1.msra.mxu0 0.0
  %880 = vmatprep.subr.mxu0 0.0
  %881 = vmatpush1.msra.mxu0 0.0
  %882 = vmatprep.subr.mxu0 0.0
  %883 = vmatpush1.msra.mxu0 0.0
  %884 = vmatprep.subr.mxu0 0.0
  %885 = vmatpush1.msra.mxu0 0.0
  %886 = vmatprep.subr.mxu0 0.0
  %887 = vmatpush1.msra.mxu0 0.0
  %888 = vmatprep.subr.mxu0 0.0
  %889 = vmatpush1.msra.mxu0 0.0
  %890 = vmatprep.subr.mxu0 0.0
  %891 = vmatpush1.msra.mxu0 0.0
  %892 = vmatprep.subr.mxu0 0.0
  %893 = vmatpush1.msra.mxu0 0.0
  %894 = vmatprep.subr.mxu0 0.0
  %895 = vmatpush1.msra.mxu0 0.0
  %896 = vmatprep.subr.mxu0 0.0
  %897 = vmatpush1.msra.mxu0 0.0
  %898 = vmatprep.subr.mxu0 0.0
  %899 = vmatpush1.msra.mxu0 0.0
  %900 = vmatprep.subr.mxu0 0.0
  %901 = vmatpush1.msra.mxu0 0.0
  %902 = vmatprep.subr.mxu0 0.0
  %903 = vmatpush1.msra.mxu0 0.0
  %904 = vmatprep.subr.mxu0 0.0
  %905 = vmatpush1.msra.mxu0 0.0
  %906 = vmatprep.subr.mxu0 0.0
  %907 = vmatpush1.msra.mxu0 0.0
  %908 = vmatprep.subr.mxu0 0.0
  %909 = vmatpush1.msra.mxu0 0.0
  %910 = vmatprep.subr.mxu0 0.0
  %911 = vmatpush1.msra.mxu0 0.0
  %912 = vmatprep.subr.mxu0 0.0
  %913 = vmatpush1.msra.mxu0 0.0
  %914 = vmatprep.mubr.f32.mxu0 0.0
  %915 = vmatmul.mubr.f32.gmra.mrb[0].mxu0 %v848
  %v916 = vpop.f32.mrb[0].mxu0
  %v917 = vadd.f32 0.0, %v916
  %v918 = vpop.f32.mrb[0].mxu0
  %919 = vdwg.mxu0
  %s920 = scalar_lea.vmem %s4, 32
  %921 = vst [vmem:[%s920] sm:$0xff] %v917
  %s922 = scalar_lea.vmem %s0, 40
  %v923 = vld [vmem:[%s922] sm:$0xff]
  %v924 = vadd.f32 %v923, %v40
  %925 = vmatprep.subr.mxu0 0.0
  %926 = vmatpush1.msra.mxu0 %v28
  %927 = vmatprep.subr.mxu0 0.0
  %928 = vmatpush1.msra.mxu0 %v29
  %929 = vmatprep.subr.mxu0 0.0
  %930 = vmatpush1.msra.mxu0 %v30
  %931 = vmatprep.subr.mxu0 0.0
  %932 = vmatpush1.msra.mxu0 %v31
  %933 = vmatprep.subr.mxu0 0.0
  %934 = vmatpush1.msra.mxu0 0.0
  %935 = vmatprep.subr.mxu0 0.0
  %936 = vmatpush1.msra.mxu0 0.0
  %937 = vmatprep.subr.mxu0 0.0
  %938 = vmatpush1.msra.mxu0 0.0
  %939 = vmatprep.subr.mxu0 0.0
  %940 = vmatpush1.msra.mxu0 0.0
  %941 = vmatprep.subr.mxu0 0.0
  %942 = vmatpush1.msra.mxu0 0.0
  %943 = vmatprep.subr.mxu0 0.0
  %944 = vmatpush1.msra.mxu0 0.0
  %945 = vmatprep.subr.mxu0 0.0
  %946 = vmatpush1.msra.mxu0 0.0
  %947 = vmatprep.subr.mxu0 0.0
  %948 = vmatpush1.msra.mxu0 0.0
  %949 = vmatprep.subr.mxu0 0.0
  %950 = vmatpush1.msra.mxu0 0.0
  %951 = vmatprep.subr.mxu0 0.0
  %952 = vmatpush1.msra.mxu0 0.0
  %953 = vmatprep.subr.mxu0 0.0
  %954 = vmatpush1.msra.mxu0 0.0
  %955 = vmatprep.subr.mxu0 0.0
  %956 = vmatpush1.msra.mxu0 0.0
  %957 = vmatprep.subr.mxu0 0.0
  %958 = vmatpush1.msra.mxu0 0.0
  %959 = vmatprep.subr.mxu0 0.0
  %960 = vmatpush1.msra.mxu0 0.0
  %961 = vmatprep.subr.mxu0 0.0
  %962 = vmatpush1.msra.mxu0 0.0
  %963 = vmatprep.subr.mxu0 0.0
  %964 = vmatpush1.msra.mxu0 0.0
  %965 = vmatprep.subr.mxu0 0.0
  %966 = vmatpush1.msra.mxu0 0.0
  %967 = vmatprep.subr.mxu0 0.0
  %968 = vmatpush1.msra.mxu0 0.0
  %969 = vmatprep.subr.mxu0 0.0
  %970 = vmatpush1.msra.mxu0 0.0
  %971 = vmatprep.subr.mxu0 0.0
  %972 = vmatpush1.msra.mxu0 0.0
  %973 = vmatprep.subr.mxu0 0.0
  %974 = vmatpush1.msra.mxu0 0.0
  %975 = vmatprep.subr.mxu0 0.0
  %976 = vmatpush1.msra.mxu0 0.0
  %977 = vmatprep.subr.mxu0 0.0
  %978 = vmatpush1.msra.mxu0 0.0
  %979 = vmatprep.subr.mxu0 0.0
  %980 = vmatpush1.msra.mxu0 0.0
  %981 = vmatprep.subr.mxu0 0.0
  %982 = vmatpush1.msra.mxu0 0.0
  %983 = vmatprep.subr.mxu0 0.0
  %984 = vmatpush1.msra.mxu0 0.0
  %985 = vmatprep.subr.mxu0 0.0
  %986 = vmatpush1.msra.mxu0 0.0
  %987 = vmatprep.subr.mxu0 0.0
  %988 = vmatpush1.msra.mxu0 0.0
  %989 = vmatprep.mubr.f32.mxu0 0.0
  %990 = vmatmul.mubr.f32.gmra.mrb[0].mxu0 %v848
  %v991 = vpop.f32.mrb[0].mxu0
  %v992 = vadd.f32 0.0, %v991
  %v993 = vpop.f32.mrb[0].mxu0
  %994 = vdwg.mxu0
  %v995 = vadd.f32 %v924, %v992
  %v996 = vxor.u32 %v995, 2147483648
  %v997 = vmul.f32 %v996, 1.442695
  %v998 = vpow.pop %v997
  %v999 = vadd.f32 %v998, 1.0
  %v1000 = vrcp.pop %v999
  %v1001 = vmul.f32 1.0, %v1000
  %v1002 = vtanh.pop %v995
  %v1003 = vmul.f32 %v1001, %v838
  %1005 = vrot.lane.b32.xlu0 %v1002, 32
  %v1006 = vpop.permute.xlu0 %1005
  %v1008 = vmul.f32 %v1001, %v1006
  %1010 = vrot.lane.b32.xlu0 %v1008, 32
  %v1011 = vpop.permute.xlu0 %1010
  %v1013 = vadd.f32 %v1003, %v1011
  %v1014 = vtanh.pop %v1013
  %1016 = vrot.lane.b32.xlu0 %v1014, 32
  %v1017 = vpop.permute.xlu0 %1016
  %v1019 = vmul.f32 %v1001, %v1017
  %1021 = vrot.lane.b32.xlu0 %v1019, 64
  %v1022 = vpop.permute.xlu0 %1021
  %v1023 = vsel %vm43, %v1022, 0
  %1025 = vmatprep.subr.mxu0 0.0
  %1026 = vmatpush1.msra.mxu0 %v24
  %1027 = vmatprep.subr.mxu0 0.0
  %1028 = vmatpush1.msra.mxu0 %v25
  %1029 = vmatprep.subr.mxu0 0.0
  %1030 = vmatpush1.msra.mxu0 %v26
  %1031 = vmatprep.subr.mxu0 0.0
  %1032 = vmatpush1.msra.mxu0 %v27
  %1033 = vmatprep.subr.mxu0 0.0
  %1034 = vmatpush1.msra.mxu0 0.0
  %1035 = vmatprep.subr.mxu0 0.0
  %1036 = vmatpush1.msra.mxu0 0.0
  %1037 = vmatprep.subr.mxu0 0.0
  %1038 = vmatpush1.msra.mxu0 0.0
  %1039 = vmatprep.subr.mxu0 0.0
  %1040 = vmatpush1.msra.mxu0 0.0
  %1041 = vmatprep.subr.mxu0 0.0
  %1042 = vmatpush1.msra.mxu0 0.0
  %1043 = vmatprep.subr.mxu0 0.0
  %1044 = vmatpush1.msra.mxu0 0.0
  %1045 = vmatprep.subr.mxu0 0.0
  %1046 = vmatpush1.msra.mxu0 0.0
  %1047 = vmatprep.subr.mxu0 0.0
  %1048 = vmatpush1.msra.mxu0 0.0
  %1049 = vmatprep.subr.mxu0 0.0
  %1050 = vmatpush1.msra.mxu0 0.0
  %1051 = vmatprep.subr.mxu0 0.0
  %1052 = vmatpush1.msra.mxu0 0.0
  %1053 = vmatprep.subr.mxu0 0.0
  %1054 = vmatpush1.msra.mxu0 0.0
  %1055 = vmatprep.subr.mxu0 0.0
  %1056 = vmatpush1.msra.mxu0 0.0
  %1057 = vmatprep.subr.mxu0 0.0
  %1058 = vmatpush1.msra.mxu0 0.0
  %1059 = vmatprep.subr.mxu0 0.0
  %1060 = vmatpush1.msra.mxu0 0.0
  %1061 = vmatprep.subr.mxu0 0.0
  %1062 = vmatpush1.msra.mxu0 0.0
  %1063 = vmatprep.subr.mxu0 0.0
  %1064 = vmatpush1.msra.mxu0 0.0
  %1065 = vmatprep.subr.mxu0 0.0
  %1066 = vmatpush1.msra.mxu0 0.0
  %1067 = vmatprep.subr.mxu0 0.0
  %1068 = vmatpush1.msra.mxu0 0.0
  %1069 = vmatprep.subr.mxu0 0.0
  %1070 = vmatpush1.msra.mxu0 0.0
  %1071 = vmatprep.subr.mxu0 0.0
  %1072 = vmatpush1.msra.mxu0 0.0
  %1073 = vmatprep.subr.mxu0 0.0
  %1074 = vmatpush1.msra.mxu0 0.0
  %1075 = vmatprep.subr.mxu0 0.0
  %1076 = vmatpush1.msra.mxu0 0.0
  %1077 = vmatprep.subr.mxu0 0.0
  %1078 = vmatpush1.msra.mxu0 0.0
  %1079 = vmatprep.subr.mxu0 0.0
  %1080 = vmatpush1.msra.mxu0 0.0
  %1081 = vmatprep.subr.mxu0 0.0
  %1082 = vmatpush1.msra.mxu0 0.0
  %1083 = vmatprep.subr.mxu0 0.0
  %1084 = vmatpush1.msra.mxu0 0.0
  %1085 = vmatprep.subr.mxu0 0.0
  %1086 = vmatpush1.msra.mxu0 0.0
  %1087 = vmatprep.subr.mxu0 0.0
  %1088 = vmatpush1.msra.mxu0 0.0
  %1089 = vmatprep.mubr.f32.mxu0 0.0
  %1090 = vmatmul.mubr.f32.gmra.mrb[0].mxu0 %v1023
  %v1091 = vpop.f32.mrb[0].mxu0
  %v1092 = vadd.f32 0.0, %v1091
  %v1093 = vpop.f32.mrb[0].mxu0
  %1094 = vdwg.mxu0
  %s1095 = scalar_lea.vmem %s4, 40
  %1096 = vst [vmem:[%s1095] sm:$0xff] %v1092
  %s1097 = scalar_lea.vmem %s0, 48
  %v1098 = vld [vmem:[%s1097] sm:$0xff]
  %v1099 = vadd.f32 %v1098, %v40
  %1100 = vmatprep.subr.mxu0 0.0
  %1101 = vmatpush1.msra.mxu0 %v28
  %1102 = vmatprep.subr.mxu0 0.0
  %1103 = vmatpush1.msra.mxu0 %v29
  %1104 = vmatprep.subr.mxu0 0.0
  %1105 = vmatpush1.msra.mxu0 %v30
  %1106 = vmatprep.subr.mxu0 0.0
  %1107 = vmatpush1.msra.mxu0 %v31
  %1108 = vmatprep.subr.mxu0 0.0
  %1109 = vmatpush1.msra.mxu0 0.0
  %1110 = vmatprep.subr.mxu0 0.0
  %1111 = vmatpush1.msra.mxu0 0.0
  %1112 = vmatprep.subr.mxu0 0.0
  %1113 = vmatpush1.msra.mxu0 0.0
  %1114 = vmatprep.subr.mxu0 0.0
  %1115 = vmatpush1.msra.mxu0 0.0
  %1116 = vmatprep.subr.mxu0 0.0
  %1117 = vmatpush1.msra.mxu0 0.0
  %1118 = vmatprep.subr.mxu0 0.0
  %1119 = vmatpush1.msra.mxu0 0.0
  %1120 = vmatprep.subr.mxu0 0.0
  %1121 = vmatpush1.msra.mxu0 0.0
  %1122 = vmatprep.subr.mxu0 0.0
  %1123 = vmatpush1.msra.mxu0 0.0
  %1124 = vmatprep.subr.mxu0 0.0
  %1125 = vmatpush1.msra.mxu0 0.0
  %1126 = vmatprep.subr.mxu0 0.0
  %1127 = vmatpush1.msra.mxu0 0.0
  %1128 = vmatprep.subr.mxu0 0.0
  %1129 = vmatpush1.msra.mxu0 0.0
  %1130 = vmatprep.subr.mxu0 0.0
  %1131 = vmatpush1.msra.mxu0 0.0
  %1132 = vmatprep.subr.mxu0 0.0
  %1133 = vmatpush1.msra.mxu0 0.0
  %1134 = vmatprep.subr.mxu0 0.0
  %1135 = vmatpush1.msra.mxu0 0.0
  %1136 = vmatprep.subr.mxu0 0.0
  %1137 = vmatpush1.msra.mxu0 0.0
  %1138 = vmatprep.subr.mxu0 0.0
  %1139 = vmatpush1.msra.mxu0 0.0
  %1140 = vmatprep.subr.mxu0 0.0
  %1141 = vmatpush1.msra.mxu0 0.0
  %1142 = vmatprep.subr.mxu0 0.0
  %1143 = vmatpush1.msra.mxu0 0.0
  %1144 = vmatprep.subr.mxu0 0.0
  %1145 = vmatpush1.msra.mxu0 0.0
  %1146 = vmatprep.subr.mxu0 0.0
  %1147 = vmatpush1.msra.mxu0 0.0
  %1148 = vmatprep.subr.mxu0 0.0
  %1149 = vmatpush1.msra.mxu0 0.0
  %1150 = vmatprep.subr.mxu0 0.0
  %1151 = vmatpush1.msra.mxu0 0.0
  %1152 = vmatprep.subr.mxu0 0.0
  %1153 = vmatpush1.msra.mxu0 0.0
  %1154 = vmatprep.subr.mxu0 0.0
  %1155 = vmatpush1.msra.mxu0 0.0
  %1156 = vmatprep.subr.mxu0 0.0
  %1157 = vmatpush1.msra.mxu0 0.0
  %1158 = vmatprep.subr.mxu0 0.0
  %1159 = vmatpush1.msra.mxu0 0.0
  %1160 = vmatprep.subr.mxu0 0.0
  %1161 = vmatpush1.msra.mxu0 0.0
  %1162 = vmatprep.subr.mxu0 0.0
  %1163 = vmatpush1.msra.mxu0 0.0
  %1164 = vmatprep.mubr.f32.mxu0 0.0
  %1165 = vmatmul.mubr.f32.gmra.mrb[0].mxu0 %v1023
  %v1166 = vpop.f32.mrb[0].mxu0
  %v1167 = vadd.f32 0.0, %v1166
  %v1168 = vpop.f32.mrb[0].mxu0
  %1169 = vdwg.mxu0
  %v1170 = vadd.f32 %v1099, %v1167
  %v1171 = vxor.u32 %v1170, 2147483648
  %v1172 = vmul.f32 %v1171, 1.442695
  %v1173 = vpow.pop %v1172
  %v1174 = vadd.f32 %v1173, 1.0
  %v1175 = vrcp.pop %v1174
  %v1176 = vmul.f32 1.0, %v1175
  %v1177 = vtanh.pop %v1170
  %v1178 = vmul.f32 %v1176, %v1013
  %1180 = vrot.lane.b32.xlu0 %v1177, 32
  %v1181 = vpop.permute.xlu0 %1180
  %v1183 = vmul.f32 %v1176, %v1181
  %1185 = vrot.lane.b32.xlu0 %v1183, 32
  %v1186 = vpop.permute.xlu0 %1185
  %v1188 = vadd.f32 %v1178, %v1186
  %v1189 = vtanh.pop %v1188
  %1191 = vrot.lane.b32.xlu0 %v1189, 32
  %v1192 = vpop.permute.xlu0 %1191
  %v1194 = vmul.f32 %v1176, %v1192
  %1196 = vrot.lane.b32.xlu0 %v1194, 64
  %v1197 = vpop.permute.xlu0 %1196
  %v1198 = vsel %vm43, %v1197, 0
  %1200 = vmatprep.subr.mxu0 0.0
  %1201 = vmatpush1.msra.mxu0 %v24
  %1202 = vmatprep.subr.mxu0 0.0
  %1203 = vmatpush1.msra.mxu0 %v25
  %1204 = vmatprep.subr.mxu0 0.0
  %1205 = vmatpush1.msra.mxu0 %v26
  %1206 = vmatprep.subr.mxu0 0.0
  %1207 = vmatpush1.msra.mxu0 %v27
  %1208 = vmatprep.subr.mxu0 0.0
  %1209 = vmatpush1.msra.mxu0 0.0
  %1210 = vmatprep.subr.mxu0 0.0
  %1211 = vmatpush1.msra.mxu0 0.0
  %1212 = vmatprep.subr.mxu0 0.0
  %1213 = vmatpush1.msra.mxu0 0.0
  %1214 = vmatprep.subr.mxu0 0.0
  %1215 = vmatpush1.msra.mxu0 0.0
  %1216 = vmatprep.subr.mxu0 0.0
  %1217 = vmatpush1.msra.mxu0 0.0
  %1218 = vmatprep.subr.mxu0 0.0
  %1219 = vmatpush1.msra.mxu0 0.0
  %1220 = vmatprep.subr.mxu0 0.0
  %1221 = vmatpush1.msra.mxu0 0.0
  %1222 = vmatprep.subr.mxu0 0.0
  %1223 = vmatpush1.msra.mxu0 0.0
  %1224 = vmatprep.subr.mxu0 0.0
  %1225 = vmatpush1.msra.mxu0 0.0
  %1226 = vmatprep.subr.mxu0 0.0
  %1227 = vmatpush1.msra.mxu0 0.0
  %1228 = vmatprep.subr.mxu0 0.0
  %1229 = vmatpush1.msra.mxu0 0.0
  %1230 = vmatprep.subr.mxu0 0.0
  %1231 = vmatpush1.msra.mxu0 0.0
  %1232 = vmatprep.subr.mxu0 0.0
  %1233 = vmatpush1.msra.mxu0 0.0
  %1234 = vmatprep.subr.mxu0 0.0
  %1235 = vmatpush1.msra.mxu0 0.0
  %1236 = vmatprep.subr.mxu0 0.0
  %1237 = vmatpush1.msra.mxu0 0.0
  %1238 = vmatprep.subr.mxu0 0.0
  %1239 = vmatpush1.msra.mxu0 0.0
  %1240 = vmatprep.subr.mxu0 0.0
  %1241 = vmatpush1.msra.mxu0 0.0
  %1242 = vmatprep.subr.mxu0 0.0
  %1243 = vmatpush1.msra.mxu0 0.0
  %1244 = vmatprep.subr.mxu0 0.0
  %1245 = vmatpush1.msra.mxu0 0.0
  %1246 = vmatprep.subr.mxu0 0.0
  %1247 = vmatpush1.msra.mxu0 0.0
  %1248 = vmatprep.subr.mxu0 0.0
  %1249 = vmatpush1.msra.mxu0 0.0
  %1250 = vmatprep.subr.mxu0 0.0
  %1251 = vmatpush1.msra.mxu0 0.0
  %1252 = vmatprep.subr.mxu0 0.0
  %1253 = vmatpush1.msra.mxu0 0.0
  %1254 = vmatprep.subr.mxu0 0.0
  %1255 = vmatpush1.msra.mxu0 0.0
  %1256 = vmatprep.subr.mxu0 0.0
  %1257 = vmatpush1.msra.mxu0 0.0
  %1258 = vmatprep.subr.mxu0 0.0
  %1259 = vmatpush1.msra.mxu0 0.0
  %1260 = vmatprep.subr.mxu0 0.0
  %1261 = vmatpush1.msra.mxu0 0.0
  %1262 = vmatprep.subr.mxu0 0.0
  %1263 = vmatpush1.msra.mxu0 0.0
  %1264 = vmatprep.mubr.f32.mxu0 0.0
  %1265 = vmatmul.mubr.f32.gmra.mrb[0].mxu0 %v1198
  %v1266 = vpop.f32.mrb[0].mxu0
  %v1267 = vadd.f32 0.0, %v1266
  %v1268 = vpop.f32.mrb[0].mxu0
  %1269 = vdwg.mxu0
  %s1270 = scalar_lea.vmem %s4, 48
  %1271 = vst [vmem:[%s1270] sm:$0xff] %v1267
  %s1272 = scalar_lea.vmem %s0, 56
  %v1273 = vld [vmem:[%s1272] sm:$0xff]
  %v1274 = vadd.f32 %v1273, %v40
  %1275 = vmatprep.subr.mxu0 0.0
  %1276 = vmatpush1.msra.mxu0 %v28
  %1277 = vmatprep.subr.mxu0 0.0
  %1278 = vmatpush1.msra.mxu0 %v29
  %1279 = vmatprep.subr.mxu0 0.0
  %1280 = vmatpush1.msra.mxu0 %v30
  %1281 = vmatprep.subr.mxu0 0.0
  %1282 = vmatpush1.msra.mxu0 %v31
  %1283 = vmatprep.subr.mxu0 0.0
  %1284 = vmatpush1.msra.mxu0 0.0
  %1285 = vmatprep.subr.mxu0 0.0
  %1286 = vmatpush1.msra.mxu0 0.0
  %1287 = vmatprep.subr.mxu0 0.0
  %1288 = vmatpush1.msra.mxu0 0.0
  %1289 = vmatprep.subr.mxu0 0.0
  %1290 = vmatpush1.msra.mxu0 0.0
  %1291 = vmatprep.subr.mxu0 0.0
  %1292 = vmatpush1.msra.mxu0 0.0
  %1293 = vmatprep.subr.mxu0 0.0
  %1294 = vmatpush1.msra.mxu0 0.0
  %1295 = vmatprep.subr.mxu0 0.0
  %1296 = vmatpush1.msra.mxu0 0.0
  %1297 = vmatprep.subr.mxu0 0.0
  %1298 = vmatpush1.msra.mxu0 0.0
  %1299 = vmatprep.subr.mxu0 0.0
  %1300 = vmatpush1.msra.mxu0 0.0
  %1301 = vmatprep.subr.mxu0 0.0
  %1302 = vmatpush1.msra.mxu0 0.0
  %1303 = vmatprep.subr.mxu0 0.0
  %1304 = vmatpush1.msra.mxu0 0.0
  %1305 = vmatprep.subr.mxu0 0.0
  %1306 = vmatpush1.msra.mxu0 0.0
  %1307 = vmatprep.subr.mxu0 0.0
  %1308 = vmatpush1.msra.mxu0 0.0
  %1309 = vmatprep.subr.mxu0 0.0
  %1310 = vmatpush1.msra.mxu0 0.0
  %1311 = vmatprep.subr.mxu0 0.0
  %1312 = vmatpush1.msra.mxu0 0.0
  %1313 = vmatprep.subr.mxu0 0.0
  %1314 = vmatpush1.msra.mxu0 0.0
  %1315 = vmatprep.subr.mxu0 0.0
  %1316 = vmatpush1.msra.mxu0 0.0
  %1317 = vmatprep.subr.mxu0 0.0
  %1318 = vmatpush1.msra.mxu0 0.0
  %1319 = vmatprep.subr.mxu0 0.0
  %1320 = vmatpush1.msra.mxu0 0.0
  %1321 = vmatprep.subr.mxu0 0.0
  %1322 = vmatpush1.msra.mxu0 0.0
  %1323 = vmatprep.subr.mxu0 0.0
  %1324 = vmatpush1.msra.mxu0 0.0
  %1325 = vmatprep.subr.mxu0 0.0
  %1326 = vmatpush1.msra.mxu0 0.0
  %1327 = vmatprep.subr.mxu0 0.0
  %1328 = vmatpush1.msra.mxu0 0.0
  %1329 = vmatprep.subr.mxu0 0.0
  %1330 = vmatpush1.msra.mxu0 0.0
  %1331 = vmatprep.subr.mxu0 0.0
  %1332 = vmatpush1.msra.mxu0 0.0
  %1333 = vmatprep.subr.mxu0 0.0
  %1334 = vmatpush1.msra.mxu0 0.0
  %1335 = vmatprep.subr.mxu0 0.0
  %1336 = vmatpush1.msra.mxu0 0.0
  %1337 = vmatprep.subr.mxu0 0.0
  %1338 = vmatpush1.msra.mxu0 0.0
  %1339 = vmatprep.mubr.f32.mxu0 0.0
  %1340 = vmatmul.mubr.f32.gmra.mrb[0].mxu0 %v1198
  %v1341 = vpop.f32.mrb[0].mxu0
  %v1342 = vadd.f32 0.0, %v1341
  %v1343 = vpop.f32.mrb[0].mxu0
  %1344 = vdwg.mxu0
  %v1345 = vadd.f32 %v1274, %v1342
  %v1346 = vxor.u32 %v1345, 2147483648
  %v1347 = vmul.f32 %v1346, 1.442695
  %v1348 = vpow.pop %v1347
  %v1349 = vadd.f32 %v1348, 1.0
  %v1350 = vrcp.pop %v1349
  %v1351 = vmul.f32 1.0, %v1350
  %v1352 = vtanh.pop %v1345
  %v1353 = vmul.f32 %v1351, %v1188
  %1355 = vrot.lane.b32.xlu0 %v1352, 32
  %v1356 = vpop.permute.xlu0 %1355
  %v1358 = vmul.f32 %v1351, %v1356
  %1360 = vrot.lane.b32.xlu0 %v1358, 32
  %v1361 = vpop.permute.xlu0 %1360
  %v1363 = vadd.f32 %v1353, %v1361
  %v1364 = vtanh.pop %v1363
  %1366 = vrot.lane.b32.xlu0 %v1364, 32
  %v1367 = vpop.permute.xlu0 %1366
  %v1369 = vmul.f32 %v1351, %v1367
  %1371 = vrot.lane.b32.xlu0 %v1369, 64
  %v1372 = vpop.permute.xlu0 %1371
  %v1373 = vsel %vm43, %v1372, 0
  %1375 = vmatprep.subr.mxu0 0.0
  %1376 = vmatpush1.msra.mxu0 %v24
  %1377 = vmatprep.subr.mxu0 0.0
  %1378 = vmatpush1.msra.mxu0 %v25
  %1379 = vmatprep.subr.mxu0 0.0
  %1380 = vmatpush1.msra.mxu0 %v26
  %1381 = vmatprep.subr.mxu0 0.0
  %1382 = vmatpush1.msra.mxu0 %v27
  %1383 = vmatprep.subr.mxu0 0.0
  %1384 = vmatpush1.msra.mxu0 0.0
  %1385 = vmatprep.subr.mxu0 0.0
  %1386 = vmatpush1.msra.mxu0 0.0
  %1387 = vmatprep.subr.mxu0 0.0
  %1388 = vmatpush1.msra.mxu0 0.0
  %1389 = vmatprep.subr.mxu0 0.0
  %1390 = vmatpush1.msra.mxu0 0.0
  %1391 = vmatprep.subr.mxu0 0.0
  %1392 = vmatpush1.msra.mxu0 0.0
  %1393 = vmatprep.subr.mxu0 0.0
  %1394 = vmatpush1.msra.mxu0 0.0
  %1395 = vmatprep.subr.mxu0 0.0
  %1396 = vmatpush1.msra.mxu0 0.0
  %1397 = vmatprep.subr.mxu0 0.0
  %1398 = vmatpush1.msra.mxu0 0.0
  %1399 = vmatprep.subr.mxu0 0.0
  %1400 = vmatpush1.msra.mxu0 0.0
  %1401 = vmatprep.subr.mxu0 0.0
  %1402 = vmatpush1.msra.mxu0 0.0
  %1403 = vmatprep.subr.mxu0 0.0
  %1404 = vmatpush1.msra.mxu0 0.0
  %1405 = vmatprep.subr.mxu0 0.0
  %1406 = vmatpush1.msra.mxu0 0.0
  %1407 = vmatprep.subr.mxu0 0.0
  %1408 = vmatpush1.msra.mxu0 0.0
  %1409 = vmatprep.subr.mxu0 0.0
  %1410 = vmatpush1.msra.mxu0 0.0
  %1411 = vmatprep.subr.mxu0 0.0
  %1412 = vmatpush1.msra.mxu0 0.0
  %1413 = vmatprep.subr.mxu0 0.0
  %1414 = vmatpush1.msra.mxu0 0.0
  %1415 = vmatprep.subr.mxu0 0.0
  %1416 = vmatpush1.msra.mxu0 0.0
  %1417 = vmatprep.subr.mxu0 0.0
  %1418 = vmatpush1.msra.mxu0 0.0
  %1419 = vmatprep.subr.mxu0 0.0
  %1420 = vmatpush1.msra.mxu0 0.0
  %1421 = vmatprep.subr.mxu0 0.0
  %1422 = vmatpush1.msra.mxu0 0.0
  %1423 = vmatprep.subr.mxu0 0.0
  %1424 = vmatpush1.msra.mxu0 0.0
  %1425 = vmatprep.subr.mxu0 0.0
  %1426 = vmatpush1.msra.mxu0 0.0
  %1427 = vmatprep.subr.mxu0 0.0
  %1428 = vmatpush1.msra.mxu0 0.0
  %1429 = vmatprep.subr.mxu0 0.0
  %1430 = vmatpush1.msra.mxu0 0.0
  %1431 = vmatprep.subr.mxu0 0.0
  %1432 = vmatpush1.msra.mxu0 0.0
  %1433 = vmatprep.subr.mxu0 0.0
  %1434 = vmatpush1.msra.mxu0 0.0
  %1435 = vmatprep.subr.mxu0 0.0
  %1436 = vmatpush1.msra.mxu0 0.0
  %1437 = vmatprep.subr.mxu0 0.0
  %1438 = vmatpush1.msra.mxu0 0.0
  %1439 = vmatprep.mubr.f32.mxu0 0.0
  %1440 = vmatmul.mubr.f32.gmra.mrb[0].mxu0 %v1373
  %v1441 = vpop.f32.mrb[0].mxu0
  %v1442 = vadd.f32 0.0, %v1441
  %v1443 = vpop.f32.mrb[0].mxu0
  %1444 = vdwg.mxu0
  %s1445 = scalar_lea.vmem %s4, 56
  %1446 = vst [vmem:[%s1445] sm:$0xff] %v1442
  %1448 = vst.msk [vmem:[#allocation2] sm:$0xff] %vm43, %v1372
  %1450 = vrot.lane.b32.xlu0 %v1363, 96
  %v1451 = vpop.permute.xlu0 %1450
  %1453 = vst.msk [vmem:[#allocation3] sm:$0xff] %vm43, %v1451
  // Predicated region
  $region22: #{lstm_state_selector_forward.2} parent=0 // pred_check
    _
  $region23: #{lstm_state_selector_forward.2} parent=0 // pred_check_branch
    %1455 = sbr.rel (0) target = $region25
  $region24: #{lstm_state_selector_forward.2} parent=0 // pred_region
    _
  $region25: #{lstm_state_selector_forward.2} parent=0 // pred_fallthru
    _
  // Predicated region
  $region26: #{lstm_state_selector_forward.2} parent=0 // pred_check
    _
  $region27: #{lstm_state_selector_forward.2} parent=0 // pred_check_branch
    %1457 = sbr.rel (0) target = $region29
  $region28: #{lstm_state_selector_forward.2} parent=0 // pred_region
    _
  $region29: #{lstm_state_selector_forward.2} parent=0 // pred_fallthru
    _

</llo_original>
